<compile_context>
chip_gen: v6e
topology: v6e:2x2x1
jax: 0.10.0
libtpu: 0.0.40
codegen_flags: <defaults>
</compile_context>

<pallas_src>
import math
import functools

import jax
import jax.numpy as jnp
from jax.experimental import pallas as pl
from jax.experimental.pallas import tpu as pltpu

PAD = 0          # Constants.PAD
LN_EPS = 1e-5    # PyTorch nn.LayerNorm default


# ------------------------------ spec helpers ------------------------------- #

def _resident(arr):
    """Whole-array block with a constant index_map (stays VMEM-resident over the grid).

    NOTE: pipeline_mode=pl.Buffered(1) would halve resident-weight VMEM; irrelevant at
    d_model=32, so the default buffering is kept (review item acknowledged).
    """
    n = arr.ndim
    return pl.BlockSpec(arr.shape, lambda b, n=n: (0,) * n)


def _batch_block(*tail):
    nt = len(tail)
    return pl.BlockSpec((1,) + tuple(tail), lambda b, nt=nt: (b,) + (0,) * nt)


def _layer_norm(x, g, b, eps):
    mu = jnp.mean(x, axis=-1, keepdims=True)
    xc = x - mu
    var = jnp.mean(xc * xc, axis=-1, keepdims=True)
    return xc * jax.lax.rsqrt(var + eps) * g + b


# -------------------------- fused whole-forward kernel --------------------- #

def _mp_encoder_kernel(emb_ref, aux_ref, tp_ref, wce_ref, cv_ref,
                       wqkv_ref, wo_ref, w1_ref, w2_ref, vec_ref, o_ref,
                       *, n_layers, n_head, d_k, d_v, d_model, d_inner,
                       eps, use_value):
    L = emb_ref.shape[1]
    hd = 2 * d_k + d_v          # per-head interleaved [q|k|v] slab width
    qw = n_head * hd

    # --- lane-dense per-token side inputs: rows = [time, is_pad, non_pad, value] ---
    aux = aux_ref[0]                            # (4, L)
    aux_t = jnp.transpose(aux)                  # (L, 4)  one tiny transpose for all cols
    t_col, npm, val_col = aux_t[:, 0:1], aux_t[:, 2:3], aux_t[:, 3:4]
    pad_row = aux[1:2, :]                       # (1, L)  key-pad indicator, lane-dense

    # --- temporal encoding: sin(t*inv_pos + offset); offset = pi/2 on odd cols == cos ---
    tem = jnp.sin(t_col * tp_ref[0:1, :] + tp_ref[1:2, :]) * npm           # (L, D)

    # --- event embedding (+ algebraically folded value/combo projection) ---
    x = emb_ref[0]                              # (L, D)
    if use_value:
        x = (jnp.dot(x.astype(jnp.bfloat16), wce_ref[...],
                     preferred_element_type=jnp.float32)
             + val_col * cv_ref[0:1, :] + cv_ref[1:2, :])

    # --- additive attention mask (causal OR key-pad), built once, shared by all layers ---
    row = jax.lax.broadcasted_iota(jnp.int32, (L, L), 0)
    col = jax.lax.broadcasted_iota(jnp.int32, (L, L), 1)
    neg = jnp.where((col > row) | (pad_row > 0.5),
                    jnp.float32(-1e9), jnp.float32(0.0))                   # (L, L)

    # --- layer stack, statically unrolled; residual stream never leaves VMEM ---
    for l in range(n_layers):
        vec = vec_ref[l]                        # (8, W) packed per-layer 1-D params
        x = x + tem                             # reference: enc_output += tem_enc

        # fused QKV projection (one bf16 MXU pass); Q columns carry the 1/sqrt(d_k) scale
        qkv = jnp.dot(x.astype(jnp.bfloat16), wqkv_ref[l],
                      preferred_element_type=jnp.float32) + vec[0:1, :qw]  # (L, H*hd)
        qkv = qkv.astype(jnp.bfloat16)
        # single head-stack of contiguous per-head slabs (weights are head-interleaved)
        heads = jnp.stack([qkv[:, h * hd:(h + 1) * hd] for h in range(n_head)], axis=0)
        q = heads[:, :, :d_k]                   # (H, L, d_k)
        k = heads[:, :, d_k:2 * d_k]            # (H, L, d_k)
        v = heads[:, :, 2 * d_k:]               # (H, L, d_v)

        s = jnp.einsum("hqd,hkd->hqk", q, k,
                       preferred_element_type=jnp.float32) + neg[None]     # (H, L, L)
        s = s - jnp.max(s, axis=-1, keepdims=True)
        p = jnp.exp(s)
        p = p * pl.reciprocal(jnp.sum(p, axis=-1, keepdims=True), approx=True)
        # TODO(synk): for large L replace the materialized (H, L, L) scores with a
        # flash-style KV-blocked online softmax (v7x VMEM = 64 MiB).

        ctx = jnp.einsum("hqk,hkd->hqd", p.astype(jnp.bfloat16), v,
                         preferred_element_type=jnp.float32)               # (H, L, d_v)
        # head merge + output projection fused: batched per-head matmul, sum over heads
        proj = jnp.einsum("hqd,hdm->hqm", ctx.astype(jnp.bfloat16), wo_ref[l],
                          preferred_element_type=jnp.float32)              # (H, L, D)
        out = jnp.sum(proj, axis=0) + vec[1:2, :d_model] + x
        out = _layer_norm(out, vec[2:3, :d_model], vec[3:4, :d_model], eps) * npm

        # fused FFN: the (L, d_inner) intermediate never leaves VMEM
        hmid = jnp.dot(out.astype(jnp.bfloat16), w1_ref[l],
                       preferred_element_type=jnp.float32) + vec[4:5, :d_inner]
        hmid = jax.nn.gelu(hmid)  # TODO(synk): layer internals unspecified; tanh-approx GELU
        y = jnp.dot(hmid.astype(jnp.bfloat16), w2_ref[l],
                    preferred_element_type=jnp.float32) + vec[5:6, :d_model]
        x = _layer_norm(y + out, vec[6:7, :d_model], vec[7:8, :d_model], eps) * npm

    o_ref[0] = x.astype(o_ref.dtype)


# ------------------------------ parameters --------------------------------- #

def init_params(key, *, num_types, d_model, d_inner, n_layers, n_head, d_k, d_v):
    """Logical (PyTorch-layout) parameters."""
    def normal(k, shape, scale=0.02):
        return scale * jax.random.normal(k, shape, dtype=jnp.float32)

    keys = jax.random.split(key, 3 + 6 * n_layers)
    ki = iter(keys)

    emb = normal(next(ki), (num_types + 1, d_model)).at[PAD].set(0.0)   # padding_idx
    params = {
        "position_vec": jnp.asarray(
            [math.pow(10000.0, 2.0 * (i // 2) / d_model) for i in range(d_model)],
            dtype=jnp.float32),
        "event_emb": emb,
        "value_emb_w": normal(next(ki), (1, d_model)),
        "value_emb_b": jnp.zeros((1, d_model), jnp.float32),
        "combo_w": normal(next(ki), (2 * d_model, d_model)),
        "combo_b": jnp.zeros((1, d_model), jnp.float32),
        "layers": [],
    }
    for _ in range(n_layers):
        params["layers"].append({
            "wq": normal(next(ki), (d_model, n_head * d_k)), "bq": jnp.zeros((n_head * d_k,)),
            "wk": normal(next(ki), (d_model, n_head * d_k)), "bk": jnp.zeros((n_head * d_k,)),
            "wv": normal(next(ki), (d_model, n_head * d_v)), "bv": jnp.zeros((n_head * d_v,)),
            "wo": normal(next(ki), (n_head * d_v, d_model)), "bo": jnp.zeros((d_model,)),
            "ln1_g": jnp.ones((d_model,)), "ln1_b": jnp.zeros((d_model,)),
            "w1": normal(next(ki), (d_model, d_inner)), "b1": jnp.zeros((d_inner,)),
            "w2": normal(next(ki), (d_inner, d_model)), "b2": jnp.zeros((d_model,)),
            "ln2_g": jnp.ones((d_model,)), "ln2_b": jnp.zeros((d_model,)),
        })
    return params


def pack_params(p, *, n_head, d_k, d_v):
    """Fold & pack logical params into the kernel layout (pure reparameterisation)."""
    d_model = p["event_emb"].shape[1]
    n_layers = len(p["layers"])
    d_inner = p["layers"][0]["w1"].shape[1]
    hd = 2 * d_k + d_v
    W = max(n_head * hd, d_inner, d_model)
    scale = 1.0 / math.sqrt(d_k)                 # folded into Wq / bq

    inv_pv = (1.0 / p["position_vec"]).reshape(1, d_model)
    off = jnp.asarray([0.0 if i % 2 == 0 else math.pi / 2.0 for i in range(d_model)],
                      jnp.float32).reshape(1, d_model)
    tem_pack = jnp.concatenate([inv_pv, off], axis=0)                        # (2, D)

    # combo(cat([emb, val_enc])) == emb @ Wc_top + val*(Wv @ Wc_bot) + (bv @ Wc_bot + bc)
    wc_top, wc_bot = p["combo_w"][:d_model], p["combo_w"][d_model:]
    combo_vec = jnp.concatenate([p["value_emb_w"] @ wc_bot,
                                 p["value_emb_b"] @ wc_bot + p["combo_b"]], axis=0)  # (2, D)

    def padded(v):
        v = v.reshape(-1)
        return jnp.pad(v, (0, W - v.shape[0]))

    wqkv_l, wo_l, w1_l, w2_l, vec_l = [], [], [], [], []
    for lp in p["layers"]:
        wq, wk, wv = lp["wq"] * scale, lp["wk"], lp["wv"]
        bq, bk, bv = lp["bq"] * scale, lp["bk"], lp["bv"]
        cols, bias = [], []
        for h in range(n_head):                  # head-interleaved [q_h | k_h | v_h]
            cols += [wq[:, h * d_k:(h + 1) * d_k], wk[:, h * d_k:(h + 1) * d_k],
                     wv[:, h * d_v:(h + 1) * d_v]]
            bias += [bq[h * d_k:(h + 1) * d_k], bk[h * d_k:(h + 1) * d_k],
                     bv[h * d_v:(h + 1) * d_v]]
        wqkv_l.append(jnp.concatenate(cols, axis=1).astype(jnp.bfloat16))    # (D, H*hd)
        wo_l.append(lp["wo"].reshape(n_head, d_v, d_model).astype(jnp.bfloat16))
        w1_l.append(lp["w1"].astype(jnp.bfloat16))
        w2_l.append(lp["w2"].astype(jnp.bfloat16))
        vec_l.append(jnp.stack([
            padded(jnp.concatenate(bias)),       # row 0: interleaved QKV bias
            padded(lp["bo"]),                    # row 1: output-proj bias
            padded(lp["ln1_g"]), padded(lp["ln1_b"]),
            padded(lp["b1"]), padded(lp["b2"]),
            padded(lp["ln2_g"]), padded(lp["ln2_b"]),
        ], axis=0))                              # (8, W)

    return {
        "cfg": dict(n_layers=n_layers, n_head=n_head, d_k=d_k, d_v=d_v,
                    d_model=d_model, d_inner=d_inner),
        "event_emb": p["event_emb"],
        "tem_pack": tem_pack,
        "combo_w": wc_top.astype(jnp.bfloat16),
        "combo_vec": combo_vec,
        "wqkv": jnp.stack(wqkv_l), "wo": jnp.stack(wo_l),
        "w1": jnp.stack(w1_l), "w2": jnp.stack(w2_l),
        "vec": jnp.stack(vec_l),
    }


# -------------------------------- forward ---------------------------------- #

def mp_encoder_forward(params, event_type, event_time, non_pad_mask, process_mask,
                       event_value=None):
    cfg = params["cfg"]
    n_layers, n_head = cfg["n_layers"], cfg["n_head"]
    d_k, d_v, d_model, d_inner = cfg["d_k"], cfg["d_v"], cfg["d_model"], cfg["d_inner"]
    B, L = event_type.shape

    use_value = event_value is not None
    val = (event_value.astype(jnp.float32) if use_value
           else jnp.zeros((B, L), jnp.float32))
    # lane-dense per-token side inputs, packed into one (B, 4, L) array
    aux = jnp.stack([event_time.astype(jnp.float32),
                     (event_type == PAD).astype(jnp.float32),
                     non_pad_mask.reshape(B, L).astype(jnp.float32),
                     val], axis=1)

    # nn.Embedding lookup stays in XLA (single small gather); everything else is fused.
    emb = jnp.take(params["event_emb"], event_type, axis=0)                  # (B, L, D)

    kernel = functools.partial(
        _mp_encoder_kernel, n_layers=n_layers, n_head=n_head, d_k=d_k, d_v=d_v,
        d_model=d_model, d_inner=d_inner, eps=LN_EPS, use_value=use_value)

    enc_out = pl.pallas_call(
        kernel,
        out_shape=jax.ShapeDtypeStruct((B, L, d_model), jnp.float32),
        grid=(B,),
        in_specs=[_batch_block(L, d_model),          # emb
                  _batch_block(4, L),                # aux (time / is_pad / non_pad / value)
                  _resident(params["tem_pack"]),
                  _resident(params["combo_w"]), _resident(params["combo_vec"]),
                  _resident(params["wqkv"]), _resident(params["wo"]),
                  _resident(params["w1"]), _resident(params["w2"]),
                  _resident(params["vec"])],
        out_specs=_batch_block(L, d_model),
        compiler_params=pltpu.CompilerParams(dimension_semantics=("parallel",)),
    )(emb, aux, params["tem_pack"], params["combo_w"], params["combo_vec"],
      params["wqkv"], params["wo"], params["w1"], params["w2"], params["vec"])

    # TODO(synk): oracle-driven process_mask refinement not specified; pass through.
    saved_process_mask = []
    for _ in range(n_layers):
        saved_process_mask.append(process_mask)
    saved_process_mask.append(process_mask)
    return enc_out, saved_process_mask


# --------------------------------- main ------------------------------------ #

if __name__ == "__main__":
    num_types, d_model, d_inner = 5, 32, 64
    n_layers, n_head, d_k, d_v = 2, 4, 8, 8
    num_processes = 3
    B, L = 2, 8

    key = jax.random.PRNGKey(0)
    kp, k1, k2, k3 = jax.random.split(key, 4)

    logical = init_params(kp, num_types=num_types, d_model=d_model, d_inner=d_inner,
                          n_layers=n_layers, n_head=n_head, d_k=d_k, d_v=d_v)
    params = pack_params(logical, n_head=n_head, d_k=d_k, d_v=d_v)

    event_type = jax.random.randint(k1, (B, L), 1, num_types + 1)
    event_type = event_type.at[:, -2:].set(PAD)                              # pad tail
    event_time = jnp.cumsum(jax.random.uniform(k2, (B, L), jnp.float32), axis=1)
    event_value = jax.random.normal(k3, (B, L), jnp.float32)
    non_pad_mask = (event_type != PAD).astype(jnp.float32)[..., None]        # (B, L, 1)
    process_mask = jnp.ones((B, L, num_processes), jnp.float32)

    enc_out, saved_masks = mp_encoder_forward(
        params, event_type, event_time, non_pad_mask, process_mask,
        event_value=event_value)

    jax.block_until_ready(enc_out)
    assert enc_out.shape == (B, L, d_model)
    assert len(saved_masks) == n_layers + 1
    assert bool(jnp.all(jnp.isfinite(enc_out)))
    print("KERNEL_OK")
</pallas_src>

<mosaic_0001>
module attributes {stable_mosaic.version = 11 : i64} {
  func.func @_mp_encoder_kernel(%arg0: i32, %arg1: memref<1x8x32xf32, #tpu.memory_space<vmem>>, %arg2: memref<1x4x8xf32, #tpu.memory_space<vmem>>, %arg3: memref<2x32xf32, #tpu.memory_space<vmem>>, %arg4: memref<32x32xbf16, #tpu.memory_space<vmem>>, %arg5: memref<2x32xf32, #tpu.memory_space<vmem>>, %arg6: memref<2x32x96xbf16, #tpu.memory_space<vmem>>, %arg7: memref<2x4x8x32xbf16, #tpu.memory_space<vmem>>, %arg8: memref<2x32x64xbf16, #tpu.memory_space<vmem>>, %arg9: memref<2x64x32xbf16, #tpu.memory_space<vmem>>, %arg10: memref<2x8x96xf32, #tpu.memory_space<vmem>>, %arg11: memref<1x8x32xf32, #tpu.memory_space<vmem>>) attributes {dimension_semantics = [#tpu.dimension_semantics<parallel>], iteration_bounds = array<i64: 2>, scalar_prefetch = 0 : i64, scratch_operands = 0 : i64, tpu.core_type = #tpu.core_type<tc>, window_params = [{transform_indices = @transform_0, window_bounds = array<i64: 1, 8, 32>}, {transform_indices = @transform_1, window_bounds = array<i64: 1, 4, 8>}, {pipeline_mode = #tpu.pipeline_mode<synchronous>, transform_indices = @transform_2, window_bounds = array<i64: 2, 32>}, {pipeline_mode = #tpu.pipeline_mode<synchronous>, transform_indices = @transform_3, window_bounds = array<i64: 32, 32>}, {pipeline_mode = #tpu.pipeline_mode<synchronous>, transform_indices = @transform_4, window_bounds = array<i64: 2, 32>}, {pipeline_mode = #tpu.pipeline_mode<synchronous>, transform_indices = @transform_5, window_bounds = array<i64: 2, 32, 96>}, {pipeline_mode = #tpu.pipeline_mode<synchronous>, transform_indices = @transform_6, window_bounds = array<i64: 2, 4, 8, 32>}, {pipeline_mode = #tpu.pipeline_mode<synchronous>, transform_indices = @transform_7, window_bounds = array<i64: 2, 32, 64>}, {pipeline_mode = #tpu.pipeline_mode<synchronous>, transform_indices = @transform_8, window_bounds = array<i64: 2, 64, 32>}, {pipeline_mode = #tpu.pipeline_mode<synchronous>, transform_indices = @transform_9, window_bounds = array<i64: 2, 8, 96>}, {transform_indices = @transform_10, window_bounds = array<i64: 1, 8, 32>}]} {
    %c0 = arith.constant 0 : index
    %c0_0 = arith.constant 0 : index
    %c0_1 = arith.constant 0 : index
    %0 = vector.load %arg2[%c0, %c0_0, %c0_1] : memref<1x4x8xf32, #tpu.memory_space<vmem>>, vector<1x4x8xf32>
    %1 = vector.shape_cast %0 : vector<1x4x8xf32> to vector<4x8xf32>
    %2 = tpu.transpose %1, [1, 0] : vector<4x8xf32> -> vector<8x4xf32>
    %3 = vector.extract_strided_slice %2 {offsets = [0, 0], sizes = [8, 1], strides = [1, 1]} : vector<8x4xf32> to vector<8x1xf32>
    %4 = vector.extract_strided_slice %2 {offsets = [0, 2], sizes = [8, 1], strides = [1, 1]} : vector<8x4xf32> to vector<8x1xf32>
    %5 = vector.extract_strided_slice %2 {offsets = [0, 3], sizes = [8, 1], strides = [1, 1]} : vector<8x4xf32> to vector<8x1xf32>
    %6 = vector.extract_strided_slice %1 {offsets = [1, 0], sizes = [1, 8], strides = [1, 1]} : vector<4x8xf32> to vector<1x8xf32>
    %c0_2 = arith.constant 0 : index
    %c0_3 = arith.constant 0 : index
    %7 = vector.load %arg3[%c0_2, %c0_3] : memref<2x32xf32, #tpu.memory_space<vmem>>, vector<1x32xf32>
    %8 = vector.broadcast %3 : vector<8x1xf32> to vector<8x32xf32>
    %9 = vector.broadcast %7 : vector<1x32xf32> to vector<8x32xf32>
    %10 = arith.mulf %8, %9 : vector<8x32xf32>
    %c1 = arith.constant 1 : index
    %c0_4 = arith.constant 0 : index
    %11 = vector.load %arg3[%c1, %c0_4] : memref<2x32xf32, #tpu.memory_space<vmem>>, vector<1x32xf32>
    %12 = vector.broadcast %11 : vector<1x32xf32> to vector<8x32xf32>
    %13 = arith.addf %10, %12 : vector<8x32xf32>
    %14 = math.sin %13 : vector<8x32xf32>
    %15 = vector.broadcast %4 : vector<8x1xf32> to vector<8x32xf32>
    %16 = arith.mulf %14, %15 : vector<8x32xf32>
    %c0_5 = arith.constant 0 : index
    %c0_6 = arith.constant 0 : index
    %c0_7 = arith.constant 0 : index
    %17 = vector.load %arg1[%c0_5, %c0_6, %c0_7] : memref<1x8x32xf32, #tpu.memory_space<vmem>>, vector<1x8x32xf32>
    %18 = vector.shape_cast %17 : vector<1x8x32xf32> to vector<8x32xf32>
    %19 = arith.truncf %18 : vector<8x32xf32> to vector<8x32xbf16>
    %c0_8 = arith.constant 0 : index
    %c0_9 = arith.constant 0 : index
    %20 = vector.load %arg4[%c0_8, %c0_9] : memref<32x32xbf16, #tpu.memory_space<vmem>>, vector<32x32xbf16>
    %cst = arith.constant dense<0.000000e+00> : vector<8x32xf32>
    %21 = tpu.matmul %19, %20, %cst {dimension_numbers = #tpu.dot_dimension_numbers<[1], [0], [0], [1], [0, 0, 1, 1], [], []>} : vector<8x32xbf16>, vector<32x32xbf16>, vector<8x32xf32> -> vector<8x32xf32>
    %c0_10 = arith.constant 0 : index
    %c0_11 = arith.constant 0 : index
    %22 = vector.load %arg5[%c0_10, %c0_11] : memref<2x32xf32, #tpu.memory_space<vmem>>, vector<1x32xf32>
    %23 = vector.broadcast %5 : vector<8x1xf32> to vector<8x32xf32>
    %24 = vector.broadcast %22 : vector<1x32xf32> to vector<8x32xf32>
    %25 = arith.mulf %23, %24 : vector<8x32xf32>
    %26 = arith.addf %21, %25 : vector<8x32xf32>
    %c1_12 = arith.constant 1 : index
    %c0_13 = arith.constant 0 : index
    %27 = vector.load %arg5[%c1_12, %c0_13] : memref<2x32xf32, #tpu.memory_space<vmem>>, vector<1x32xf32>
    %28 = vector.broadcast %27 : vector<1x32xf32> to vector<8x32xf32>
    %29 = arith.addf %26, %28 : vector<8x32xf32>
    %30 = tpu.iota {dimensions = array<i32: 0>} : vector<8x8xi32>
    %31 = tpu.iota {dimensions = array<i32: 1>} : vector<8x8xi32>
    %32 = arith.cmpi sgt, %31, %30 : vector<8x8xi32>
    %cst_14 = arith.constant 5.000000e-01 : f32
    %33 = vector.broadcast %cst_14 : f32 to vector<1x8xf32>
    %34 = arith.cmpf ogt, %6, %33 : vector<1x8xf32>
    %35 = vector.broadcast %34 : vector<1x8xi1> to vector<8x8xi1>
    %36 = arith.ori %32, %35 : vector<8x8xi1>
    %cst_15 = arith.constant -1.000000e+09 : f32
    %cst_16 = arith.constant 0.000000e+00 : f32
    %37 = vector.broadcast %cst_15 : f32 to vector<8x8xf32>
    %38 = vector.broadcast %cst_16 : f32 to vector<8x8xf32>
    %39 = arith.select %36, %37, %38 : vector<8x8xi1>, vector<8x8xf32>
    %c0_17 = arith.constant 0 : index
    %c0_18 = arith.constant 0 : index
    %c0_19 = arith.constant 0 : index
    %40 = vector.load %arg10[%c0_17, %c0_18, %c0_19] : memref<2x8x96xf32, #tpu.memory_space<vmem>>, vector<1x8x96xf32>
    %41 = vector.shape_cast %40 : vector<1x8x96xf32> to vector<8x96xf32>
    %42 = arith.addf %29, %16 : vector<8x32xf32>
    %43 = arith.truncf %42 : vector<8x32xf32> to vector<8x32xbf16>
    %c0_20 = arith.constant 0 : index
    %c0_21 = arith.constant 0 : index
    %c0_22 = arith.constant 0 : index
    %44 = vector.load %arg6[%c0_20, %c0_21, %c0_22] : memref<2x32x96xbf16, #tpu.memory_space<vmem>>, vector<1x32x96xbf16>
    %45 = vector.shape_cast %44 : vector<1x32x96xbf16> to vector<32x96xbf16>
    %cst_23 = arith.constant dense<0.000000e+00> : vector<8x96xf32>
    %46 = tpu.matmul %43, %45, %cst_23 {dimension_numbers = #tpu.dot_dimension_numbers<[1], [0], [0], [1], [0, 0, 1, 1], [], []>} : vector<8x32xbf16>, vector<32x96xbf16>, vector<8x96xf32> -> vector<8x96xf32>
    %47 = vector.extract_strided_slice %41 {offsets = [0, 0], sizes = [1, 96], strides = [1, 1]} : vector<8x96xf32> to vector<1x96xf32>
    %48 = vector.broadcast %47 : vector<1x96xf32> to vector<8x96xf32>
    %49 = arith.addf %46, %48 : vector<8x96xf32>
    %50 = arith.truncf %49 : vector<8x96xf32> to vector<8x96xbf16>
    %51 = vector.extract_strided_slice %50 {offsets = [0, 0], sizes = [8, 24], strides = [1, 1]} : vector<8x96xbf16> to vector<8x24xbf16>
    %52 = vector.extract_strided_slice %50 {offsets = [0, 24], sizes = [8, 24], strides = [1, 1]} : vector<8x96xbf16> to vector<8x24xbf16>
    %53 = vector.extract_strided_slice %50 {offsets = [0, 48], sizes = [8, 24], strides = [1, 1]} : vector<8x96xbf16> to vector<8x24xbf16>
    %54 = vector.extract_strided_slice %50 {offsets = [0, 72], sizes = [8, 24], strides = [1, 1]} : vector<8x96xbf16> to vector<8x24xbf16>
    %55 = vector.shape_cast %51 : vector<8x24xbf16> to vector<1x8x24xbf16>
    %56 = vector.shape_cast %52 : vector<8x24xbf16> to vector<1x8x24xbf16>
    %57 = vector.shape_cast %53 : vector<8x24xbf16> to vector<1x8x24xbf16>
    %58 = vector.shape_cast %54 : vector<8x24xbf16> to vector<1x8x24xbf16>
    %59 = tpu.concatenate %55, %56, %57, %58 in 0 : vector<1x8x24xbf16>, vector<1x8x24xbf16>, vector<1x8x24xbf16>, vector<1x8x24xbf16> -> vector<4x8x24xbf16>
    %60 = vector.extract_strided_slice %59 {offsets = [0, 0, 0], sizes = [4, 8, 8], strides = [1, 1, 1]} : vector<4x8x24xbf16> to vector<4x8x8xbf16>
    %61 = vector.extract_strided_slice %59 {offsets = [0, 0, 8], sizes = [4, 8, 8], strides = [1, 1, 1]} : vector<4x8x24xbf16> to vector<4x8x8xbf16>
    %62 = vector.extract_strided_slice %59 {offsets = [0, 0, 16], sizes = [4, 8, 8], strides = [1, 1, 1]} : vector<4x8x24xbf16> to vector<4x8x8xbf16>
    "tpu.trace_start"() <{level = 10 : i32, message = "hqd,hkd->hqk"}> : () -> ()
    %cst_24 = arith.constant dense<0.000000e+00> : vector<4x8x8xf32>
    %63 = tpu.matmul %60, %61, %cst_24 {dimension_numbers = #tpu.dot_dimension_numbers<[2], [2], [1], [1], [0, 0, 0, 1, 1, 1], [0], [0]>} : vector<4x8x8xbf16>, vector<4x8x8xbf16>, vector<4x8x8xf32> -> vector<4x8x8xf32>
    "tpu.trace_stop"() : () -> ()
    %64 = vector.shape_cast %39 : vector<8x8xf32> to vector<1x8x8xf32>
    %65 = vector.broadcast %64 : vector<1x8x8xf32> to vector<4x8x8xf32>
    %66 = arith.addf %63, %65 : vector<4x8x8xf32>
    %cst_25 = arith.constant dense<0xFF800000> : vector<4x8xf32>
    %67 = vector.multi_reduction <maximumf>, %66, %cst_25 [2] : vector<4x8x8xf32> to vector<4x8xf32>
    %68 = vector.shape_cast %67 : vector<4x8xf32> to vector<4x8x1xf32>
    %69 = vector.broadcast %68 : vector<4x8x1xf32> to vector<4x8x8xf32>
    %70 = arith.subf %66, %69 : vector<4x8x8xf32>
    %71 = math.exp %70 : vector<4x8x8xf32>
    %cst_26 = arith.constant dense<0.000000e+00> : vector<4x8xf32>
    %72 = vector.multi_reduction <add>, %71, %cst_26 [2] : vector<4x8x8xf32> to vector<4x8xf32>
    %73 = vector.shape_cast %72 : vector<4x8xf32> to vector<4x8x1xf32>
    %74 = tpu.reciprocal %73 {approx = true} : vector<4x8x1xf32> -> vector<4x8x1xf32>
    %75 = vector.broadcast %74 : vector<4x8x1xf32> to vector<4x8x8xf32>
    %76 = arith.mulf %71, %75 : vector<4x8x8xf32>
    %77 = arith.truncf %76 : vector<4x8x8xf32> to vector<4x8x8xbf16>
    "tpu.trace_start"() <{level = 10 : i32, message = "hqk,hkd->hqd"}> : () -> ()
    %cst_27 = arith.constant dense<0.000000e+00> : vector<4x8x8xf32>
    %78 = tpu.matmul %77, %62, %cst_27 {dimension_numbers = #tpu.dot_dimension_numbers<[2], [1], [1], [2], [0, 0, 0, 1, 1, 2], [0], [0]>} : vector<4x8x8xbf16>, vector<4x8x8xbf16>, vector<4x8x8xf32> -> vector<4x8x8xf32>
    "tpu.trace_stop"() : () -> ()
    %79 = arith.truncf %78 : vector<4x8x8xf32> to vector<4x8x8xbf16>
    %c0_28 = arith.constant 0 : index
    %c0_29 = arith.constant 0 : index
    %c0_30 = arith.constant 0 : index
    %c0_31 = arith.constant 0 : index
    %80 = vector.load %arg7[%c0_28, %c0_29, %c0_30, %c0_31] : memref<2x4x8x32xbf16, #tpu.memory_space<vmem>>, vector<1x4x8x32xbf16>
    %81 = vector.shape_cast %80 : vector<1x4x8x32xbf16> to vector<4x8x32xbf16>
    "tpu.trace_start"() <{level = 10 : i32, message = "hqd,hdm->hqm"}> : () -> ()
    %cst_32 = arith.constant dense<0.000000e+00> : vector<4x8x32xf32>
    %82 = tpu.matmul %79, %81, %cst_32 {dimension_numbers = #tpu.dot_dimension_numbers<[2], [1], [1], [2], [0, 0, 0, 1, 1, 2], [0], [0]>} : vector<4x8x8xbf16>, vector<4x8x32xbf16>, vector<4x8x32xf32> -> vector<4x8x32xf32>
    "tpu.trace_stop"() : () -> ()
    %cst_33 = arith.constant dense<0.000000e+00> : vector<8x32xf32>
    %83 = vector.multi_reduction <add>, %82, %cst_33 [0] : vector<4x8x32xf32> to vector<8x32xf32>
    %84 = vector.extract_strided_slice %41 {offsets = [1, 0], sizes = [1, 32], strides = [1, 1]} : vector<8x96xf32> to vector<1x32xf32>
    %85 = vector.broadcast %84 : vector<1x32xf32> to vector<8x32xf32>
    %86 = arith.addf %83, %85 : vector<8x32xf32>
    %87 = arith.addf %86, %42 : vector<8x32xf32>
    %88 = vector.extract_strided_slice %41 {offsets = [2, 0], sizes = [1, 32], strides = [1, 1]} : vector<8x96xf32> to vector<1x32xf32>
    %89 = vector.extract_strided_slice %41 {offsets = [3, 0], sizes = [1, 32], strides = [1, 1]} : vector<8x96xf32> to vector<1x32xf32>
    %cst_34 = arith.constant dense<0.000000e+00> : vector<8xf32>
    %90 = vector.multi_reduction <add>, %87, %cst_34 [1] : vector<8x32xf32> to vector<8xf32>
    %91 = vector.shape_cast %90 : vector<8xf32> to vector<8x1xf32>
    %cst_35 = arith.constant 3.200000e+01 : f32
    %92 = vector.broadcast %cst_35 : f32 to vector<8x1xf32>
    %93 = arith.divf %91, %92 : vector<8x1xf32>
    %94 = vector.broadcast %93 : vector<8x1xf32> to vector<8x32xf32>
    %95 = arith.subf %87, %94 : vector<8x32xf32>
    %96 = arith.mulf %95, %95 : vector<8x32xf32>
    %cst_36 = arith.constant dense<0.000000e+00> : vector<8xf32>
    %97 = vector.multi_reduction <add>, %96, %cst_36 [1] : vector<8x32xf32> to vector<8xf32>
    %98 = vector.shape_cast %97 : vector<8xf32> to vector<8x1xf32>
    %cst_37 = arith.constant 3.200000e+01 : f32
    %99 = vector.broadcast %cst_37 : f32 to vector<8x1xf32>
    %100 = arith.divf %98, %99 : vector<8x1xf32>
    %cst_38 = arith.constant 9.99999974E-6 : f32
    %101 = vector.broadcast %cst_38 : f32 to vector<8x1xf32>
    %102 = arith.addf %100, %101 : vector<8x1xf32>
    %103 = math.rsqrt %102 : vector<8x1xf32>
    %104 = vector.broadcast %103 : vector<8x1xf32> to vector<8x32xf32>
    %105 = arith.mulf %95, %104 : vector<8x32xf32>
    %106 = vector.broadcast %88 : vector<1x32xf32> to vector<8x32xf32>
    %107 = arith.mulf %105, %106 : vector<8x32xf32>
    %108 = vector.broadcast %89 : vector<1x32xf32> to vector<8x32xf32>
    %109 = arith.addf %107, %108 : vector<8x32xf32>
    %110 = vector.broadcast %4 : vector<8x1xf32> to vector<8x32xf32>
    %111 = arith.mulf %109, %110 : vector<8x32xf32>
    %112 = arith.truncf %111 : vector<8x32xf32> to vector<8x32xbf16>
    %c0_39 = arith.constant 0 : index
    %c0_40 = arith.constant 0 : index
    %c0_41 = arith.constant 0 : index
    %113 = vector.load %arg8[%c0_39, %c0_40, %c0_41] : memref<2x32x64xbf16, #tpu.memory_space<vmem>>, vector<1x32x64xbf16>
    %114 = vector.shape_cast %113 : vector<1x32x64xbf16> to vector<32x64xbf16>
    %cst_42 = arith.constant dense<0.000000e+00> : vector<8x64xf32>
    %115 = tpu.matmul %112, %114, %cst_42 {dimension_numbers = #tpu.dot_dimension_numbers<[1], [0], [0], [1], [0, 0, 1, 1], [], []>} : vector<8x32xbf16>, vector<32x64xbf16>, vector<8x64xf32> -> vector<8x64xf32>
    %116 = vector.extract_strided_slice %41 {offsets = [4, 0], sizes = [1, 64], strides = [1, 1]} : vector<8x96xf32> to vector<1x64xf32>
    %117 = vector.broadcast %116 : vector<1x64xf32> to vector<8x64xf32>
    %118 = arith.addf %115, %117 : vector<8x64xf32>
    %119 = arith.mulf %118, %118 : vector<8x64xf32>
    %120 = arith.mulf %118, %119 : vector<8x64xf32>
    %cst_43 = arith.constant 4.471500e-02 : f32
    %121 = vector.broadcast %cst_43 : f32 to vector<8x64xf32>
    %122 = arith.mulf %121, %120 : vector<8x64xf32>
    %123 = arith.addf %118, %122 : vector<8x64xf32>
    %cst_44 = arith.constant 0.797884583 : f32
    %124 = vector.broadcast %cst_44 : f32 to vector<8x64xf32>
    %125 = arith.mulf %124, %123 : vector<8x64xf32>
    %126 = math.tanh %125 : vector<8x64xf32>
    %cst_45 = arith.constant 1.000000e+00 : f32
    %127 = vector.broadcast %cst_45 : f32 to vector<8x64xf32>
    %128 = arith.addf %127, %126 : vector<8x64xf32>
    %cst_46 = arith.constant 5.000000e-01 : f32
    %129 = vector.broadcast %cst_46 : f32 to vector<8x64xf32>
    %130 = arith.mulf %129, %128 : vector<8x64xf32>
    %131 = arith.mulf %118, %130 : vector<8x64xf32>
    %132 = arith.truncf %131 : vector<8x64xf32> to vector<8x64xbf16>
    %c0_47 = arith.constant 0 : index
    %c0_48 = arith.constant 0 : index
    %c0_49 = arith.constant 0 : index
    %133 = vector.load %arg9[%c0_47, %c0_48, %c0_49] : memref<2x64x32xbf16, #tpu.memory_space<vmem>>, vector<1x64x32xbf16>
    %134 = vector.shape_cast %133 : vector<1x64x32xbf16> to vector<64x32xbf16>
    %cst_50 = arith.constant dense<0.000000e+00> : vector<8x32xf32>
    %135 = tpu.matmul %132, %134, %cst_50 {dimension_numbers = #tpu.dot_dimension_numbers<[1], [0], [0], [1], [0, 0, 1, 1], [], []>} : vector<8x64xbf16>, vector<64x32xbf16>, vector<8x32xf32> -> vector<8x32xf32>
    %136 = vector.extract_strided_slice %41 {offsets = [5, 0], sizes = [1, 32], strides = [1, 1]} : vector<8x96xf32> to vector<1x32xf32>
    %137 = vector.broadcast %136 : vector<1x32xf32> to vector<8x32xf32>
    %138 = arith.addf %135, %137 : vector<8x32xf32>
    %139 = arith.addf %138, %111 : vector<8x32xf32>
    %140 = vector.extract_strided_slice %41 {offsets = [6, 0], sizes = [1, 32], strides = [1, 1]} : vector<8x96xf32> to vector<1x32xf32>
    %141 = vector.extract_strided_slice %41 {offsets = [7, 0], sizes = [1, 32], strides = [1, 1]} : vector<8x96xf32> to vector<1x32xf32>
    %cst_51 = arith.constant dense<0.000000e+00> : vector<8xf32>
    %142 = vector.multi_reduction <add>, %139, %cst_51 [1] : vector<8x32xf32> to vector<8xf32>
    %143 = vector.shape_cast %142 : vector<8xf32> to vector<8x1xf32>
    %cst_52 = arith.constant 3.200000e+01 : f32
    %144 = vector.broadcast %cst_52 : f32 to vector<8x1xf32>
    %145 = arith.divf %143, %144 : vector<8x1xf32>
    %146 = vector.broadcast %145 : vector<8x1xf32> to vector<8x32xf32>
    %147 = arith.subf %139, %146 : vector<8x32xf32>
    %148 = arith.mulf %147, %147 : vector<8x32xf32>
    %cst_53 = arith.constant dense<0.000000e+00> : vector<8xf32>
    %149 = vector.multi_reduction <add>, %148, %cst_53 [1] : vector<8x32xf32> to vector<8xf32>
    %150 = vector.shape_cast %149 : vector<8xf32> to vector<8x1xf32>
    %cst_54 = arith.constant 3.200000e+01 : f32
    %151 = vector.broadcast %cst_54 : f32 to vector<8x1xf32>
    %152 = arith.divf %150, %151 : vector<8x1xf32>
    %cst_55 = arith.constant 9.99999974E-6 : f32
    %153 = vector.broadcast %cst_55 : f32 to vector<8x1xf32>
    %154 = arith.addf %152, %153 : vector<8x1xf32>
    %155 = math.rsqrt %154 : vector<8x1xf32>
    %156 = vector.broadcast %155 : vector<8x1xf32> to vector<8x32xf32>
    %157 = arith.mulf %147, %156 : vector<8x32xf32>
    %158 = vector.broadcast %140 : vector<1x32xf32> to vector<8x32xf32>
    %159 = arith.mulf %157, %158 : vector<8x32xf32>
    %160 = vector.broadcast %141 : vector<1x32xf32> to vector<8x32xf32>
    %161 = arith.addf %159, %160 : vector<8x32xf32>
    %162 = vector.broadcast %4 : vector<8x1xf32> to vector<8x32xf32>
    %163 = arith.mulf %161, %162 : vector<8x32xf32>
    %c1_56 = arith.constant 1 : index
    %c0_57 = arith.constant 0 : index
    %c0_58 = arith.constant 0 : index
    %164 = vector.load %arg10[%c1_56, %c0_57, %c0_58] : memref<2x8x96xf32, #tpu.memory_space<vmem>>, vector<1x8x96xf32>
    %165 = vector.shape_cast %164 : vector<1x8x96xf32> to vector<8x96xf32>
    %166 = arith.addf %163, %16 : vector<8x32xf32>
    %167 = arith.truncf %166 : vector<8x32xf32> to vector<8x32xbf16>
    %c1_59 = arith.constant 1 : index
    %c0_60 = arith.constant 0 : index
    %c0_61 = arith.constant 0 : index
    %168 = vector.load %arg6[%c1_59, %c0_60, %c0_61] : memref<2x32x96xbf16, #tpu.memory_space<vmem>>, vector<1x32x96xbf16>
    %169 = vector.shape_cast %168 : vector<1x32x96xbf16> to vector<32x96xbf16>
    %cst_62 = arith.constant dense<0.000000e+00> : vector<8x96xf32>
    %170 = tpu.matmul %167, %169, %cst_62 {dimension_numbers = #tpu.dot_dimension_numbers<[1], [0], [0], [1], [0, 0, 1, 1], [], []>} : vector<8x32xbf16>, vector<32x96xbf16>, vector<8x96xf32> -> vector<8x96xf32>
    %171 = vector.extract_strided_slice %165 {offsets = [0, 0], sizes = [1, 96], strides = [1, 1]} : vector<8x96xf32> to vector<1x96xf32>
    %172 = vector.broadcast %171 : vector<1x96xf32> to vector<8x96xf32>
    %173 = arith.addf %170, %172 : vector<8x96xf32>
    %174 = arith.truncf %173 : vector<8x96xf32> to vector<8x96xbf16>
    %175 = vector.extract_strided_slice %174 {offsets = [0, 0], sizes = [8, 24], strides = [1, 1]} : vector<8x96xbf16> to vector<8x24xbf16>
    %176 = vector.extract_strided_slice %174 {offsets = [0, 24], sizes = [8, 24], strides = [1, 1]} : vector<8x96xbf16> to vector<8x24xbf16>
    %177 = vector.extract_strided_slice %174 {offsets = [0, 48], sizes = [8, 24], strides = [1, 1]} : vector<8x96xbf16> to vector<8x24xbf16>
    %178 = vector.extract_strided_slice %174 {offsets = [0, 72], sizes = [8, 24], strides = [1, 1]} : vector<8x96xbf16> to vector<8x24xbf16>
    %179 = vector.shape_cast %175 : vector<8x24xbf16> to vector<1x8x24xbf16>
    %180 = vector.shape_cast %176 : vector<8x24xbf16> to vector<1x8x24xbf16>
    %181 = vector.shape_cast %177 : vector<8x24xbf16> to vector<1x8x24xbf16>
    %182 = vector.shape_cast %178 : vector<8x24xbf16> to vector<1x8x24xbf16>
    %183 = tpu.concatenate %179, %180, %181, %182 in 0 : vector<1x8x24xbf16>, vector<1x8x24xbf16>, vector<1x8x24xbf16>, vector<1x8x24xbf16> -> vector<4x8x24xbf16>
    %184 = vector.extract_strided_slice %183 {offsets = [0, 0, 0], sizes = [4, 8, 8], strides = [1, 1, 1]} : vector<4x8x24xbf16> to vector<4x8x8xbf16>
    %185 = vector.extract_strided_slice %183 {offsets = [0, 0, 8], sizes = [4, 8, 8], strides = [1, 1, 1]} : vector<4x8x24xbf16> to vector<4x8x8xbf16>
    %186 = vector.extract_strided_slice %183 {offsets = [0, 0, 16], sizes = [4, 8, 8], strides = [1, 1, 1]} : vector<4x8x24xbf16> to vector<4x8x8xbf16>
    "tpu.trace_start"() <{level = 10 : i32, message = "hqd,hkd->hqk"}> : () -> ()
    %cst_63 = arith.constant dense<0.000000e+00> : vector<4x8x8xf32>
    %187 = tpu.matmul %184, %185, %cst_63 {dimension_numbers = #tpu.dot_dimension_numbers<[2], [2], [1], [1], [0, 0, 0, 1, 1, 1], [0], [0]>} : vector<4x8x8xbf16>, vector<4x8x8xbf16>, vector<4x8x8xf32> -> vector<4x8x8xf32>
    "tpu.trace_stop"() : () -> ()
    %188 = vector.shape_cast %39 : vector<8x8xf32> to vector<1x8x8xf32>
    %189 = vector.broadcast %188 : vector<1x8x8xf32> to vector<4x8x8xf32>
    %190 = arith.addf %187, %189 : vector<4x8x8xf32>
    %cst_64 = arith.constant dense<0xFF800000> : vector<4x8xf32>
    %191 = vector.multi_reduction <maximumf>, %190, %cst_64 [2] : vector<4x8x8xf32> to vector<4x8xf32>
    %192 = vector.shape_cast %191 : vector<4x8xf32> to vector<4x8x1xf32>
    %193 = vector.broadcast %192 : vector<4x8x1xf32> to vector<4x8x8xf32>
    %194 = arith.subf %190, %193 : vector<4x8x8xf32>
    %195 = math.exp %194 : vector<4x8x8xf32>
    %cst_65 = arith.constant dense<0.000000e+00> : vector<4x8xf32>
    %196 = vector.multi_reduction <add>, %195, %cst_65 [2] : vector<4x8x8xf32> to vector<4x8xf32>
    %197 = vector.shape_cast %196 : vector<4x8xf32> to vector<4x8x1xf32>
    %198 = tpu.reciprocal %197 {approx = true} : vector<4x8x1xf32> -> vector<4x8x1xf32>
    %199 = vector.broadcast %198 : vector<4x8x1xf32> to vector<4x8x8xf32>
    %200 = arith.mulf %195, %199 : vector<4x8x8xf32>
    %201 = arith.truncf %200 : vector<4x8x8xf32> to vector<4x8x8xbf16>
    "tpu.trace_start"() <{level = 10 : i32, message = "hqk,hkd->hqd"}> : () -> ()
    %cst_66 = arith.constant dense<0.000000e+00> : vector<4x8x8xf32>
    %202 = tpu.matmul %201, %186, %cst_66 {dimension_numbers = #tpu.dot_dimension_numbers<[2], [1], [1], [2], [0, 0, 0, 1, 1, 2], [0], [0]>} : vector<4x8x8xbf16>, vector<4x8x8xbf16>, vector<4x8x8xf32> -> vector<4x8x8xf32>
    "tpu.trace_stop"() : () -> ()
    %203 = arith.truncf %202 : vector<4x8x8xf32> to vector<4x8x8xbf16>
    %c1_67 = arith.constant 1 : index
    %c0_68 = arith.constant 0 : index
    %c0_69 = arith.constant 0 : index
    %c0_70 = arith.constant 0 : index
    %204 = vector.load %arg7[%c1_67, %c0_68, %c0_69, %c0_70] : memref<2x4x8x32xbf16, #tpu.memory_space<vmem>>, vector<1x4x8x32xbf16>
    %205 = vector.shape_cast %204 : vector<1x4x8x32xbf16> to vector<4x8x32xbf16>
    "tpu.trace_start"() <{level = 10 : i32, message = "hqd,hdm->hqm"}> : () -> ()
    %cst_71 = arith.constant dense<0.000000e+00> : vector<4x8x32xf32>
    %206 = tpu.matmul %203, %205, %cst_71 {dimension_numbers = #tpu.dot_dimension_numbers<[2], [1], [1], [2], [0, 0, 0, 1, 1, 2], [0], [0]>} : vector<4x8x8xbf16>, vector<4x8x32xbf16>, vector<4x8x32xf32> -> vector<4x8x32xf32>
    "tpu.trace_stop"() : () -> ()
    %cst_72 = arith.constant dense<0.000000e+00> : vector<8x32xf32>
    %207 = vector.multi_reduction <add>, %206, %cst_72 [0] : vector<4x8x32xf32> to vector<8x32xf32>
    %208 = vector.extract_strided_slice %165 {offsets = [1, 0], sizes = [1, 32], strides = [1, 1]} : vector<8x96xf32> to vector<1x32xf32>
    %209 = vector.broadcast %208 : vector<1x32xf32> to vector<8x32xf32>
    %210 = arith.addf %207, %209 : vector<8x32xf32>
    %211 = arith.addf %210, %166 : vector<8x32xf32>
    %212 = vector.extract_strided_slice %165 {offsets = [2, 0], sizes = [1, 32], strides = [1, 1]} : vector<8x96xf32> to vector<1x32xf32>
    %213 = vector.extract_strided_slice %165 {offsets = [3, 0], sizes = [1, 32], strides = [1, 1]} : vector<8x96xf32> to vector<1x32xf32>
    %cst_73 = arith.constant dense<0.000000e+00> : vector<8xf32>
    %214 = vector.multi_reduction <add>, %211, %cst_73 [1] : vector<8x32xf32> to vector<8xf32>
    %215 = vector.shape_cast %214 : vector<8xf32> to vector<8x1xf32>
    %cst_74 = arith.constant 3.200000e+01 : f32
    %216 = vector.broadcast %cst_74 : f32 to vector<8x1xf32>
    %217 = arith.divf %215, %216 : vector<8x1xf32>
    %218 = vector.broadcast %217 : vector<8x1xf32> to vector<8x32xf32>
    %219 = arith.subf %211, %218 : vector<8x32xf32>
    %220 = arith.mulf %219, %219 : vector<8x32xf32>
    %cst_75 = arith.constant dense<0.000000e+00> : vector<8xf32>
    %221 = vector.multi_reduction <add>, %220, %cst_75 [1] : vector<8x32xf32> to vector<8xf32>
    %222 = vector.shape_cast %221 : vector<8xf32> to vector<8x1xf32>
    %cst_76 = arith.constant 3.200000e+01 : f32
    %223 = vector.broadcast %cst_76 : f32 to vector<8x1xf32>
    %224 = arith.divf %222, %223 : vector<8x1xf32>
    %cst_77 = arith.constant 9.99999974E-6 : f32
    %225 = vector.broadcast %cst_77 : f32 to vector<8x1xf32>
    %226 = arith.addf %224, %225 : vector<8x1xf32>
    %227 = math.rsqrt %226 : vector<8x1xf32>
    %228 = vector.broadcast %227 : vector<8x1xf32> to vector<8x32xf32>
    %229 = arith.mulf %219, %228 : vector<8x32xf32>
    %230 = vector.broadcast %212 : vector<1x32xf32> to vector<8x32xf32>
    %231 = arith.mulf %229, %230 : vector<8x32xf32>
    %232 = vector.broadcast %213 : vector<1x32xf32> to vector<8x32xf32>
    %233 = arith.addf %231, %232 : vector<8x32xf32>
    %234 = vector.broadcast %4 : vector<8x1xf32> to vector<8x32xf32>
    %235 = arith.mulf %233, %234 : vector<8x32xf32>
    %236 = arith.truncf %235 : vector<8x32xf32> to vector<8x32xbf16>
    %c1_78 = arith.constant 1 : index
    %c0_79 = arith.constant 0 : index
    %c0_80 = arith.constant 0 : index
    %237 = vector.load %arg8[%c1_78, %c0_79, %c0_80] : memref<2x32x64xbf16, #tpu.memory_space<vmem>>, vector<1x32x64xbf16>
    %238 = vector.shape_cast %237 : vector<1x32x64xbf16> to vector<32x64xbf16>
    %cst_81 = arith.constant dense<0.000000e+00> : vector<8x64xf32>
    %239 = tpu.matmul %236, %238, %cst_81 {dimension_numbers = #tpu.dot_dimension_numbers<[1], [0], [0], [1], [0, 0, 1, 1], [], []>} : vector<8x32xbf16>, vector<32x64xbf16>, vector<8x64xf32> -> vector<8x64xf32>
    %240 = vector.extract_strided_slice %165 {offsets = [4, 0], sizes = [1, 64], strides = [1, 1]} : vector<8x96xf32> to vector<1x64xf32>
    %241 = vector.broadcast %240 : vector<1x64xf32> to vector<8x64xf32>
    %242 = arith.addf %239, %241 : vector<8x64xf32>
    %243 = arith.mulf %242, %242 : vector<8x64xf32>
    %244 = arith.mulf %242, %243 : vector<8x64xf32>
    %cst_82 = arith.constant 4.471500e-02 : f32
    %245 = vector.broadcast %cst_82 : f32 to vector<8x64xf32>
    %246 = arith.mulf %245, %244 : vector<8x64xf32>
    %247 = arith.addf %242, %246 : vector<8x64xf32>
    %cst_83 = arith.constant 0.797884583 : f32
    %248 = vector.broadcast %cst_83 : f32 to vector<8x64xf32>
    %249 = arith.mulf %248, %247 : vector<8x64xf32>
    %250 = math.tanh %249 : vector<8x64xf32>
    %cst_84 = arith.constant 1.000000e+00 : f32
    %251 = vector.broadcast %cst_84 : f32 to vector<8x64xf32>
    %252 = arith.addf %251, %250 : vector<8x64xf32>
    %cst_85 = arith.constant 5.000000e-01 : f32
    %253 = vector.broadcast %cst_85 : f32 to vector<8x64xf32>
    %254 = arith.mulf %253, %252 : vector<8x64xf32>
    %255 = arith.mulf %242, %254 : vector<8x64xf32>
    %256 = arith.truncf %255 : vector<8x64xf32> to vector<8x64xbf16>
    %c1_86 = arith.constant 1 : index
    %c0_87 = arith.constant 0 : index
    %c0_88 = arith.constant 0 : index
    %257 = vector.load %arg9[%c1_86, %c0_87, %c0_88] : memref<2x64x32xbf16, #tpu.memory_space<vmem>>, vector<1x64x32xbf16>
    %258 = vector.shape_cast %257 : vector<1x64x32xbf16> to vector<64x32xbf16>
    %cst_89 = arith.constant dense<0.000000e+00> : vector<8x32xf32>
    %259 = tpu.matmul %256, %258, %cst_89 {dimension_numbers = #tpu.dot_dimension_numbers<[1], [0], [0], [1], [0, 0, 1, 1], [], []>} : vector<8x64xbf16>, vector<64x32xbf16>, vector<8x32xf32> -> vector<8x32xf32>
    %260 = vector.extract_strided_slice %165 {offsets = [5, 0], sizes = [1, 32], strides = [1, 1]} : vector<8x96xf32> to vector<1x32xf32>
    %261 = vector.broadcast %260 : vector<1x32xf32> to vector<8x32xf32>
    %262 = arith.addf %259, %261 : vector<8x32xf32>
    %263 = arith.addf %262, %235 : vector<8x32xf32>
    %264 = vector.extract_strided_slice %165 {offsets = [6, 0], sizes = [1, 32], strides = [1, 1]} : vector<8x96xf32> to vector<1x32xf32>
    %265 = vector.extract_strided_slice %165 {offsets = [7, 0], sizes = [1, 32], strides = [1, 1]} : vector<8x96xf32> to vector<1x32xf32>
    %cst_90 = arith.constant dense<0.000000e+00> : vector<8xf32>
    %266 = vector.multi_reduction <add>, %263, %cst_90 [1] : vector<8x32xf32> to vector<8xf32>
    %267 = vector.shape_cast %266 : vector<8xf32> to vector<8x1xf32>
    %cst_91 = arith.constant 3.200000e+01 : f32
    %268 = vector.broadcast %cst_91 : f32 to vector<8x1xf32>
    %269 = arith.divf %267, %268 : vector<8x1xf32>
    %270 = vector.broadcast %269 : vector<8x1xf32> to vector<8x32xf32>
    %271 = arith.subf %263, %270 : vector<8x32xf32>
    %272 = arith.mulf %271, %271 : vector<8x32xf32>
    %cst_92 = arith.constant dense<0.000000e+00> : vector<8xf32>
    %273 = vector.multi_reduction <add>, %272, %cst_92 [1] : vector<8x32xf32> to vector<8xf32>
    %274 = vector.shape_cast %273 : vector<8xf32> to vector<8x1xf32>
    %cst_93 = arith.constant 3.200000e+01 : f32
    %275 = vector.broadcast %cst_93 : f32 to vector<8x1xf32>
    %276 = arith.divf %274, %275 : vector<8x1xf32>
    %cst_94 = arith.constant 9.99999974E-6 : f32
    %277 = vector.broadcast %cst_94 : f32 to vector<8x1xf32>
    %278 = arith.addf %276, %277 : vector<8x1xf32>
    %279 = math.rsqrt %278 : vector<8x1xf32>
    %280 = vector.broadcast %279 : vector<8x1xf32> to vector<8x32xf32>
    %281 = arith.mulf %271, %280 : vector<8x32xf32>
    %282 = vector.broadcast %264 : vector<1x32xf32> to vector<8x32xf32>
    %283 = arith.mulf %281, %282 : vector<8x32xf32>
    %284 = vector.broadcast %265 : vector<1x32xf32> to vector<8x32xf32>
    %285 = arith.addf %283, %284 : vector<8x32xf32>
    %286 = vector.broadcast %4 : vector<8x1xf32> to vector<8x32xf32>
    %287 = arith.mulf %285, %286 : vector<8x32xf32>
    %c0_95 = arith.constant 0 : index
    %c0_96 = arith.constant 0 : index
    %c0_97 = arith.constant 0 : index
    %288 = vector.load %arg11[%c0_95, %c0_96, %c0_97] : memref<1x8x32xf32, #tpu.memory_space<vmem>>, vector<1x8x32xf32>
    %289 = vector.shape_cast %288 : vector<1x8x32xf32> to vector<8x32xf32>
    %290 = vector.shape_cast %287 : vector<8x32xf32> to vector<1x8x32xf32>
    tpu.vector_store %arg11[%c0_95, %c0_96, %c0_97], %290 {strides = array<i32>} : memref<1x8x32xf32, #tpu.memory_space<vmem>>, vector<1x8x32xf32>,
    return
  }
  func.func @transform_0(%arg0: i32) -> (i32, i32, i32) {
    %c0_i32 = arith.constant 0 : i32
    %c0_i32_0 = arith.constant 0 : i32
    %c0_i32_1 = arith.constant 0 : i32
    return %arg0, %c0_i32, %c0_i32_0 : i32, i32, i32
  }
  func.func @transform_1(%arg0: i32) -> (i32, i32, i32) {
    %c0_i32 = arith.constant 0 : i32
    %c0_i32_0 = arith.constant 0 : i32
    %c0_i32_1 = arith.constant 0 : i32
    return %arg0, %c0_i32, %c0_i32_0 : i32, i32, i32
  }
  func.func @transform_2(%arg0: i32) -> (i32, i32) {
    %c0_i32 = arith.constant 0 : i32
    %c0_i32_0 = arith.constant 0 : i32
    %c0_i32_1 = arith.constant 0 : i32
    return %c0_i32, %c0_i32_0 : i32, i32
  }
  func.func @transform_3(%arg0: i32) -> (i32, i32) {
    %c0_i32 = arith.constant 0 : i32
    %c0_i32_0 = arith.constant 0 : i32
    %c0_i32_1 = arith.constant 0 : i32
    return %c0_i32, %c0_i32_0 : i32, i32
  }
  func.func @transform_4(%arg0: i32) -> (i32, i32) {
    %c0_i32 = arith.constant 0 : i32
    %c0_i32_0 = arith.constant 0 : i32
    %c0_i32_1 = arith.constant 0 : i32
    return %c0_i32, %c0_i32_0 : i32, i32
  }
  func.func @transform_5(%arg0: i32) -> (i32, i32, i32) {
    %c0_i32 = arith.constant 0 : i32
    %c0_i32_0 = arith.constant 0 : i32
    %c0_i32_1 = arith.constant 0 : i32
    %c0_i32_2 = arith.constant 0 : i32
    return %c0_i32, %c0_i32_0, %c0_i32_1 : i32, i32, i32
  }
  func.func @transform_6(%arg0: i32) -> (i32, i32, i32, i32) {
    %c0_i32 = arith.constant 0 : i32
    %c0_i32_0 = arith.constant 0 : i32
    %c0_i32_1 = arith.constant 0 : i32
    %c0_i32_2 = arith.constant 0 : i32
    %c0_i32_3 = arith.constant 0 : i32
    return %c0_i32, %c0_i32_0, %c0_i32_1, %c0_i32_2 : i32, i32, i32, i32
  }
  func.func @transform_7(%arg0: i32) -> (i32, i32, i32) {
    %c0_i32 = arith.constant 0 : i32
    %c0_i32_0 = arith.constant 0 : i32
    %c0_i32_1 = arith.constant 0 : i32
    %c0_i32_2 = arith.constant 0 : i32
    return %c0_i32, %c0_i32_0, %c0_i32_1 : i32, i32, i32
  }
  func.func @transform_8(%arg0: i32) -> (i32, i32, i32) {
    %c0_i32 = arith.constant 0 : i32
    %c0_i32_0 = arith.constant 0 : i32
    %c0_i32_1 = arith.constant 0 : i32
    %c0_i32_2 = arith.constant 0 : i32
    return %c0_i32, %c0_i32_0, %c0_i32_1 : i32, i32, i32
  }
  func.func @transform_9(%arg0: i32) -> (i32, i32, i32) {
    %c0_i32 = arith.constant 0 : i32
    %c0_i32_0 = arith.constant 0 : i32
    %c0_i32_1 = arith.constant 0 : i32
    %c0_i32_2 = arith.constant 0 : i32
    return %c0_i32, %c0_i32_0, %c0_i32_1 : i32, i32, i32
  }
  func.func @transform_10(%arg0: i32) -> (i32, i32, i32) {
    %c0_i32 = arith.constant 0 : i32
    %c0_i32_0 = arith.constant 0 : i32
    %c0_i32_1 = arith.constant 0 : i32
    return %arg0, %c0_i32, %c0_i32_0 : i32, i32, i32
  }
}

</mosaic_0001>

<llo_original>
// kernel: tpu_custom_call.1
$region0: #{tpu_custom_call.1}
  #allocation0 [shape = 'u32[]', space=smem, size = 0x4, offset = 0x4, fixed_abs, tag = 'smem constant byte address 0x4 - core index']
  #allocation1 [shape = 'u32[144,128]{1,0:T(1,128)}', space=vmem, size = 0x12000, scoped, tag = 'internal scratch']
  %s0 = inlined_call_operand.hbm [shape: f32[2,8,32], index: 0, kind: input, shape index: {}]
  %s1 = inlined_call_operand.hbm [shape: f32[2,4,8], index: 1, kind: input, shape index: {}]
  %s2 = inlined_call_operand.hbm [shape: f32[2,32], index: 2, kind: input, shape index: {}]
  %s3 = inlined_call_operand.hbm [shape: bf16[32,32], index: 3, kind: input, shape index: {}]
  %s4 = inlined_call_operand.hbm [shape: f32[2,32], index: 4, kind: input, shape index: {}]
  %s5 = inlined_call_operand.vmem [shape: bf16[2,32,96], index: 5, kind: input, shape index: {}]
  %s6 = inlined_call_operand.vmem [shape: bf16[2,4,8,32], index: 6, kind: input, shape index: {}]
  %s7 = inlined_call_operand.vmem [shape: bf16[2,32,64], index: 7, kind: input, shape index: {}]
  %s8 = inlined_call_operand.vmem [shape: bf16[2,64,32], index: 8, kind: input, shape index: {}]
  %s9 = inlined_call_operand.vmem [shape: f32[2,8,96], index: 9, kind: input, shape index: {}]
  %s10 = inlined_call_operand.hbm [shape: f32[2,8,32], index: 10, kind: output, shape index: {}]
  %s11 = sld [smem:[#allocation0]]
  $region93: #{tpu_custom_call.1} parent=0
    _
  %s13 = ssub.s32 1, %s11
  %s14 = scalar_select 0, %s13, %s11
  $region1: #{tpu_custom_call.1} parent=0
    #allocation2 [shape = 'u8[8192]{0}', space=vmem, size = 0x2000, scoped, tag = 'input window, operand 0']
    #allocation3 [shape = 's32[2]{0}', space=sflag, size = 0x8, scoped, tag = 'scoped memory for tpu_custom_call.1']
    #allocation4 [shape = 's32[2]{0}', space=sflag, size = 0x8, scoped, tag = 'scoped memory for tpu_custom_call.1']
    #allocation5 [shape = 'u8[4096]{0}', space=vmem, size = 0x1000, scoped, tag = 'input window, operand 1']
    #allocation6 [shape = 's32[2]{0}', space=sflag, size = 0x8, scoped, tag = 'scoped memory for tpu_custom_call.1']
    #allocation7 [shape = 'u8[1024]{0}', space=vmem, size = 0x400, scoped, tag = 'input window, operand 2, single buffered']
    #allocation8 [shape = 'u8[8192]{0}', space=vmem, size = 0x2000, scoped, tag = 'input window, operand 3, single buffered']
    #allocation9 [shape = 's32[1]{0}', space=sflag, size = 0x4, scoped, tag = 'scoped memory for tpu_custom_call.1']
    #allocation10 [shape = 'u8[1024]{0}', space=vmem, size = 0x400, scoped, tag = 'input window, operand 4, single buffered']
    #allocation11 [shape = 'u8[8192]{0}', space=vmem, size = 0x2000, scoped, tag = 'output window, operand 0']
    %15 = vsyncpa [#allocation3], 0
    %s16 = scalar_lea.sflag [#allocation3], 1
    %17 = vsyncpa %s16, 0
    %18 = vsyncpa [#allocation6], 0
    %s19 = scalar_lea.sflag [#allocation6], 1
    %20 = vsyncpa %s19, 0
    %21 = vsyncpa [#allocation9], 0
    %22 = vsyncpa [#allocation4], 0
    %s23 = scalar_lea.sflag [#allocation4], 1
    %24 = vsyncpa %s23, 0
    loop: start=0, step=1, limit=4
    $region2: #{tpu_custom_call.1} parent=1 // loop_pre_header
      _
    $region3: #{tpu_custom_call.1} parent=1 // loop_header
      %s26 = sphi 0, %s30
      %p27 = scmp.ge.s32.totalorder %s26, 4
      %s36 = sphi 0, %s38
      %s39 = sphi 0, %s36
      %s40 = sphi 0, %s39
      %s56 = sphi 0, %s40
      %s62 = sphi 0, %s64
      %s65 = sphi 0, %s62
      %s66 = sphi 0, %s65
      %s82 = sphi 0, %s66
      %s86 = sphi 0, %s86
      %s88 = sphi 0, %s86
      %s89 = sphi 0, %s88
      %s103 = sphi 0, %s89
      %s107 = sphi 0, %s107
      %s109 = sphi 0, %s107
      %s110 = sphi 0, %s109
      %s124 = sphi 0, %s110
      %s128 = sphi 0, %s128
      %s130 = sphi 0, %s128
      %s131 = sphi 0, %s130
      %s145 = sphi 0, %s131
      %s149 = sphi 0, %s149
      %s151 = sphi 0, %s149
      %s152 = sphi 0, %s151
      %s166 = sphi 0, %s152
      %s170 = sphi 0, %s170
      %s172 = sphi 0, %s170
      %s173 = sphi 0, %s172
      %s187 = sphi 0, %s173
      %s191 = sphi 0, %s191
      %s193 = sphi 0, %s191
      %s194 = sphi 0, %s193
      %s208 = sphi 0, %s194
      %s212 = sphi 0, %s212
      %s214 = sphi 0, %s212
      %s215 = sphi 0, %s214
      %s229 = sphi 0, %s215
      %s233 = sphi 0, %s233
      %s235 = sphi 0, %s233
      %s236 = sphi 0, %s235
      %s250 = sphi 0, %s236
      %s256 = sphi 0, %s258
      %s259 = sphi 0, %s256
      %s260 = sphi 0, %s259
      %s276 = sphi 0, %s260
    $region4: #{tpu_custom_call.1} parent=1 // loop_header_branch
      %29 = sbr.rel (%p27) target = $region8
    $region5: #{tpu_custom_call.1} parent=1 // loop_body
      %s31 = ssub.s32 %s26, 1
      %s32 = ssub.s32 %s26, 2
      %s33 = sadd.s32 %s26, 1
      %s34 = ssub.s32 %s26, %s33
      %p35 = scmp.eq.s32.totalorder %s34, 0
      %s37 = sadd.s32 %s36, 1
      %s38 = scalar_select %p35, %s36, %s37
      %p41 = pneg %p35
      %p42 = scmp.eq.s32.totalorder %s26, 1
      %p43 = por %p41, %p42
      %p44 = scmp.ne.s32.totalorder %s36, %s39
      %p45 = scmp.eq.s32.totalorder %s26, 0
      %p46 = por %p44, %p45
      %p47 = scmp.ne.s32.totalorder %s36, %s39
      %p48 = scmp.eq.s32.totalorder %s31, 1
      %p49 = por %p47, %p48
      %p50 = scmp.ne.s32.totalorder %s39, %s40
      %p51 = scmp.eq.s32.totalorder %s31, 0
      %p52 = por %p50, %p51
      %p53 = scmp.ne.s32.totalorder %s39, %s40
      %p54 = scmp.eq.s32.totalorder %s32, 1
      %p55 = por %p53, %p54
      %p57 = scmp.ne.s32.totalorder %s40, %s56
      %p58 = scmp.eq.s32.totalorder %s32, 0
      %p59 = por %p57, %p58
      %s60 = ssub.s32 %s26, %s33
      %p61 = scmp.eq.s32.totalorder %s60, 0
      %s63 = sadd.s32 %s62, 1
      %s64 = scalar_select %p61, %s62, %s63
      %p67 = pneg %p61
      %p68 = scmp.eq.s32.totalorder %s26, 1
      %p69 = por %p67, %p68
      %p70 = scmp.ne.s32.totalorder %s62, %s65
      %p71 = scmp.eq.s32.totalorder %s26, 0
      %p72 = por %p70, %p71
      %p73 = scmp.ne.s32.totalorder %s62, %s65
      %p74 = scmp.eq.s32.totalorder %s31, 1
      %p75 = por %p73, %p74
      %p76 = scmp.ne.s32.totalorder %s65, %s66
      %p77 = scmp.eq.s32.totalorder %s31, 0
      %p78 = por %p76, %p77
      %p79 = scmp.ne.s32.totalorder %s65, %s66
      %p80 = scmp.eq.s32.totalorder %s32, 1
      %p81 = por %p79, %p80
      %p83 = scmp.ne.s32.totalorder %s66, %s82
      %p84 = scmp.eq.s32.totalorder %s32, 0
      %p85 = por %p83, %p84
      %s87 = sadd.s32 %s86, 1
      %p90 = scmp.eq.s32.totalorder %s26, 1
      %p91 = scmp.ne.s32.totalorder %s86, %s88
      %p92 = scmp.eq.s32.totalorder %s26, 0
      %p93 = por %p91, %p92
      %p94 = scmp.ne.s32.totalorder %s86, %s88
      %p95 = scmp.eq.s32.totalorder %s31, 1
      %p96 = por %p94, %p95
      %p97 = scmp.ne.s32.totalorder %s88, %s89
      %p98 = scmp.eq.s32.totalorder %s31, 0
      %p99 = por %p97, %p98
      %p100 = scmp.ne.s32.totalorder %s88, %s89
      %p101 = scmp.eq.s32.totalorder %s32, 1
      %p102 = por %p100, %p101
      %p104 = scmp.ne.s32.totalorder %s89, %s103
      %p105 = scmp.eq.s32.totalorder %s32, 0
      %p106 = por %p104, %p105
      %s108 = sadd.s32 %s107, 1
      %p111 = scmp.eq.s32.totalorder %s26, 1
      %p112 = scmp.ne.s32.totalorder %s107, %s109
      %p113 = scmp.eq.s32.totalorder %s26, 0
      %p114 = por %p112, %p113
      %p115 = scmp.ne.s32.totalorder %s107, %s109
      %p116 = scmp.eq.s32.totalorder %s31, 1
      %p117 = por %p115, %p116
      %p118 = scmp.ne.s32.totalorder %s109, %s110
      %p119 = scmp.eq.s32.totalorder %s31, 0
      %p120 = por %p118, %p119
      %p121 = scmp.ne.s32.totalorder %s109, %s110
      %p122 = scmp.eq.s32.totalorder %s32, 1
      %p123 = por %p121, %p122
      %p125 = scmp.ne.s32.totalorder %s110, %s124
      %p126 = scmp.eq.s32.totalorder %s32, 0
      %p127 = por %p125, %p126
      %s129 = sadd.s32 %s128, 1
      %p132 = scmp.eq.s32.totalorder %s26, 1
      %p133 = scmp.ne.s32.totalorder %s128, %s130
      %p134 = scmp.eq.s32.totalorder %s26, 0
      %p135 = por %p133, %p134
      %p136 = scmp.ne.s32.totalorder %s128, %s130
      %p137 = scmp.eq.s32.totalorder %s31, 1
      %p138 = por %p136, %p137
      %p139 = scmp.ne.s32.totalorder %s130, %s131
      %p140 = scmp.eq.s32.totalorder %s31, 0
      %p141 = por %p139, %p140
      %p142 = scmp.ne.s32.totalorder %s130, %s131
      %p143 = scmp.eq.s32.totalorder %s32, 1
      %p144 = por %p142, %p143
      %p146 = scmp.ne.s32.totalorder %s131, %s145
      %p147 = scmp.eq.s32.totalorder %s32, 0
      %p148 = por %p146, %p147
      %s150 = sadd.s32 %s149, 1
      %p153 = scmp.eq.s32.totalorder %s26, 1
      %p154 = scmp.ne.s32.totalorder %s149, %s151
      %p155 = scmp.eq.s32.totalorder %s26, 0
      %p156 = por %p154, %p155
      %p157 = scmp.ne.s32.totalorder %s149, %s151
      %p158 = scmp.eq.s32.totalorder %s31, 1
      %p159 = por %p157, %p158
      %p160 = scmp.ne.s32.totalorder %s151, %s152
      %p161 = scmp.eq.s32.totalorder %s31, 0
      %p162 = por %p160, %p161
      %p163 = scmp.ne.s32.totalorder %s151, %s152
      %p164 = scmp.eq.s32.totalorder %s32, 1
      %p165 = por %p163, %p164
      %p167 = scmp.ne.s32.totalorder %s152, %s166
      %p168 = scmp.eq.s32.totalorder %s32, 0
      %p169 = por %p167, %p168
      %s171 = sadd.s32 %s170, 1
      %p174 = scmp.eq.s32.totalorder %s26, 1
      %p175 = scmp.ne.s32.totalorder %s170, %s172
      %p176 = scmp.eq.s32.totalorder %s26, 0
      %p177 = por %p175, %p176
      %p178 = scmp.ne.s32.totalorder %s170, %s172
      %p179 = scmp.eq.s32.totalorder %s31, 1
      %p180 = por %p178, %p179
      %p181 = scmp.ne.s32.totalorder %s172, %s173
      %p182 = scmp.eq.s32.totalorder %s31, 0
      %p183 = por %p181, %p182
      %p184 = scmp.ne.s32.totalorder %s172, %s173
      %p185 = scmp.eq.s32.totalorder %s32, 1
      %p186 = por %p184, %p185
      %p188 = scmp.ne.s32.totalorder %s173, %s187
      %p189 = scmp.eq.s32.totalorder %s32, 0
      %p190 = por %p188, %p189
      %s192 = sadd.s32 %s191, 1
      %p195 = scmp.eq.s32.totalorder %s26, 1
      %p196 = scmp.ne.s32.totalorder %s191, %s193
      %p197 = scmp.eq.s32.totalorder %s26, 0
      %p198 = por %p196, %p197
      %p199 = scmp.ne.s32.totalorder %s191, %s193
      %p200 = scmp.eq.s32.totalorder %s31, 1
      %p201 = por %p199, %p200
      %p202 = scmp.ne.s32.totalorder %s193, %s194
      %p203 = scmp.eq.s32.totalorder %s31, 0
      %p204 = por %p202, %p203
      %p205 = scmp.ne.s32.totalorder %s193, %s194
      %p206 = scmp.eq.s32.totalorder %s32, 1
      %p207 = por %p205, %p206
      %p209 = scmp.ne.s32.totalorder %s194, %s208
      %p210 = scmp.eq.s32.totalorder %s32, 0
      %p211 = por %p209, %p210
      %s213 = sadd.s32 %s212, 1
      %p216 = scmp.eq.s32.totalorder %s26, 1
      %p217 = scmp.ne.s32.totalorder %s212, %s214
      %p218 = scmp.eq.s32.totalorder %s26, 0
      %p219 = por %p217, %p218
      %p220 = scmp.ne.s32.totalorder %s212, %s214
      %p221 = scmp.eq.s32.totalorder %s31, 1
      %p222 = por %p220, %p221
      %p223 = scmp.ne.s32.totalorder %s214, %s215
      %p224 = scmp.eq.s32.totalorder %s31, 0
      %p225 = por %p223, %p224
      %p226 = scmp.ne.s32.totalorder %s214, %s215
      %p227 = scmp.eq.s32.totalorder %s32, 1
      %p228 = por %p226, %p227
      %p230 = scmp.ne.s32.totalorder %s215, %s229
      %p231 = scmp.eq.s32.totalorder %s32, 0
      %p232 = por %p230, %p231
      %s234 = sadd.s32 %s233, 1
      %p237 = scmp.eq.s32.totalorder %s26, 1
      %p238 = scmp.ne.s32.totalorder %s233, %s235
      %p239 = scmp.eq.s32.totalorder %s26, 0
      %p240 = por %p238, %p239
      %p241 = scmp.ne.s32.totalorder %s233, %s235
      %p242 = scmp.eq.s32.totalorder %s31, 1
      %p243 = por %p241, %p242
      %p244 = scmp.ne.s32.totalorder %s235, %s236
      %p245 = scmp.eq.s32.totalorder %s31, 0
      %p246 = por %p244, %p245
      %p247 = scmp.ne.s32.totalorder %s235, %s236
      %p248 = scmp.eq.s32.totalorder %s32, 1
      %p249 = por %p247, %p248
      %p251 = scmp.ne.s32.totalorder %s236, %s250
      %p252 = scmp.eq.s32.totalorder %s32, 0
      %p253 = por %p251, %p252
      %s254 = ssub.s32 %s26, %s33
      %p255 = scmp.eq.s32.totalorder %s254, 0
      %s257 = sadd.s32 %s256, 1
      %s258 = scalar_select %p255, %s256, %s257
      %p261 = pneg %p255
      %p262 = scmp.eq.s32.totalorder %s26, 1
      %p263 = por %p261, %p262
      %p264 = scmp.ne.s32.totalorder %s256, %s259
      %p265 = scmp.eq.s32.totalorder %s26, 0
      %p266 = por %p264, %p265
      %p267 = scmp.ne.s32.totalorder %s256, %s259
      %p268 = scmp.eq.s32.totalorder %s31, 1
      %p269 = por %p267, %p268
      %p270 = scmp.ne.s32.totalorder %s259, %s260
      %p271 = scmp.eq.s32.totalorder %s31, 0
      %p272 = por %p270, %p271
      %p273 = scmp.ne.s32.totalorder %s259, %s260
      %p274 = scmp.eq.s32.totalorder %s32, 1
      %p275 = por %p273, %p274
      %p277 = scmp.ne.s32.totalorder %s260, %s276
      %p278 = scmp.eq.s32.totalorder %s32, 0
      %p279 = por %p277, %p278
      %p280 = scmp.le.s32.totalorder 1, %s26
      %p281 = scmp.lt.s32.totalorder %s26, 3
      %p282 = pnand %p280, %p281
      %p283 = pneg %p282
      // Predicated region
      $region9: #{tpu_custom_call.1} parent=5 // pred_check
        _
      $region10: #{tpu_custom_call.1} parent=5 // pred_check_branch
        %285 = sbr.rel (%p282) target = $region12
      $region11: #{tpu_custom_call.1} parent=5 // pred_region
        %s286 = ssub.s32 %s26, 1
        // Predicated region
        $region13: #{tpu_custom_call.1} parent=11 // pred_check
          %p287 = pneg %p99
        $region14: #{tpu_custom_call.1} parent=11 // pred_check_branch
          %289 = sbr.rel (%p287) target = $region16
        $region15: #{tpu_custom_call.1} parent=11 // pred_region
          %s291 = ssub.s32 32, 32
          %292 = vsyncadd [#allocation6], %s291
          %s294 = sshll.u32 [#allocation7], 4
          %s295 = int_to_ptr.vmem [resolvable:$true] %s294
          %297 = dma.hbm_to_vmem [thread:$0]  %s2, 32, %s295, [#allocation6]
        $region16: #{tpu_custom_call.1} parent=11 // pred_fallthru
          _
        // Predicated region
        $region17: #{tpu_custom_call.1} parent=11 // pred_check
          %p298 = pneg %p120
        $region18: #{tpu_custom_call.1} parent=11 // pred_check_branch
          %300 = sbr.rel (%p298) target = $region20
        $region19: #{tpu_custom_call.1} parent=11 // pred_region
          %s302 = ssub.s32 256, 256
          %303 = vsyncadd [#allocation9], %s302
          %s304 = sshll.u32 [#allocation8], 4
          %s305 = int_to_ptr.vmem [resolvable:$true] %s304
          %310 = dma.hbm_to_vmem [thread:$0]  %s3, 256, %s305, [#allocation9], 64, 64, 4
        $region20: #{tpu_custom_call.1} parent=11 // pred_fallthru
          _
        // Predicated region
        $region21: #{tpu_custom_call.1} parent=11 // pred_check
          %p311 = pneg %p141
        $region22: #{tpu_custom_call.1} parent=11 // pred_check_branch
          %313 = sbr.rel (%p311) target = $region24
        $region23: #{tpu_custom_call.1} parent=11 // pred_region
          %s315 = ssub.s32 32, 32
          %316 = vsyncadd [#allocation9], %s315
          %s318 = sshll.u32 [#allocation10], 4
          %s319 = int_to_ptr.vmem [resolvable:$true] %s318
          %321 = dma.hbm_to_vmem [thread:$0]  %s4, 32, %s319, [#allocation9]
        $region24: #{tpu_custom_call.1} parent=11 // pred_fallthru
          _
        // Predicated region
        $region25: #{tpu_custom_call.1} parent=11 // pred_check
          %p322 = pneg %p162
        $region26: #{tpu_custom_call.1} parent=11 // pred_check_branch
          %324 = sbr.rel (%p322) target = $region28
        $region27: #{tpu_custom_call.1} parent=11 // pred_region
          _
        $region28: #{tpu_custom_call.1} parent=11 // pred_fallthru
          _
        // Predicated region
        $region29: #{tpu_custom_call.1} parent=11 // pred_check
          %p325 = pneg %p183
        $region30: #{tpu_custom_call.1} parent=11 // pred_check_branch
          %327 = sbr.rel (%p325) target = $region32
        $region31: #{tpu_custom_call.1} parent=11 // pred_region
          _
        $region32: #{tpu_custom_call.1} parent=11 // pred_fallthru
          _
        // Predicated region
        $region33: #{tpu_custom_call.1} parent=11 // pred_check
          %p328 = pneg %p204
        $region34: #{tpu_custom_call.1} parent=11 // pred_check_branch
          %330 = sbr.rel (%p328) target = $region36
        $region35: #{tpu_custom_call.1} parent=11 // pred_region
          _
        $region36: #{tpu_custom_call.1} parent=11 // pred_fallthru
          _
        // Predicated region
        $region37: #{tpu_custom_call.1} parent=11 // pred_check
          %p331 = pneg %p225
        $region38: #{tpu_custom_call.1} parent=11 // pred_check_branch
          %333 = sbr.rel (%p331) target = $region40
        $region39: #{tpu_custom_call.1} parent=11 // pred_region
          _
        $region40: #{tpu_custom_call.1} parent=11 // pred_fallthru
          _
        // Predicated region
        $region41: #{tpu_custom_call.1} parent=11 // pred_check
          %p334 = pneg %p246
        $region42: #{tpu_custom_call.1} parent=11 // pred_check_branch
          %336 = sbr.rel (%p334) target = $region44
        $region43: #{tpu_custom_call.1} parent=11 // pred_region
          _
        $region44: #{tpu_custom_call.1} parent=11 // pred_fallthru
          _
      $region12: #{tpu_custom_call.1} parent=5 // pred_fallthru
        _
      %p337 = scmp.lt.s32.totalorder %s26, 2
      // Predicated region
      $region45: #{tpu_custom_call.1} parent=5 // pred_check
        %p338 = pneg %p337
      $region46: #{tpu_custom_call.1} parent=5 // pred_check_branch
        %340 = sbr.rel (%p338) target = $region48
      $region47: #{tpu_custom_call.1} parent=5 // pred_region
        // Predicated region
        $region49: #{tpu_custom_call.1} parent=47 // pred_check
          %p341 = pneg %p46
        $region50: #{tpu_custom_call.1} parent=47 // pred_check_branch
          %343 = sbr.rel (%p341) target = $region52
        $region51: #{tpu_custom_call.1} parent=47 // pred_region
          %s344 = sand.u32 %s36, 1
          %s345 = scalar_lea.sflag [#allocation3], %s344
          %s346 = sand.u32 %s36, 1
          %s347 = smul.addr %s346, 8
          %s348 = scalar_lea.vmem [#allocation2], %s347
          %s350 = ssub.s32 128, 128
          %351 = vsyncadd %s345, %s350
          %s352 = smul.addr %s26, 128
          %s353 = scalar_lea.hbm %s0, %s352
          %s355 = sshll.u32 %s348, 4
          %s356 = int_to_ptr.vmem [resolvable:$true] %s355
          %358 = dma.hbm_to_vmem [thread:$0]  %s353, 128, %s356, %s345
        $region52: #{tpu_custom_call.1} parent=47 // pred_fallthru
          _
        // Predicated region
        $region53: #{tpu_custom_call.1} parent=47 // pred_check
          %p359 = pneg %p72
        $region54: #{tpu_custom_call.1} parent=47 // pred_check_branch
          %361 = sbr.rel (%p359) target = $region56
        $region55: #{tpu_custom_call.1} parent=47 // pred_region
          %s362 = sand.u32 %s26, 1
          %s363 = scalar_lea.sflag [#allocation6], %s362
          %s364 = sand.u32 %s62, 1
          %s365 = smul.addr %s364, 4
          %s366 = scalar_lea.vmem [#allocation5], %s365
          %s368 = ssub.s32 64, 64
          %369 = vsyncadd %s363, %s368
          %s370 = smul.addr %s26, 64
          %s371 = scalar_lea.hbm %s1, %s370
          %s373 = sshll.u32 %s366, 4
          %s374 = int_to_ptr.vmem [resolvable:$true] %s373
          %376 = dma.hbm_to_vmem [thread:$0]  %s371, 64, %s374, %s363
        $region56: #{tpu_custom_call.1} parent=47 // pred_fallthru
          _
      $region48: #{tpu_custom_call.1} parent=5 // pred_fallthru
        _
      %p377 = scmp.le.s32.totalorder 1, %s26
      %p378 = scmp.lt.s32.totalorder %s26, 3
      %p379 = pnand %p377, %p378
      %p380 = pneg %p379
      // Predicated region
      $region57: #{tpu_custom_call.1} parent=5 // pred_check
        _
      $region58: #{tpu_custom_call.1} parent=5 // pred_check_branch
        %382 = sbr.rel (%p379) target = $region60
      $region59: #{tpu_custom_call.1} parent=5 // pred_region
        %s383 = ssub.s32 %s26, 1
        %s384 = sand.u32 %s39, 1
        %s385 = scalar_lea.sflag [#allocation3], %s384
        %s386 = sand.u32 %s39, 1
        %s387 = smul.addr %s386, 8
        %s388 = scalar_lea.vmem [#allocation2], %s387
        // Predicated region
        $region61: #{tpu_custom_call.1} parent=59 // pred_check
          %p389 = pneg %p52
        $region62: #{tpu_custom_call.1} parent=59 // pred_check_branch
          %391 = sbr.rel (%p389) target = $region64
        $region63: #{tpu_custom_call.1} parent=59 // pred_region
          %392 = dma.done %s385, 128
        $region64: #{tpu_custom_call.1} parent=59 // pred_fallthru
          _
        %s393 = sand.u32 %s31, 1
        %s394 = scalar_lea.sflag [#allocation6], %s393
        %s395 = sand.u32 %s65, 1
        %s396 = smul.addr %s395, 4
        %s397 = scalar_lea.vmem [#allocation5], %s396
        // Predicated region
        $region65: #{tpu_custom_call.1} parent=59 // pred_check
          %p398 = pneg %p78
        $region66: #{tpu_custom_call.1} parent=59 // pred_check_branch
          %400 = sbr.rel (%p398) target = $region68
        $region67: #{tpu_custom_call.1} parent=59 // pred_region
          %401 = dma.done %s394, 64
        $region68: #{tpu_custom_call.1} parent=59 // pred_fallthru
          _
        // Predicated region
        $region69: #{tpu_custom_call.1} parent=59 // pred_check
          %p402 = pneg %p99
        $region70: #{tpu_custom_call.1} parent=59 // pred_check_branch
          %404 = sbr.rel (%p402) target = $region72
        $region71: #{tpu_custom_call.1} parent=59 // pred_region
          %405 = dma.done [#allocation6], 32
        $region72: #{tpu_custom_call.1} parent=59 // pred_fallthru
          _
        // Predicated region
        $region73: #{tpu_custom_call.1} parent=59 // pred_check
          %p406 = pneg %p120
        $region74: #{tpu_custom_call.1} parent=59 // pred_check_branch
          %408 = sbr.rel (%p406) target = $region76
        $region75: #{tpu_custom_call.1} parent=59 // pred_region
          %409 = dma.done [#allocation9], 256
        $region76: #{tpu_custom_call.1} parent=59 // pred_fallthru
          _
        // Predicated region
        $region77: #{tpu_custom_call.1} parent=59 // pred_check
          %p410 = pneg %p141
        $region78: #{tpu_custom_call.1} parent=59 // pred_check_branch
          %412 = sbr.rel (%p410) target = $region80
        $region79: #{tpu_custom_call.1} parent=59 // pred_region
          %413 = dma.done [#allocation9], 32
        $region80: #{tpu_custom_call.1} parent=59 // pred_fallthru
          _
        %s414 = sand.u32 %s39, 1
        %s415 = scalar_lea.sflag [#allocation3], %s414
        %s416 = sand.u32 %s39, 1
        %s417 = smul.addr %s416, 8
        %s418 = scalar_lea.vmem [#allocation2], %s417
        %p419 = pneg %p52
        %p420 = pneg %p49
        %s421 = sand.u32 %s31, 1
        %s422 = scalar_lea.sflag [#allocation6], %s421
        %s423 = sand.u32 %s65, 1
        %s424 = smul.addr %s423, 4
        %s425 = scalar_lea.vmem [#allocation5], %s424
        %p426 = pneg %p78
        %p427 = pneg %p75
        %p428 = pneg %p99
        %p429 = pneg %p96
        %p430 = pneg %p120
        %p431 = pneg %p117
        %p432 = pneg %p141
        %p433 = pneg %p138
        %p434 = pneg %p162
        %p435 = pneg %p159
        %p436 = pneg %p183
        %p437 = pneg %p180
        %p438 = pneg %p204
        %p439 = pneg %p201
        %p440 = pneg %p225
        %p441 = pneg %p222
        %p442 = pneg %p246
        %p443 = pneg %p243
        %p444 = pneg %p272
        %p445 = pneg %p269
        %s446 = sand.u32 %s259, 1
        %s447 = scalar_lea.sflag [#allocation4], %s446
        %s448 = sand.u32 %s259, 1
        %s449 = smul.addr %s448, 8
        %s450 = scalar_lea.vmem [#allocation11], %s449
        %v452 = vld [vmem:[%s397] sm:$0xf]
        %453 = vxpose.xlu0.b32.start [1/16] %v452, 128
        %454 = vxpose.xlu0.b32.cont [2/16] 0.0, 128
        %455 = vxpose.xlu0.b32.cont [3/16] 0.0, 128
        %456 = vxpose.xlu0.b32.cont [4/16] 0.0, 128
        %457 = vxpose.xlu0.b32.cont [5/16] 0.0, 128
        %458 = vxpose.xlu0.b32.cont [6/16] 0.0, 128
        %459 = vxpose.xlu0.b32.cont [7/16] 0.0, 128
        %460 = vxpose.xlu0.b32.cont [8/16] 0.0, 128
        %461 = vxpose.xlu0.b32.cont [9/16] 0.0, 128
        %462 = vxpose.xlu0.b32.cont [10/16] 0.0, 128
        %463 = vxpose.xlu0.b32.cont [11/16] 0.0, 128
        %464 = vxpose.xlu0.b32.cont [12/16] 0.0, 128
        %465 = vxpose.xlu0.b32.cont [13/16] 0.0, 128
        %466 = vxpose.xlu0.b32.cont [14/16] 0.0, 128
        %467 = vxpose.xlu0.b32.cont [15/16] 0.0, 128
        %468 = vxpose.xlu0.b32.end [16/16] 0.0, 128
        %v469 = vpop.trf.xlu0
        %v470 = vpop.trf.xlu0
        %v471 = vpop.trf.xlu0
        %v472 = vpop.trf.xlu0
        %v473 = vpop.trf.xlu0
        %v474 = vpop.trf.xlu0
        %v475 = vpop.trf.xlu0
        %v476 = vpop.trf.xlu0
        %v477 = vpop.trf.xlu0
        %v478 = vpop.trf.xlu0
        %v479 = vpop.trf.xlu0
        %v480 = vpop.trf.xlu0
        %v481 = vpop.trf.xlu0
        %v482 = vpop.trf.xlu0
        %v483 = vpop.trf.xlu0
        %v484 = vpop.trf.xlu0
        %v485 = vld [vmem:[#allocation7] sm:$0x1]
        %487 = vset.pattern.permute.xlu0 0
        %488 = vperm.xlu0 %487, %v469
        %v489 = vpop.permute.xlu0 %488
        %v491 = vlaneseq
        %v492 = vshrl.u32 %v491, 7
        %v493 = vsub.s32 0, %v492
        %v494 = vrot.slane %v485, %v493
        %v495 = vmul.f32 %v489, %v494
        %v496 = vld [vmem:[#allocation7 + $0x1] sm:$0x1]
        %v497 = vlaneseq
        %v498 = vshrl.u32 %v497, 7
        %v499 = vsub.s32 0, %v498
        %v500 = vrot.slane %v496, %v499
        %v501 = vadd.f32 %v495, %v500
        %v502 = vand.u32 2147483647, %v501
        %vm503 = vcmp.le.f32.partialorder %v502, 0.7853982
        %vm504 = vcmp.lt.s32.totalorder %v501, 0
        %v505 = vand.u32 %v501, 2139095040
        %v506 = vshrl.u32 %v505, 23
        %v507 = vsub.s32 %v506, 127
        %v508 = vand.u32 2147483647, %v501
        %v509 = vand.u32 %v508, 8388607
        %v510 = vor.u32 %v509, 8388608
        %v511 = vsub.s32 0, %v510
        %v512 = vadd.s32 %v507, 1
        %vm513 = vcmp.gt.s32.totalorder %v512, 0
        %v514 = vsel %vm513, %v512, 0
        %v515 = vshrl.u32 %v514, 5
        %v516 = vand.u32 %v514, 31
        %v517 = vsub.s32 32, %v516
        %v518 = vshrl.u32 683565275, %v517
        %v519 = vshll.u32 683565275, %v516
        %v520 = vshrl.u32 2475754826, %v517
        %v521 = vor.u32 %v519, %v520
        %v522 = vshll.u32 2475754826, %v516
        %v523 = vshrl.u32 2131351028, %v517
        %v524 = vor.u32 %v522, %v523
        %v525 = vshll.u32 2131351028, %v516
        %v526 = vshrl.u32 2102212464, %v517
        %v527 = vor.u32 %v525, %v526
        %v528 = vshll.u32 2102212464, %v516
        %v529 = vshrl.u32 920167782, %v517
        %v530 = vor.u32 %v528, %v529
        %v531 = vshll.u32 920167782, %v516
        %v532 = vshrl.u32 1326507024, %v517
        %v533 = vor.u32 %v531, %v532
        %vm534 = vcmp.lt.s32.totalorder %v515, 1
        %vm535 = vcmp.lt.s32.totalorder %v515, 2
        %vm536 = vcmp.lt.s32.totalorder %v515, 3
        %vm537 = vcmp.lt.s32.totalorder %v515, 4
        %v538 = vsel %vm534, %v518, %v521
        %v539 = vsel %vm537, %v527, 2102212464
        %v540 = vsel %vm536, %v524, %v539
        %v541 = vsel %vm535, %v538, %v540
        %v542 = vsel %vm534, %v521, %v524
        %v543 = vsel %vm537, %v530, 920167782
        %v544 = vsel %vm536, %v527, %v543
        %v545 = vsel %vm535, %v542, %v544
        %v546 = vsel %vm534, %v524, %v527
        %v547 = vsel %vm537, %v533, 1326507024
        %v548 = vsel %vm536, %v530, %v547
        %v549 = vsel %vm535, %v546, %v548
        %v550 = vshll.u32 %v510, 8
        %v551 = vmul.u32.u64.compose %v550, %v549
        %v552 = vextract.low.u32 %v551
        %v553 = vextract.high.u32 %v551
        %v554 = vmul.u32.u64.compose %v550, %v545
        %v555 = vextract.low.u32 %v554
        %v556 = vextract.high.u32 %v554
        %v557 = vmul.u32 %v550, %v541
        %v558 = vadd.s32 %v553, %v555
        %vm559 = vc.u32 %v553, %v555
        %v560 = vadd.s32 %v556, 1
        %v561 = vsel %vm559, %v560, %v556
        %v562 = vadd.s32 %v557, %v561
        %v563 = vadd.s32 %v562, 536870912
        %v564 = vshrl.u32 %v563, 30
        %v565 = vshll.u32 %v564, 30
        %v566 = vsub.s32 %v562, %v565
        %vm567 = vcmp.lt.s32.totalorder %v566, 0
        %v568 = vsub.s32 0, %v566
        %v569 = vsel %vm567, %v568, %v566
        %v570 = vclz %v569
        %v571 = vsub.s32 %v570, 2
        %vm572 = vcmp.gt.s32.totalorder 0, %v571
        %v573 = vsel %vm572, 0, %v571
        %v574 = vsub.s32 32, %v573
        %v575 = vshll.u32 %v566, %v573
        %v576 = vshrl.u32 %v558, %v574
        %v577 = vor.u32 %v575, %v576
        %v578 = vsub.s32 4294967266, %v573
        %v579 = vadd.s32 %v578, 127
        %v580 = vshll.u32 %v579, 23
        %v581 = vor.u32 4788187, %v580
        %v582 = vand.u32 2147483647, %v581
        %v584 = vcvt.s32.f32 %v577
        %v585 = vmul.f32 %v584, %v582
        %v586 = vxor.u32 %v585, 2147483648
        %v587 = vsel %vm504, %v586, %v585
        %v588 = vsub.s32 4, %v564
        %v589 = vsel %vm504, %v588, %v564
        %v590 = vsel %vm503, %v501, %v587
        %v591 = vsel %vm503, 0, %v589
        %v592 = vcosq.f32.pop %v590
        %v593 = vsinq.f32.pop %v590
        %vm594 = vweird.f32 %v501
        %v595 = vadd.s32 %v591, 3
        %v596 = vand.u32 %v595, 3
        %vm597 = vcmp.lt.s32.totalorder %v596, 2
        %vm598 = vcmp.eq.s32.totalorder %v596, 0
        %v599 = vxor.u32 %v593, 2147483648
        %v600 = vsel %vm598, %v592, %v599
        %vm601 = vcmp.eq.s32.totalorder %v596, 2
        %v602 = vxor.u32 %v592, 2147483648
        %v603 = vsel %vm601, %v602, %v593
        %v604 = vsel %vm597, %v600, %v603
        %v605 = vsel %vm594, nan, %v604
        %606 = vset.pattern.permute.xlu0 2
        %607 = vperm.xlu0 %606, %v469
        %v608 = vpop.permute.xlu0 %607
        %v610 = vmul.f32 %v605, %v608
        %v611 = vld [vmem:[%s388] sm:$0xff]
        %v612 = vpack.c.bf16 %v611, %v611
        %v613 = vld [vmem:[#allocation8] sm:$0xf]
        %v614 = vld [vmem:[#allocation8 + $0x4] sm:$0xf]
        %v615 = vld [vmem:[#allocation8 + $0x8] sm:$0xf]
        %v616 = vld [vmem:[#allocation8 + $0xc] sm:$0xf]
        %v617 = vld [vmem:[#allocation10] sm:$0x1]
        %618 = vset.pattern.permute.xlu0 3
        %619 = vperm.xlu0 %618, %v469
        %v620 = vpop.permute.xlu0 %619
        %v622 = vlaneseq
        %v623 = vshrl.u32 %v622, 7
        %v624 = vsub.s32 0, %v623
        %v625 = vrot.slane %v617, %v624
        %v626 = vmul.f32 %v620, %v625
        %v631 = vunpack.c.l.b16 %v613
        %v632 = vunpack.c.l.b16 %v614
        %v633 = vunpack.c.l.b16 %v615
        %v634 = vunpack.c.l.b16 %v616
        %v635 = vpack.c.b16 %v632, %v631
        %v636 = vpack.c.b16 %v634, %v633
        %vm639 = vcmask 261120
        %v641 = vsel %vm639, %v612, 0
        %643 = vmatprep.subr.bf16.mxu0 0
        %644 = vmatpush1.bf16.msra.mxu0 0
        %645 = vmatprep.subr.bf16.mxu0 0
        %646 = vmatpush1.bf16.msra.mxu0 0
        %647 = vmatprep.subr.bf16.mxu0 0
        %648 = vmatpush1.bf16.msra.mxu0 0
        %649 = vmatprep.subr.bf16.mxu0 0
        %650 = vmatpush1.bf16.msra.mxu0 0
        %651 = vmatprep.subr.bf16.mxu0 0
        %652 = vmatpush1.bf16.msra.mxu0 0
        %653 = vmatprep.subr.bf16.mxu0 0
        %654 = vmatpush1.bf16.msra.mxu0 0
        %655 = vmatprep.subr.bf16.mxu0 0
        %656 = vmatpush1.bf16.msra.mxu0 %v636
        %657 = vmatprep.subr.bf16.mxu0 0
        %658 = vmatpush1.bf16.msra.mxu0 %v635
        %659 = vmatprep.subr.bf16.mxu0 0
        %660 = vmatpush2.bf16.msra.mxu0 0
        %661 = vmatprep.subr.bf16.mxu0 0
        %662 = vmatpush2.bf16.msra.mxu0 0
        %663 = vmatprep.subr.bf16.mxu0 0
        %664 = vmatpush2.bf16.msra.mxu0 0
        %665 = vmatprep.subr.bf16.mxu0 0
        %666 = vmatpush2.bf16.msra.mxu0 0
        %667 = vmatprep.subr.bf16.mxu0 0
        %668 = vmatpush2.bf16.msra.mxu0 0
        %669 = vmatprep.subr.bf16.mxu0 0
        %670 = vmatpush2.bf16.msra.mxu0 0
        %671 = vmatprep.subr.bf16.mxu0 0
        %672 = vmatpush2.bf16.msra.mxu0 0
        %673 = vmatprep.subr.bf16.mxu0 0
        %674 = vmatpush2.bf16.msra.mxu0 0
        %675 = vmatprep.mubr.bf16.mxu0 0
        %676 = vmatmul.mubr.bf16.gmra.mxu0 %v641
        %v677 = vpop.f32.mrf.mxu0
        %v678 = vadd.f32 %v626, %v677
        %v679 = vpop.f32.mrf.mxu0
        %v680 = vpop.f32.mrf.mxu0
        %v681 = vpop.f32.mrf.mxu0
        %682 = vdwg.mxu0
        %v683 = vld [vmem:[#allocation10 + $0x1] sm:$0x1]
        %v684 = vlaneseq
        %v685 = vshrl.u32 %v684, 7
        %v686 = vsub.s32 0, %v685
        %v687 = vrot.slane %v683, %v686
        %v688 = vadd.f32 %v678, %v687
        %v689 = vlaneseq
        %v690 = vshrl.u32 %v689, 7
        %v691 = vlaneseq
        %v692 = vand.u32 %v691, 127
        %vm693 = vcmp.gt.s32.totalorder %v692, %v690
        %vm694 = vcmp.gt.f32.partialorder %v452, 0.5
        %v695 = vsel %vm694, 1, 0
        %v696 = vlaneseq
        %v697 = vshrl.u32 %v696, 7
        %v698 = vsub.s32 1, %v697
        %v699 = vrot.slane %v695, %v698
        %vm700 = vcmp.eq.s32.totalorder %v699, 1
        %vm701 = vmor %vm693, %vm700
        %v702 = vsel %vm701, -1e+09, 0.0
        %v703 = vld [vmem:[%s9] sm:$0xff]
        %v704 = vadd.f32 %v688, %v610
        %v705 = vpack.c.bf16 %v704, %v704
        %v706 = vld [vmem:[%s5] sm:$0xf]
        %v707 = vld [vmem:[%s5 + $0x4] sm:$0xf]
        %v708 = vld [vmem:[%s5 + $0x8] sm:$0xf]
        %v709 = vld [vmem:[%s5 + $0xc] sm:$0xf]
        %v710 = vlaneseq
        %v711 = vshrl.u32 %v710, 7
        %v712 = vsub.s32 0, %v711
        %v713 = vrot.slane %v703, %v712
        %v718 = vunpack.c.l.b16 %v706
        %v719 = vunpack.c.l.b16 %v707
        %v720 = vunpack.c.l.b16 %v708
        %v721 = vunpack.c.l.b16 %v709
        %v722 = vpack.c.b16 %v719, %v718
        %v723 = vpack.c.b16 %v721, %v720
        %v727 = vsel %vm639, %v705, 0
        %729 = vmatprep.subr.bf16.mxu0 0
        %730 = vmatpush1.bf16.msra.mxu0 0
        %731 = vmatprep.subr.bf16.mxu0 0
        %732 = vmatpush1.bf16.msra.mxu0 0
        %733 = vmatprep.subr.bf16.mxu0 0
        %734 = vmatpush1.bf16.msra.mxu0 0
        %735 = vmatprep.subr.bf16.mxu0 0
        %736 = vmatpush1.bf16.msra.mxu0 0
        %737 = vmatprep.subr.bf16.mxu0 0
        %738 = vmatpush1.bf16.msra.mxu0 0
        %739 = vmatprep.subr.bf16.mxu0 0
        %740 = vmatpush1.bf16.msra.mxu0 0
        %741 = vmatprep.subr.bf16.mxu0 0
        %742 = vmatpush1.bf16.msra.mxu0 %v723
        %743 = vmatprep.subr.bf16.mxu0 0
        %744 = vmatpush1.bf16.msra.mxu0 %v722
        %745 = vmatprep.subr.bf16.mxu0 0
        %746 = vmatpush2.bf16.msra.mxu0 0
        %747 = vmatprep.subr.bf16.mxu0 0
        %748 = vmatpush2.bf16.msra.mxu0 0
        %749 = vmatprep.subr.bf16.mxu0 0
        %750 = vmatpush2.bf16.msra.mxu0 0
        %751 = vmatprep.subr.bf16.mxu0 0
        %752 = vmatpush2.bf16.msra.mxu0 0
        %753 = vmatprep.subr.bf16.mxu0 0
        %754 = vmatpush2.bf16.msra.mxu0 0
        %755 = vmatprep.subr.bf16.mxu0 0
        %756 = vmatpush2.bf16.msra.mxu0 0
        %757 = vmatprep.subr.bf16.mxu0 0
        %758 = vmatpush2.bf16.msra.mxu0 0
        %759 = vmatprep.subr.bf16.mxu0 0
        %760 = vmatpush2.bf16.msra.mxu0 0
        %761 = vmatprep.mubr.bf16.mxu0 0
        %762 = vmatmul.mubr.bf16.gmra.mxu0 %v727
        %v763 = vpop.f32.mrf.mxu0
        %v764 = vadd.f32 %v713, %v763
        %v765 = vpop.f32.mrf.mxu0
        %v766 = vpop.f32.mrf.mxu0
        %v767 = vpop.f32.mrf.mxu0
        %768 = vdwg.mxu0
        %v769 = vpack.c.bf16 %v764, %v764
        %771 = vrot.lane.b32.xlu0 %v769, 104
        %v772 = vpop.permute.xlu0 %771
        %773 = vrot.lane.b32.xlu0 %v769, 80
        %v774 = vpop.permute.xlu0 %773
        %775 = vrot.lane.b32.xlu0 %v769, 56
        %v776 = vpop.permute.xlu0 %775
        %777 = vrot.lane.b32.xlu0 %v769, 120
        %v778 = vpop.permute.xlu0 %777
        %vm779 = vcmask 64512
        %v781 = vsel %vm779, %v769, 0
        %v784 = vsel %vm779, %v778, 0
        %786 = vmatprep.subr.bf16.mxu0 0
        %787 = vmatpush1.bf16.xpose.msra.mxu0 0
        %788 = vmatprep.subr.bf16.mxu0 0
        %789 = vmatpush1.bf16.xpose.msra.mxu0 0
        %790 = vmatprep.subr.bf16.mxu0 0
        %791 = vmatpush1.bf16.xpose.msra.mxu0 0
        %792 = vmatprep.subr.bf16.mxu0 0
        %793 = vmatpush1.bf16.xpose.msra.mxu0 0
        %794 = vmatprep.subr.bf16.mxu0 0
        %795 = vmatpush1.bf16.xpose.msra.mxu0 0
        %796 = vmatprep.subr.bf16.mxu0 0
        %797 = vmatpush1.bf16.xpose.msra.mxu0 0
        %798 = vmatprep.subr.bf16.mxu0 0
        %799 = vmatpush1.bf16.xpose.msra.mxu0 0
        %800 = vmatprep.subr.bf16.mxu0 0
        %801 = vmatpush1.bf16.xpose.msra.mxu0 %v784
        %802 = vmatprep.subr.bf16.mxu0 0
        %803 = vmatpush2.bf16.xpose.msra.mxu0 0
        %804 = vmatprep.subr.bf16.mxu0 0
        %805 = vmatpush2.bf16.xpose.msra.mxu0 0
        %806 = vmatprep.subr.bf16.mxu0 0
        %807 = vmatpush2.bf16.xpose.msra.mxu0 0
        %808 = vmatprep.subr.bf16.mxu0 0
        %809 = vmatpush2.bf16.xpose.msra.mxu0 0
        %810 = vmatprep.subr.bf16.mxu0 0
        %811 = vmatpush2.bf16.xpose.msra.mxu0 0
        %812 = vmatprep.subr.bf16.mxu0 0
        %813 = vmatpush2.bf16.xpose.msra.mxu0 0
        %814 = vmatprep.subr.bf16.mxu0 0
        %815 = vmatpush2.bf16.xpose.msra.mxu0 0
        %816 = vmatprep.subr.bf16.mxu0 0
        %817 = vmatpush2.bf16.xpose.msra.mxu0 0
        %818 = vmatprep.mubr.bf16.mxu0 0
        %819 = vmatmul.mubr.bf16.gmra.mxu0 %v781
        %v820 = vpop.f32.mrf.mxu0
        %v821 = vadd.f32 %v702, %v820
        %v822 = vpop.f32.mrf.mxu0
        %v823 = vpop.f32.mrf.mxu0
        %v824 = vpop.f32.mrf.mxu0
        %825 = vdwg.mxu0
        %826 = vrot.lane.b32.xlu0 %v772, 120
        %v827 = vpop.permute.xlu0 %826
        %v829 = vsel %vm779, %v772, 0
        %v832 = vsel %vm779, %v827, 0
        %834 = vmatprep.subr.bf16.mxu0 0
        %835 = vmatpush1.bf16.xpose.msra.mxu0 0
        %836 = vmatprep.subr.bf16.mxu0 0
        %837 = vmatpush1.bf16.xpose.msra.mxu0 0
        %838 = vmatprep.subr.bf16.mxu0 0
        %839 = vmatpush1.bf16.xpose.msra.mxu0 0
        %840 = vmatprep.subr.bf16.mxu0 0
        %841 = vmatpush1.bf16.xpose.msra.mxu0 0
        %842 = vmatprep.subr.bf16.mxu0 0
        %843 = vmatpush1.bf16.xpose.msra.mxu0 0
        %844 = vmatprep.subr.bf16.mxu0 0
        %845 = vmatpush1.bf16.xpose.msra.mxu0 0
        %846 = vmatprep.subr.bf16.mxu0 0
        %847 = vmatpush1.bf16.xpose.msra.mxu0 0
        %848 = vmatprep.subr.bf16.mxu0 0
        %849 = vmatpush1.bf16.xpose.msra.mxu0 %v832
        %850 = vmatprep.subr.bf16.mxu0 0
        %851 = vmatpush2.bf16.xpose.msra.mxu0 0
        %852 = vmatprep.subr.bf16.mxu0 0
        %853 = vmatpush2.bf16.xpose.msra.mxu0 0
        %854 = vmatprep.subr.bf16.mxu0 0
        %855 = vmatpush2.bf16.xpose.msra.mxu0 0
        %856 = vmatprep.subr.bf16.mxu0 0
        %857 = vmatpush2.bf16.xpose.msra.mxu0 0
        %858 = vmatprep.subr.bf16.mxu0 0
        %859 = vmatpush2.bf16.xpose.msra.mxu0 0
        %860 = vmatprep.subr.bf16.mxu0 0
        %861 = vmatpush2.bf16.xpose.msra.mxu0 0
        %862 = vmatprep.subr.bf16.mxu0 0
        %863 = vmatpush2.bf16.xpose.msra.mxu0 0
        %864 = vmatprep.subr.bf16.mxu0 0
        %865 = vmatpush2.bf16.xpose.msra.mxu0 0
        %866 = vmatprep.mubr.bf16.mxu0 0
        %867 = vmatmul.mubr.bf16.gmra.mxu0 %v829
        %v868 = vpop.f32.mrf.mxu0
        %v869 = vadd.f32 %v702, %v868
        %v870 = vpop.f32.mrf.mxu0
        %v871 = vpop.f32.mrf.mxu0
        %v872 = vpop.f32.mrf.mxu0
        %873 = vdwg.mxu0
        %874 = vrot.lane.b32.xlu0 %v774, 120
        %v875 = vpop.permute.xlu0 %874
        %v877 = vsel %vm779, %v774, 0
        %v880 = vsel %vm779, %v875, 0
        %882 = vmatprep.subr.bf16.mxu0 0
        %883 = vmatpush1.bf16.xpose.msra.mxu0 0
        %884 = vmatprep.subr.bf16.mxu0 0
        %885 = vmatpush1.bf16.xpose.msra.mxu0 0
        %886 = vmatprep.subr.bf16.mxu0 0
        %887 = vmatpush1.bf16.xpose.msra.mxu0 0
        %888 = vmatprep.subr.bf16.mxu0 0
        %889 = vmatpush1.bf16.xpose.msra.mxu0 0
        %890 = vmatprep.subr.bf16.mxu0 0
        %891 = vmatpush1.bf16.xpose.msra.mxu0 0
        %892 = vmatprep.subr.bf16.mxu0 0
        %893 = vmatpush1.bf16.xpose.msra.mxu0 0
        %894 = vmatprep.subr.bf16.mxu0 0
        %895 = vmatpush1.bf16.xpose.msra.mxu0 0
        %896 = vmatprep.subr.bf16.mxu0 0
        %897 = vmatpush1.bf16.xpose.msra.mxu0 %v880
        %898 = vmatprep.subr.bf16.mxu0 0
        %899 = vmatpush2.bf16.xpose.msra.mxu0 0
        %900 = vmatprep.subr.bf16.mxu0 0
        %901 = vmatpush2.bf16.xpose.msra.mxu0 0
        %902 = vmatprep.subr.bf16.mxu0 0
        %903 = vmatpush2.bf16.xpose.msra.mxu0 0
        %904 = vmatprep.subr.bf16.mxu0 0
        %905 = vmatpush2.bf16.xpose.msra.mxu0 0
        %906 = vmatprep.subr.bf16.mxu0 0
        %907 = vmatpush2.bf16.xpose.msra.mxu0 0
        %908 = vmatprep.subr.bf16.mxu0 0
        %909 = vmatpush2.bf16.xpose.msra.mxu0 0
        %910 = vmatprep.subr.bf16.mxu0 0
        %911 = vmatpush2.bf16.xpose.msra.mxu0 0
        %912 = vmatprep.subr.bf16.mxu0 0
        %913 = vmatpush2.bf16.xpose.msra.mxu0 0
        %914 = vmatprep.mubr.bf16.mxu0 0
        %915 = vmatmul.mubr.bf16.gmra.mxu0 %v877
        %v916 = vpop.f32.mrf.mxu0
        %v917 = vadd.f32 %v702, %v916
        %v918 = vpop.f32.mrf.mxu0
        %v919 = vpop.f32.mrf.mxu0
        %v920 = vpop.f32.mrf.mxu0
        %921 = vdwg.mxu0
        %922 = vrot.lane.b32.xlu0 %v776, 120
        %v923 = vpop.permute.xlu0 %922
        %v925 = vsel %vm779, %v776, 0
        %v928 = vsel %vm779, %v923, 0
        %930 = vmatprep.subr.bf16.mxu0 0
        %931 = vmatpush1.bf16.xpose.msra.mxu0 0
        %932 = vmatprep.subr.bf16.mxu0 0
        %933 = vmatpush1.bf16.xpose.msra.mxu0 0
        %934 = vmatprep.subr.bf16.mxu0 0
        %935 = vmatpush1.bf16.xpose.msra.mxu0 0
        %936 = vmatprep.subr.bf16.mxu0 0
        %937 = vmatpush1.bf16.xpose.msra.mxu0 0
        %938 = vmatprep.subr.bf16.mxu0 0
        %939 = vmatpush1.bf16.xpose.msra.mxu0 0
        %940 = vmatprep.subr.bf16.mxu0 0
        %941 = vmatpush1.bf16.xpose.msra.mxu0 0
        %942 = vmatprep.subr.bf16.mxu0 0
        %943 = vmatpush1.bf16.xpose.msra.mxu0 0
        %944 = vmatprep.subr.bf16.mxu0 0
        %945 = vmatpush1.bf16.xpose.msra.mxu0 %v928
        %946 = vmatprep.subr.bf16.mxu0 0
        %947 = vmatpush2.bf16.xpose.msra.mxu0 0
        %948 = vmatprep.subr.bf16.mxu0 0
        %949 = vmatpush2.bf16.xpose.msra.mxu0 0
        %950 = vmatprep.subr.bf16.mxu0 0
        %951 = vmatpush2.bf16.xpose.msra.mxu0 0
        %952 = vmatprep.subr.bf16.mxu0 0
        %953 = vmatpush2.bf16.xpose.msra.mxu0 0
        %954 = vmatprep.subr.bf16.mxu0 0
        %955 = vmatpush2.bf16.xpose.msra.mxu0 0
        %956 = vmatprep.subr.bf16.mxu0 0
        %957 = vmatpush2.bf16.xpose.msra.mxu0 0
        %958 = vmatprep.subr.bf16.mxu0 0
        %959 = vmatpush2.bf16.xpose.msra.mxu0 0
        %960 = vmatprep.subr.bf16.mxu0 0
        %961 = vmatpush2.bf16.xpose.msra.mxu0 0
        %962 = vmatprep.mubr.bf16.mxu0 0
        %963 = vmatmul.mubr.bf16.gmra.mxu0 %v925
        %v964 = vpop.f32.mrf.mxu0
        %v965 = vadd.f32 %v702, %v964
        %v966 = vpop.f32.mrf.mxu0
        %v967 = vpop.f32.mrf.mxu0
        %v968 = vpop.f32.mrf.mxu0
        %969 = vdwg.mxu0
        %v970 = vsel %vm779, %v821, -inf
        %971 = vmax.xlane.f32.xlu0 %v970
        %v972 = vpop.xlane.xlu0 %971
        %v973 = vsel %vm779, %v869, -inf
        %974 = vmax.xlane.f32.xlu0 %v973
        %v975 = vpop.xlane.xlu0 %974
        %v976 = vsel %vm779, %v917, -inf
        %977 = vmax.xlane.f32.xlu0 %v976
        %v978 = vpop.xlane.xlu0 %977
        %v979 = vsel %vm779, %v965, -inf
        %980 = vmax.xlane.f32.xlu0 %v979
        %v981 = vpop.xlane.xlu0 %980
        %v982 = vsub.f32 %v821, %v972
        %v983 = vsub.f32 %v869, %v975
        %v984 = vsub.f32 %v917, %v978
        %v985 = vsub.f32 %v965, %v981
        %v986 = vmul.f32 %v982, 1.442695
        %v987 = vpow.pop %v986
        %v988 = vmul.f32 %v983, 1.442695
        %v989 = vpow.pop %v988
        %v990 = vmul.f32 %v984, 1.442695
        %v991 = vpow.pop %v990
        %v992 = vmul.f32 %v985, 1.442695
        %v993 = vpow.pop %v992
        %v994 = vsel %vm779, %v987, 0.0
        %995 = vadd.xlane.f32.xlu0 %v994
        %v996 = vpop.xlane.xlu0 %995
        %v997 = vsel %vm779, %v989, 0.0
        %998 = vadd.xlane.f32.xlu0 %v997
        %v999 = vpop.xlane.xlu0 %998
        %v1000 = vsel %vm779, %v991, 0.0
        %1001 = vadd.xlane.f32.xlu0 %v1000
        %v1002 = vpop.xlane.xlu0 %1001
        %v1003 = vsel %vm779, %v993, 0.0
        %1004 = vadd.xlane.f32.xlu0 %v1003
        %v1005 = vpop.xlane.xlu0 %1004
        %v1006 = vrcp.pop %v996
        %v1007 = vrcp.pop %v999
        %v1008 = vrcp.pop %v1002
        %v1009 = vrcp.pop %v1005
        %v1010 = vmul.f32 %v987, %v1006
        %v1011 = vmul.f32 %v989, %v1007
        %v1012 = vmul.f32 %v991, %v1008
        %v1013 = vmul.f32 %v993, %v1009
        %v1014 = vpack.c.bf16 %v1010, %v1010
        %v1015 = vpack.c.bf16 %v1011, %v1011
        %v1016 = vpack.c.bf16 %v1012, %v1012
        %v1017 = vpack.c.bf16 %v1013, %v1013
        %1018 = vrot.lane.b32.xlu0 %v769, 112
        %v1019 = vpop.permute.xlu0 %1018
        %v1021 = vsel %vm779, %v1014, 0
        %vm1023 = vcmask 1043456
        %v1025 = vsel %vm1023, %v1019, 0
        %1027 = vmatprep.subr.bf16.mxu0 0
        %1028 = vmatpush1.bf16.msra.mxu0 0
        %1029 = vmatprep.subr.bf16.mxu0 0
        %1030 = vmatpush1.bf16.msra.mxu0 0
        %1031 = vmatprep.subr.bf16.mxu0 0
        %1032 = vmatpush1.bf16.msra.mxu0 0
        %1033 = vmatprep.subr.bf16.mxu0 0
        %1034 = vmatpush1.bf16.msra.mxu0 0
        %1035 = vmatprep.subr.bf16.mxu0 0
        %1036 = vmatpush1.bf16.msra.mxu0 0
        %1037 = vmatprep.subr.bf16.mxu0 0
        %1038 = vmatpush1.bf16.msra.mxu0 0
        %1039 = vmatprep.subr.bf16.mxu0 0
        %1040 = vmatpush1.bf16.msra.mxu0 0
        %1041 = vmatprep.subr.bf16.mxu0 0
        %1042 = vmatpush1.bf16.msra.mxu0 %v1025
        %1043 = vmatprep.subr.bf16.mxu0 0
        %1044 = vmatpush2.bf16.msra.mxu0 0
        %1045 = vmatprep.subr.bf16.mxu0 0
        %1046 = vmatpush2.bf16.msra.mxu0 0
        %1047 = vmatprep.subr.bf16.mxu0 0
        %1048 = vmatpush2.bf16.msra.mxu0 0
        %1049 = vmatprep.subr.bf16.mxu0 0
        %1050 = vmatpush2.bf16.msra.mxu0 0
        %1051 = vmatprep.subr.bf16.mxu0 0
        %1052 = vmatpush2.bf16.msra.mxu0 0
        %1053 = vmatprep.subr.bf16.mxu0 0
        %1054 = vmatpush2.bf16.msra.mxu0 0
        %1055 = vmatprep.subr.bf16.mxu0 0
        %1056 = vmatpush2.bf16.msra.mxu0 0
        %1057 = vmatprep.subr.bf16.mxu0 0
        %1058 = vmatpush2.bf16.msra.mxu0 0
        %1059 = vmatprep.mubr.bf16.mxu0 0
        %1060 = vmatmul.mubr.bf16.gmra.mxu0 %v1021
        %v1061 = vpop.f32.mrf.mxu0
        %v1062 = vadd.f32 0.0, %v1061
        %v1063 = vpop.f32.mrf.mxu0
        %v1064 = vpop.f32.mrf.mxu0
        %v1065 = vpop.f32.mrf.mxu0
        %1066 = vdwg.mxu0
        %1067 = vrot.lane.b32.xlu0 %v772, 112
        %v1068 = vpop.permute.xlu0 %1067
        %v1070 = vsel %vm779, %v1015, 0
        %v1073 = vsel %vm1023, %v1068, 0
        %1075 = vmatprep.subr.bf16.mxu0 0
        %1076 = vmatpush1.bf16.msra.mxu0 0
        %1077 = vmatprep.subr.bf16.mxu0 0
        %1078 = vmatpush1.bf16.msra.mxu0 0
        %1079 = vmatprep.subr.bf16.mxu0 0
        %1080 = vmatpush1.bf16.msra.mxu0 0
        %1081 = vmatprep.subr.bf16.mxu0 0
        %1082 = vmatpush1.bf16.msra.mxu0 0
        %1083 = vmatprep.subr.bf16.mxu0 0
        %1084 = vmatpush1.bf16.msra.mxu0 0
        %1085 = vmatprep.subr.bf16.mxu0 0
        %1086 = vmatpush1.bf16.msra.mxu0 0
        %1087 = vmatprep.subr.bf16.mxu0 0
        %1088 = vmatpush1.bf16.msra.mxu0 0
        %1089 = vmatprep.subr.bf16.mxu0 0
        %1090 = vmatpush1.bf16.msra.mxu0 %v1073
        %1091 = vmatprep.subr.bf16.mxu0 0
        %1092 = vmatpush2.bf16.msra.mxu0 0
        %1093 = vmatprep.subr.bf16.mxu0 0
        %1094 = vmatpush2.bf16.msra.mxu0 0
        %1095 = vmatprep.subr.bf16.mxu0 0
        %1096 = vmatpush2.bf16.msra.mxu0 0
        %1097 = vmatprep.subr.bf16.mxu0 0
        %1098 = vmatpush2.bf16.msra.mxu0 0
        %1099 = vmatprep.subr.bf16.mxu0 0
        %1100 = vmatpush2.bf16.msra.mxu0 0
        %1101 = vmatprep.subr.bf16.mxu0 0
        %1102 = vmatpush2.bf16.msra.mxu0 0
        %1103 = vmatprep.subr.bf16.mxu0 0
        %1104 = vmatpush2.bf16.msra.mxu0 0
        %1105 = vmatprep.subr.bf16.mxu0 0
        %1106 = vmatpush2.bf16.msra.mxu0 0
        %1107 = vmatprep.mubr.bf16.mxu0 0
        %1108 = vmatmul.mubr.bf16.gmra.mxu0 %v1070
        %v1109 = vpop.f32.mrf.mxu0
        %v1110 = vadd.f32 0.0, %v1109
        %v1111 = vpop.f32.mrf.mxu0
        %v1112 = vpop.f32.mrf.mxu0
        %v1113 = vpop.f32.mrf.mxu0
        %1114 = vdwg.mxu0
        %1115 = vrot.lane.b32.xlu0 %v774, 112
        %v1116 = vpop.permute.xlu0 %1115
        %v1118 = vsel %vm779, %v1016, 0
        %v1121 = vsel %vm1023, %v1116, 0
        %1123 = vmatprep.subr.bf16.mxu0 0
        %1124 = vmatpush1.bf16.msra.mxu0 0
        %1125 = vmatprep.subr.bf16.mxu0 0
        %1126 = vmatpush1.bf16.msra.mxu0 0
        %1127 = vmatprep.subr.bf16.mxu0 0
        %1128 = vmatpush1.bf16.msra.mxu0 0
        %1129 = vmatprep.subr.bf16.mxu0 0
        %1130 = vmatpush1.bf16.msra.mxu0 0
        %1131 = vmatprep.subr.bf16.mxu0 0
        %1132 = vmatpush1.bf16.msra.mxu0 0
        %1133 = vmatprep.subr.bf16.mxu0 0
        %1134 = vmatpush1.bf16.msra.mxu0 0
        %1135 = vmatprep.subr.bf16.mxu0 0
        %1136 = vmatpush1.bf16.msra.mxu0 0
        %1137 = vmatprep.subr.bf16.mxu0 0
        %1138 = vmatpush1.bf16.msra.mxu0 %v1121
        %1139 = vmatprep.subr.bf16.mxu0 0
        %1140 = vmatpush2.bf16.msra.mxu0 0
        %1141 = vmatprep.subr.bf16.mxu0 0
        %1142 = vmatpush2.bf16.msra.mxu0 0
        %1143 = vmatprep.subr.bf16.mxu0 0
        %1144 = vmatpush2.bf16.msra.mxu0 0
        %1145 = vmatprep.subr.bf16.mxu0 0
        %1146 = vmatpush2.bf16.msra.mxu0 0
        %1147 = vmatprep.subr.bf16.mxu0 0
        %1148 = vmatpush2.bf16.msra.mxu0 0
        %1149 = vmatprep.subr.bf16.mxu0 0
        %1150 = vmatpush2.bf16.msra.mxu0 0
        %1151 = vmatprep.subr.bf16.mxu0 0
        %1152 = vmatpush2.bf16.msra.mxu0 0
        %1153 = vmatprep.subr.bf16.mxu0 0
        %1154 = vmatpush2.bf16.msra.mxu0 0
        %1155 = vmatprep.mubr.bf16.mxu0 0
        %1156 = vmatmul.mubr.bf16.gmra.mxu0 %v1118
        %v1157 = vpop.f32.mrf.mxu0
        %v1158 = vadd.f32 0.0, %v1157
        %v1159 = vpop.f32.mrf.mxu0
        %v1160 = vpop.f32.mrf.mxu0
        %v1161 = vpop.f32.mrf.mxu0
        %1162 = vdwg.mxu0
        %1163 = vrot.lane.b32.xlu0 %v776, 112
        %v1164 = vpop.permute.xlu0 %1163
        %v1166 = vsel %vm779, %v1017, 0
        %v1169 = vsel %vm1023, %v1164, 0
        %1171 = vmatprep.subr.bf16.mxu0 0
        %1172 = vmatpush1.bf16.msra.mxu0 0
        %1173 = vmatprep.subr.bf16.mxu0 0
        %1174 = vmatpush1.bf16.msra.mxu0 0
        %1175 = vmatprep.subr.bf16.mxu0 0
        %1176 = vmatpush1.bf16.msra.mxu0 0
        %1177 = vmatprep.subr.bf16.mxu0 0
        %1178 = vmatpush1.bf16.msra.mxu0 0
        %1179 = vmatprep.subr.bf16.mxu0 0
        %1180 = vmatpush1.bf16.msra.mxu0 0
        %1181 = vmatprep.subr.bf16.mxu0 0
        %1182 = vmatpush1.bf16.msra.mxu0 0
        %1183 = vmatprep.subr.bf16.mxu0 0
        %1184 = vmatpush1.bf16.msra.mxu0 0
        %1185 = vmatprep.subr.bf16.mxu0 0
        %1186 = vmatpush1.bf16.msra.mxu0 %v1169
        %1187 = vmatprep.subr.bf16.mxu0 0
        %1188 = vmatpush2.bf16.msra.mxu0 0
        %1189 = vmatprep.subr.bf16.mxu0 0
        %1190 = vmatpush2.bf16.msra.mxu0 0
        %1191 = vmatprep.subr.bf16.mxu0 0
        %1192 = vmatpush2.bf16.msra.mxu0 0
        %1193 = vmatprep.subr.bf16.mxu0 0
        %1194 = vmatpush2.bf16.msra.mxu0 0
        %1195 = vmatprep.subr.bf16.mxu0 0
        %1196 = vmatpush2.bf16.msra.mxu0 0
        %1197 = vmatprep.subr.bf16.mxu0 0
        %1198 = vmatpush2.bf16.msra.mxu0 0
        %1199 = vmatprep.subr.bf16.mxu0 0
        %1200 = vmatpush2.bf16.msra.mxu0 0
        %1201 = vmatprep.subr.bf16.mxu0 0
        %1202 = vmatpush2.bf16.msra.mxu0 0
        %1203 = vmatprep.mubr.bf16.mxu0 0
        %1204 = vmatmul.mubr.bf16.gmra.mxu0 %v1166
        %v1205 = vpop.f32.mrf.mxu0
        %v1206 = vadd.f32 0.0, %v1205
        %v1207 = vpop.f32.mrf.mxu0
        %v1208 = vpop.f32.mrf.mxu0
        %v1209 = vpop.f32.mrf.mxu0
        %1210 = vdwg.mxu0
        %v1211 = vpack.c.bf16 %v1062, %v1062
        %v1212 = vpack.c.bf16 %v1110, %v1110
        %v1213 = vpack.c.bf16 %v1158, %v1158
        %v1214 = vpack.c.bf16 %v1206, %v1206
        %v1215 = vld [vmem:[%s6] sm:$0xf]
        %v1216 = vld [vmem:[%s6 + $0x4] sm:$0xf]
        %v1217 = vld [vmem:[%s6 + $0x8] sm:$0xf]
        %v1218 = vld [vmem:[%s6 + $0xc] sm:$0xf]
        %v1220 = vsel %vm779, %v1211, 0
        %v1223 = vsel %vm1023, %v1215, 0
        %1225 = vmatprep.subr.bf16.mxu0 0
        %1226 = vmatpush1.bf16.msra.mxu0 0
        %1227 = vmatprep.subr.bf16.mxu0 0
        %1228 = vmatpush1.bf16.msra.mxu0 0
        %1229 = vmatprep.subr.bf16.mxu0 0
        %1230 = vmatpush1.bf16.msra.mxu0 0
        %1231 = vmatprep.subr.bf16.mxu0 0
        %1232 = vmatpush1.bf16.msra.mxu0 0
        %1233 = vmatprep.subr.bf16.mxu0 0
        %1234 = vmatpush1.bf16.msra.mxu0 0
        %1235 = vmatprep.subr.bf16.mxu0 0
        %1236 = vmatpush1.bf16.msra.mxu0 0
        %1237 = vmatprep.subr.bf16.mxu0 0
        %1238 = vmatpush1.bf16.msra.mxu0 0
        %1239 = vmatprep.subr.bf16.mxu0 0
        %1240 = vmatpush1.bf16.msra.mxu0 %v1223
        %1241 = vmatprep.subr.bf16.mxu0 0
        %1242 = vmatpush2.bf16.msra.mxu0 0
        %1243 = vmatprep.subr.bf16.mxu0 0
        %1244 = vmatpush2.bf16.msra.mxu0 0
        %1245 = vmatprep.subr.bf16.mxu0 0
        %1246 = vmatpush2.bf16.msra.mxu0 0
        %1247 = vmatprep.subr.bf16.mxu0 0
        %1248 = vmatpush2.bf16.msra.mxu0 0
        %1249 = vmatprep.subr.bf16.mxu0 0
        %1250 = vmatpush2.bf16.msra.mxu0 0
        %1251 = vmatprep.subr.bf16.mxu0 0
        %1252 = vmatpush2.bf16.msra.mxu0 0
        %1253 = vmatprep.subr.bf16.mxu0 0
        %1254 = vmatpush2.bf16.msra.mxu0 0
        %1255 = vmatprep.subr.bf16.mxu0 0
        %1256 = vmatpush2.bf16.msra.mxu0 0
        %1257 = vmatprep.mubr.bf16.mxu0 0
        %1258 = vmatmul.mubr.bf16.gmra.mxu0 %v1220
        %v1259 = vpop.f32.mrf.mxu0
        %v1260 = vadd.f32 0.0, %v1259
        %v1261 = vpop.f32.mrf.mxu0
        %v1262 = vpop.f32.mrf.mxu0
        %v1263 = vpop.f32.mrf.mxu0
        %1264 = vdwg.mxu0
        %v1266 = vsel %vm779, %v1212, 0
        %v1269 = vsel %vm1023, %v1216, 0
        %1271 = vmatprep.subr.bf16.mxu0 0
        %1272 = vmatpush1.bf16.msra.mxu0 0
        %1273 = vmatprep.subr.bf16.mxu0 0
        %1274 = vmatpush1.bf16.msra.mxu0 0
        %1275 = vmatprep.subr.bf16.mxu0 0
        %1276 = vmatpush1.bf16.msra.mxu0 0
        %1277 = vmatprep.subr.bf16.mxu0 0
        %1278 = vmatpush1.bf16.msra.mxu0 0
        %1279 = vmatprep.subr.bf16.mxu0 0
        %1280 = vmatpush1.bf16.msra.mxu0 0
        %1281 = vmatprep.subr.bf16.mxu0 0
        %1282 = vmatpush1.bf16.msra.mxu0 0
        %1283 = vmatprep.subr.bf16.mxu0 0
        %1284 = vmatpush1.bf16.msra.mxu0 0
        %1285 = vmatprep.subr.bf16.mxu0 0
        %1286 = vmatpush1.bf16.msra.mxu0 %v1269
        %1287 = vmatprep.subr.bf16.mxu0 0
        %1288 = vmatpush2.bf16.msra.mxu0 0
        %1289 = vmatprep.subr.bf16.mxu0 0
        %1290 = vmatpush2.bf16.msra.mxu0 0
        %1291 = vmatprep.subr.bf16.mxu0 0
        %1292 = vmatpush2.bf16.msra.mxu0 0
        %1293 = vmatprep.subr.bf16.mxu0 0
        %1294 = vmatpush2.bf16.msra.mxu0 0
        %1295 = vmatprep.subr.bf16.mxu0 0
        %1296 = vmatpush2.bf16.msra.mxu0 0
        %1297 = vmatprep.subr.bf16.mxu0 0
        %1298 = vmatpush2.bf16.msra.mxu0 0
        %1299 = vmatprep.subr.bf16.mxu0 0
        %1300 = vmatpush2.bf16.msra.mxu0 0
        %1301 = vmatprep.subr.bf16.mxu0 0
        %1302 = vmatpush2.bf16.msra.mxu0 0
        %1303 = vmatprep.mubr.bf16.mxu0 0
        %1304 = vmatmul.mubr.bf16.gmra.mxu0 %v1266
        %v1305 = vpop.f32.mrf.mxu0
        %v1306 = vadd.f32 0.0, %v1305
        %v1307 = vpop.f32.mrf.mxu0
        %v1308 = vpop.f32.mrf.mxu0
        %v1309 = vpop.f32.mrf.mxu0
        %1310 = vdwg.mxu0
        %v1312 = vsel %vm779, %v1213, 0
        %v1315 = vsel %vm1023, %v1217, 0
        %1317 = vmatprep.subr.bf16.mxu0 0
        %1318 = vmatpush1.bf16.msra.mxu0 0
        %1319 = vmatprep.subr.bf16.mxu0 0
        %1320 = vmatpush1.bf16.msra.mxu0 0
        %1321 = vmatprep.subr.bf16.mxu0 0
        %1322 = vmatpush1.bf16.msra.mxu0 0
        %1323 = vmatprep.subr.bf16.mxu0 0
        %1324 = vmatpush1.bf16.msra.mxu0 0
        %1325 = vmatprep.subr.bf16.mxu0 0
        %1326 = vmatpush1.bf16.msra.mxu0 0
        %1327 = vmatprep.subr.bf16.mxu0 0
        %1328 = vmatpush1.bf16.msra.mxu0 0
        %1329 = vmatprep.subr.bf16.mxu0 0
        %1330 = vmatpush1.bf16.msra.mxu0 0
        %1331 = vmatprep.subr.bf16.mxu0 0
        %1332 = vmatpush1.bf16.msra.mxu0 %v1315
        %1333 = vmatprep.subr.bf16.mxu0 0
        %1334 = vmatpush2.bf16.msra.mxu0 0
        %1335 = vmatprep.subr.bf16.mxu0 0
        %1336 = vmatpush2.bf16.msra.mxu0 0
        %1337 = vmatprep.subr.bf16.mxu0 0
        %1338 = vmatpush2.bf16.msra.mxu0 0
        %1339 = vmatprep.subr.bf16.mxu0 0
        %1340 = vmatpush2.bf16.msra.mxu0 0
        %1341 = vmatprep.subr.bf16.mxu0 0
        %1342 = vmatpush2.bf16.msra.mxu0 0
        %1343 = vmatprep.subr.bf16.mxu0 0
        %1344 = vmatpush2.bf16.msra.mxu0 0
        %1345 = vmatprep.subr.bf16.mxu0 0
        %1346 = vmatpush2.bf16.msra.mxu0 0
        %1347 = vmatprep.subr.bf16.mxu0 0
        %1348 = vmatpush2.bf16.msra.mxu0 0
        %1349 = vmatprep.mubr.bf16.mxu0 0
        %1350 = vmatmul.mubr.bf16.gmra.mxu0 %v1312
        %v1351 = vpop.f32.mrf.mxu0
        %v1352 = vadd.f32 0.0, %v1351
        %v1353 = vpop.f32.mrf.mxu0
        %v1354 = vpop.f32.mrf.mxu0
        %v1355 = vpop.f32.mrf.mxu0
        %1356 = vdwg.mxu0
        %v1358 = vsel %vm779, %v1214, 0
        %v1361 = vsel %vm1023, %v1218, 0
        %1363 = vmatprep.subr.bf16.mxu0 0
        %1364 = vmatpush1.bf16.msra.mxu0 0
        %1365 = vmatprep.subr.bf16.mxu0 0
        %1366 = vmatpush1.bf16.msra.mxu0 0
        %1367 = vmatprep.subr.bf16.mxu0 0
        %1368 = vmatpush1.bf16.msra.mxu0 0
        %1369 = vmatprep.subr.bf16.mxu0 0
        %1370 = vmatpush1.bf16.msra.mxu0 0
        %1371 = vmatprep.subr.bf16.mxu0 0
        %1372 = vmatpush1.bf16.msra.mxu0 0
        %1373 = vmatprep.subr.bf16.mxu0 0
        %1374 = vmatpush1.bf16.msra.mxu0 0
        %1375 = vmatprep.subr.bf16.mxu0 0
        %1376 = vmatpush1.bf16.msra.mxu0 0
        %1377 = vmatprep.subr.bf16.mxu0 0
        %1378 = vmatpush1.bf16.msra.mxu0 %v1361
        %1379 = vmatprep.subr.bf16.mxu0 0
        %1380 = vmatpush2.bf16.msra.mxu0 0
        %1381 = vmatprep.subr.bf16.mxu0 0
        %1382 = vmatpush2.bf16.msra.mxu0 0
        %1383 = vmatprep.subr.bf16.mxu0 0
        %1384 = vmatpush2.bf16.msra.mxu0 0
        %1385 = vmatprep.subr.bf16.mxu0 0
        %1386 = vmatpush2.bf16.msra.mxu0 0
        %1387 = vmatprep.subr.bf16.mxu0 0
        %1388 = vmatpush2.bf16.msra.mxu0 0
        %1389 = vmatprep.subr.bf16.mxu0 0
        %1390 = vmatpush2.bf16.msra.mxu0 0
        %1391 = vmatprep.subr.bf16.mxu0 0
        %1392 = vmatpush2.bf16.msra.mxu0 0
        %1393 = vmatprep.subr.bf16.mxu0 0
        %1394 = vmatpush2.bf16.msra.mxu0 0
        %1395 = vmatprep.mubr.bf16.mxu0 0
        %1396 = vmatmul.mubr.bf16.gmra.mxu0 %v1358
        %v1397 = vpop.f32.mrf.mxu0
        %v1398 = vadd.f32 0.0, %v1397
        %v1399 = vpop.f32.mrf.mxu0
        %v1400 = vpop.f32.mrf.mxu0
        %v1401 = vpop.f32.mrf.mxu0
        %1402 = vdwg.mxu0
        %v1403 = vsel %vm639, %v1260, 0.0
        %v1404 = vsel %vm639, %v1306, 0.0
        %v1405 = vadd.f32 %v1403, %v1404
        %v1406 = vsel %vm639, %v1352, 0.0
        %v1407 = vadd.f32 %v1405, %v1406
        %v1408 = vsel %vm639, %v1398, 0.0
        %v1409 = vadd.f32 %v1407, %v1408
        %v1410 = vlaneseq
        %v1411 = vshrl.u32 %v1410, 7
        %v1412 = vsub.s32 1, %v1411
        %v1413 = vrot.slane %v703, %v1412
        %v1414 = vadd.f32 %v1409, %v1413
        %v1415 = vadd.f32 %v1414, %v704
        %v1416 = vsel %vm639, %v1415, 0.0
        %1417 = vadd.xlane.f32.xlu0 %v1416
        %v1418 = vpop.xlane.xlu0 %1417
        %v1419 = vrcp.pop 32.0
        %v1420 = vmul.f32 %v1418, %v1419
        %v1421 = vsub.f32 %v1415, %v1420
        %v1422 = vmul.f32 %v1421, %v1421
        %v1423 = vsel %vm639, %v1422, 0.0
        %1424 = vadd.xlane.f32.xlu0 %v1423
        %v1425 = vpop.xlane.xlu0 %1424
        %v1426 = vmul.f32 %v1425, %v1419
        %v1427 = vadd.f32 %v1426, 1e-05
        %v1428 = vrsqrt.pop %v1427
        %v1429 = vmul.f32 %v1421, %v1428
        %v1430 = vlaneseq
        %v1431 = vshrl.u32 %v1430, 7
        %v1432 = vsub.s32 2, %v1431
        %v1433 = vrot.slane %v703, %v1432
        %v1434 = vmul.f32 %v1429, %v1433
        %v1435 = vlaneseq
        %v1436 = vshrl.u32 %v1435, 7
        %v1437 = vsub.s32 3, %v1436
        %v1438 = vrot.slane %v703, %v1437
        %v1439 = vadd.f32 %v1434, %v1438
        %v1440 = vmul.f32 %v1439, %v608
        %v1441 = vpack.c.bf16 %v1440, %v1440
        %v1442 = vld [vmem:[%s7] sm:$0xf]
        %v1443 = vld [vmem:[%s7 + $0x4] sm:$0xf]
        %v1444 = vld [vmem:[%s7 + $0x8] sm:$0xf]
        %v1445 = vld [vmem:[%s7 + $0xc] sm:$0xf]
        %v1446 = vlaneseq
        %v1447 = vshrl.u32 %v1446, 7
        %v1448 = vsub.s32 4, %v1447
        %v1449 = vrot.slane %v703, %v1448
        %v1454 = vunpack.c.l.b16 %v1442
        %v1455 = vunpack.c.l.b16 %v1443
        %v1456 = vunpack.c.l.b16 %v1444
        %v1457 = vunpack.c.l.b16 %v1445
        %v1458 = vpack.c.b16 %v1455, %v1454
        %v1459 = vpack.c.b16 %v1457, %v1456
        %v1463 = vsel %vm639, %v1441, 0
        %1465 = vmatprep.subr.bf16.mxu0 0
        %1466 = vmatpush1.bf16.msra.mxu0 0
        %1467 = vmatprep.subr.bf16.mxu0 0
        %1468 = vmatpush1.bf16.msra.mxu0 0
        %1469 = vmatprep.subr.bf16.mxu0 0
        %1470 = vmatpush1.bf16.msra.mxu0 0
        %1471 = vmatprep.subr.bf16.mxu0 0
        %1472 = vmatpush1.bf16.msra.mxu0 0
        %1473 = vmatprep.subr.bf16.mxu0 0
        %1474 = vmatpush1.bf16.msra.mxu0 0
        %1475 = vmatprep.subr.bf16.mxu0 0
        %1476 = vmatpush1.bf16.msra.mxu0 0
        %1477 = vmatprep.subr.bf16.mxu0 0
        %1478 = vmatpush1.bf16.msra.mxu0 %v1459
        %1479 = vmatprep.subr.bf16.mxu0 0
        %1480 = vmatpush1.bf16.msra.mxu0 %v1458
        %1481 = vmatprep.subr.bf16.mxu0 0
        %1482 = vmatpush2.bf16.msra.mxu0 0
        %1483 = vmatprep.subr.bf16.mxu0 0
        %1484 = vmatpush2.bf16.msra.mxu0 0
        %1485 = vmatprep.subr.bf16.mxu0 0
        %1486 = vmatpush2.bf16.msra.mxu0 0
        %1487 = vmatprep.subr.bf16.mxu0 0
        %1488 = vmatpush2.bf16.msra.mxu0 0
        %1489 = vmatprep.subr.bf16.mxu0 0
        %1490 = vmatpush2.bf16.msra.mxu0 0
        %1491 = vmatprep.subr.bf16.mxu0 0
        %1492 = vmatpush2.bf16.msra.mxu0 0
        %1493 = vmatprep.subr.bf16.mxu0 0
        %1494 = vmatpush2.bf16.msra.mxu0 0
        %1495 = vmatprep.subr.bf16.mxu0 0
        %1496 = vmatpush2.bf16.msra.mxu0 0
        %1497 = vmatprep.mubr.bf16.mxu0 0
        %1498 = vmatmul.mubr.bf16.gmra.mxu0 %v1463
        %v1499 = vpop.f32.mrf.mxu0
        %v1500 = vadd.f32 %v1449, %v1499
        %v1501 = vpop.f32.mrf.mxu0
        %v1502 = vpop.f32.mrf.mxu0
        %v1503 = vpop.f32.mrf.mxu0
        %1504 = vdwg.mxu0
        %v1505 = vmul.f32 %v1500, %v1500
        %v1506 = vmul.f32 %v1500, %v1505
        %v1507 = vmul.f32 %v1506, 0.044715
        %v1508 = vadd.f32 %v1500, %v1507
        %v1509 = vmul.f32 %v1508, 0.7978846
        %v1510 = vtanh.pop %v1509
        %v1511 = vadd.f32 %v1510, 1.0
        %v1512 = vmul.f32 %v1511, 0.5
        %v1513 = vmul.f32 %v1500, %v1512
        %v1514 = vpack.c.bf16 %v1513, %v1513
        %v1515 = vld [vmem:[%s8] sm:$0xf]
        %v1516 = vld [vmem:[%s8 + $0x4] sm:$0xf]
        %v1517 = vld [vmem:[%s8 + $0x8] sm:$0xf]
        %v1518 = vld [vmem:[%s8 + $0xc] sm:$0xf]
        %v1519 = vld [vmem:[%s8 + $0x10] sm:$0xf]
        %v1520 = vld [vmem:[%s8 + $0x14] sm:$0xf]
        %v1521 = vld [vmem:[%s8 + $0x18] sm:$0xf]
        %v1522 = vld [vmem:[%s8 + $0x1c] sm:$0xf]
        %v1523 = vlaneseq
        %v1524 = vshrl.u32 %v1523, 7
        %v1525 = vsub.s32 5, %v1524
        %v1526 = vrot.slane %v703, %v1525
        %v1535 = vunpack.c.l.b16 %v1515
        %v1536 = vunpack.c.l.b16 %v1516
        %v1537 = vunpack.c.l.b16 %v1517
        %v1538 = vunpack.c.l.b16 %v1518
        %v1539 = vunpack.c.l.b16 %v1519
        %v1540 = vunpack.c.l.b16 %v1520
        %v1541 = vunpack.c.l.b16 %v1521
        %v1542 = vunpack.c.l.b16 %v1522
        %v1543 = vpack.c.b16 %v1536, %v1535
        %v1544 = vpack.c.b16 %v1538, %v1537
        %v1545 = vpack.c.b16 %v1540, %v1539
        %v1546 = vpack.c.b16 %v1542, %v1541
        %vm1551 = vcmask 523264
        %v1553 = vsel %vm1551, %v1514, 0
        %1555 = vmatprep.subr.bf16.mxu0 0
        %1556 = vmatpush1.bf16.msra.mxu0 0
        %1557 = vmatprep.subr.bf16.mxu0 0
        %1558 = vmatpush1.bf16.msra.mxu0 0
        %1559 = vmatprep.subr.bf16.mxu0 0
        %1560 = vmatpush1.bf16.msra.mxu0 0
        %1561 = vmatprep.subr.bf16.mxu0 0
        %1562 = vmatpush1.bf16.msra.mxu0 0
        %1563 = vmatprep.subr.bf16.mxu0 0
        %1564 = vmatpush1.bf16.msra.mxu0 %v1546
        %1565 = vmatprep.subr.bf16.mxu0 0
        %1566 = vmatpush1.bf16.msra.mxu0 %v1545
        %1567 = vmatprep.subr.bf16.mxu0 0
        %1568 = vmatpush1.bf16.msra.mxu0 %v1544
        %1569 = vmatprep.subr.bf16.mxu0 0
        %1570 = vmatpush1.bf16.msra.mxu0 %v1543
        %1571 = vmatprep.subr.bf16.mxu0 0
        %1572 = vmatpush2.bf16.msra.mxu0 0
        %1573 = vmatprep.subr.bf16.mxu0 0
        %1574 = vmatpush2.bf16.msra.mxu0 0
        %1575 = vmatprep.subr.bf16.mxu0 0
        %1576 = vmatpush2.bf16.msra.mxu0 0
        %1577 = vmatprep.subr.bf16.mxu0 0
        %1578 = vmatpush2.bf16.msra.mxu0 0
        %1579 = vmatprep.subr.bf16.mxu0 0
        %1580 = vmatpush2.bf16.msra.mxu0 0
        %1581 = vmatprep.subr.bf16.mxu0 0
        %1582 = vmatpush2.bf16.msra.mxu0 0
        %1583 = vmatprep.subr.bf16.mxu0 0
        %1584 = vmatpush2.bf16.msra.mxu0 0
        %1585 = vmatprep.subr.bf16.mxu0 0
        %1586 = vmatpush2.bf16.msra.mxu0 0
        %1587 = vmatprep.mubr.bf16.mxu0 0
        %1588 = vmatmul.mubr.bf16.gmra.mxu0 %v1553
        %v1589 = vpop.f32.mrf.mxu0
        %v1590 = vadd.f32 %v1526, %v1589
        %v1591 = vpop.f32.mrf.mxu0
        %v1592 = vpop.f32.mrf.mxu0
        %v1593 = vpop.f32.mrf.mxu0
        %1594 = vdwg.mxu0
        %v1595 = vadd.f32 %v1590, %v1440
        %v1596 = vsel %vm639, %v1595, 0.0
        %1597 = vadd.xlane.f32.xlu0 %v1596
        %v1598 = vpop.xlane.xlu0 %1597
        %v1599 = vmul.f32 %v1598, %v1419
        %v1600 = vsub.f32 %v1595, %v1599
        %v1601 = vmul.f32 %v1600, %v1600
        %v1602 = vsel %vm639, %v1601, 0.0
        %1603 = vadd.xlane.f32.xlu0 %v1602
        %v1604 = vpop.xlane.xlu0 %1603
        %v1605 = vmul.f32 %v1604, %v1419
        %v1606 = vadd.f32 %v1605, 1e-05
        %v1607 = vrsqrt.pop %v1606
        %v1608 = vmul.f32 %v1600, %v1607
        %v1609 = vlaneseq
        %v1610 = vshrl.u32 %v1609, 7
        %v1611 = vsub.s32 6, %v1610
        %v1612 = vrot.slane %v703, %v1611
        %v1613 = vmul.f32 %v1608, %v1612
        %v1614 = vlaneseq
        %v1615 = vshrl.u32 %v1614, 7
        %v1616 = vsub.s32 7, %v1615
        %v1617 = vrot.slane %v703, %v1616
        %v1618 = vadd.f32 %v1613, %v1617
        %v1619 = vmul.f32 %v1618, %v608
        %s1620 = scalar_lea.vmem %s9, 8
        %v1621 = vld [vmem:[%s1620] sm:$0xff]
        %v1622 = vadd.f32 %v1619, %v610
        %v1623 = vpack.c.bf16 %v1622, %v1622
        %s1624 = scalar_lea.vmem %s5, 16
        %v1625 = vld [vmem:[%s1624] sm:$0xf]
        %v1626 = vld [vmem:[%s1624 + $0x4] sm:$0xf]
        %v1627 = vld [vmem:[%s1624 + $0x8] sm:$0xf]
        %v1628 = vld [vmem:[%s1624 + $0xc] sm:$0xf]
        %v1629 = vlaneseq
        %v1630 = vshrl.u32 %v1629, 7
        %v1631 = vsub.s32 0, %v1630
        %v1632 = vrot.slane %v1621, %v1631
        %v1637 = vunpack.c.l.b16 %v1625
        %v1638 = vunpack.c.l.b16 %v1626
        %v1639 = vunpack.c.l.b16 %v1627
        %v1640 = vunpack.c.l.b16 %v1628
        %v1641 = vpack.c.b16 %v1638, %v1637
        %v1642 = vpack.c.b16 %v1640, %v1639
        %v1646 = vsel %vm639, %v1623, 0
        %1648 = vmatprep.subr.bf16.mxu0 0
        %1649 = vmatpush1.bf16.msra.mxu0 0
        %1650 = vmatprep.subr.bf16.mxu0 0
        %1651 = vmatpush1.bf16.msra.mxu0 0
        %1652 = vmatprep.subr.bf16.mxu0 0
        %1653 = vmatpush1.bf16.msra.mxu0 0
        %1654 = vmatprep.subr.bf16.mxu0 0
        %1655 = vmatpush1.bf16.msra.mxu0 0
        %1656 = vmatprep.subr.bf16.mxu0 0
        %1657 = vmatpush1.bf16.msra.mxu0 0
        %1658 = vmatprep.subr.bf16.mxu0 0
        %1659 = vmatpush1.bf16.msra.mxu0 0
        %1660 = vmatprep.subr.bf16.mxu0 0
        %1661 = vmatpush1.bf16.msra.mxu0 %v1642
        %1662 = vmatprep.subr.bf16.mxu0 0
        %1663 = vmatpush1.bf16.msra.mxu0 %v1641
        %1664 = vmatprep.subr.bf16.mxu0 0
        %1665 = vmatpush2.bf16.msra.mxu0 0
        %1666 = vmatprep.subr.bf16.mxu0 0
        %1667 = vmatpush2.bf16.msra.mxu0 0
        %1668 = vmatprep.subr.bf16.mxu0 0
        %1669 = vmatpush2.bf16.msra.mxu0 0
        %1670 = vmatprep.subr.bf16.mxu0 0
        %1671 = vmatpush2.bf16.msra.mxu0 0
        %1672 = vmatprep.subr.bf16.mxu0 0
        %1673 = vmatpush2.bf16.msra.mxu0 0
        %1674 = vmatprep.subr.bf16.mxu0 0
        %1675 = vmatpush2.bf16.msra.mxu0 0
        %1676 = vmatprep.subr.bf16.mxu0 0
        %1677 = vmatpush2.bf16.msra.mxu0 0
        %1678 = vmatprep.subr.bf16.mxu0 0
        %1679 = vmatpush2.bf16.msra.mxu0 0
        %1680 = vmatprep.mubr.bf16.mxu0 0
        %1681 = vmatmul.mubr.bf16.gmra.mxu0 %v1646
        %v1682 = vpop.f32.mrf.mxu0
        %v1683 = vadd.f32 %v1632, %v1682
        %v1684 = vpop.f32.mrf.mxu0
        %v1685 = vpop.f32.mrf.mxu0
        %v1686 = vpop.f32.mrf.mxu0
        %1687 = vdwg.mxu0
        %v1688 = vpack.c.bf16 %v1683, %v1683
        %1690 = vrot.lane.b32.xlu0 %v1688, 104
        %v1691 = vpop.permute.xlu0 %1690
        %1692 = vrot.lane.b32.xlu0 %v1688, 80
        %v1693 = vpop.permute.xlu0 %1692
        %1694 = vrot.lane.b32.xlu0 %v1688, 56
        %v1695 = vpop.permute.xlu0 %1694
        %1696 = vrot.lane.b32.xlu0 %v1688, 120
        %v1697 = vpop.permute.xlu0 %1696
        %v1699 = vsel %vm779, %v1688, 0
        %v1702 = vsel %vm779, %v1697, 0
        %1704 = vmatprep.subr.bf16.mxu0 0
        %1705 = vmatpush1.bf16.xpose.msra.mxu0 0
        %1706 = vmatprep.subr.bf16.mxu0 0
        %1707 = vmatpush1.bf16.xpose.msra.mxu0 0
        %1708 = vmatprep.subr.bf16.mxu0 0
        %1709 = vmatpush1.bf16.xpose.msra.mxu0 0
        %1710 = vmatprep.subr.bf16.mxu0 0
        %1711 = vmatpush1.bf16.xpose.msra.mxu0 0
        %1712 = vmatprep.subr.bf16.mxu0 0
        %1713 = vmatpush1.bf16.xpose.msra.mxu0 0
        %1714 = vmatprep.subr.bf16.mxu0 0
        %1715 = vmatpush1.bf16.xpose.msra.mxu0 0
        %1716 = vmatprep.subr.bf16.mxu0 0
        %1717 = vmatpush1.bf16.xpose.msra.mxu0 0
        %1718 = vmatprep.subr.bf16.mxu0 0
        %1719 = vmatpush1.bf16.xpose.msra.mxu0 %v1702
        %1720 = vmatprep.subr.bf16.mxu0 0
        %1721 = vmatpush2.bf16.xpose.msra.mxu0 0
        %1722 = vmatprep.subr.bf16.mxu0 0
        %1723 = vmatpush2.bf16.xpose.msra.mxu0 0
        %1724 = vmatprep.subr.bf16.mxu0 0
        %1725 = vmatpush2.bf16.xpose.msra.mxu0 0
        %1726 = vmatprep.subr.bf16.mxu0 0
        %1727 = vmatpush2.bf16.xpose.msra.mxu0 0
        %1728 = vmatprep.subr.bf16.mxu0 0
        %1729 = vmatpush2.bf16.xpose.msra.mxu0 0
        %1730 = vmatprep.subr.bf16.mxu0 0
        %1731 = vmatpush2.bf16.xpose.msra.mxu0 0
        %1732 = vmatprep.subr.bf16.mxu0 0
        %1733 = vmatpush2.bf16.xpose.msra.mxu0 0
        %1734 = vmatprep.subr.bf16.mxu0 0
        %1735 = vmatpush2.bf16.xpose.msra.mxu0 0
        %1736 = vmatprep.mubr.bf16.mxu0 0
        %1737 = vmatmul.mubr.bf16.gmra.mxu0 %v1699
        %v1738 = vpop.f32.mrf.mxu0
        %v1739 = vadd.f32 %v702, %v1738
        %v1740 = vpop.f32.mrf.mxu0
        %v1741 = vpop.f32.mrf.mxu0
        %v1742 = vpop.f32.mrf.mxu0
        %1743 = vdwg.mxu0
        %1744 = vrot.lane.b32.xlu0 %v1691, 120
        %v1745 = vpop.permute.xlu0 %1744
        %v1747 = vsel %vm779, %v1691, 0
        %v1750 = vsel %vm779, %v1745, 0
        %1752 = vmatprep.subr.bf16.mxu0 0
        %1753 = vmatpush1.bf16.xpose.msra.mxu0 0
        %1754 = vmatprep.subr.bf16.mxu0 0
        %1755 = vmatpush1.bf16.xpose.msra.mxu0 0
        %1756 = vmatprep.subr.bf16.mxu0 0
        %1757 = vmatpush1.bf16.xpose.msra.mxu0 0
        %1758 = vmatprep.subr.bf16.mxu0 0
        %1759 = vmatpush1.bf16.xpose.msra.mxu0 0
        %1760 = vmatprep.subr.bf16.mxu0 0
        %1761 = vmatpush1.bf16.xpose.msra.mxu0 0
        %1762 = vmatprep.subr.bf16.mxu0 0
        %1763 = vmatpush1.bf16.xpose.msra.mxu0 0
        %1764 = vmatprep.subr.bf16.mxu0 0
        %1765 = vmatpush1.bf16.xpose.msra.mxu0 0
        %1766 = vmatprep.subr.bf16.mxu0 0
        %1767 = vmatpush1.bf16.xpose.msra.mxu0 %v1750
        %1768 = vmatprep.subr.bf16.mxu0 0
        %1769 = vmatpush2.bf16.xpose.msra.mxu0 0
        %1770 = vmatprep.subr.bf16.mxu0 0
        %1771 = vmatpush2.bf16.xpose.msra.mxu0 0
        %1772 = vmatprep.subr.bf16.mxu0 0
        %1773 = vmatpush2.bf16.xpose.msra.mxu0 0
        %1774 = vmatprep.subr.bf16.mxu0 0
        %1775 = vmatpush2.bf16.xpose.msra.mxu0 0
        %1776 = vmatprep.subr.bf16.mxu0 0
        %1777 = vmatpush2.bf16.xpose.msra.mxu0 0
        %1778 = vmatprep.subr.bf16.mxu0 0
        %1779 = vmatpush2.bf16.xpose.msra.mxu0 0
        %1780 = vmatprep.subr.bf16.mxu0 0
        %1781 = vmatpush2.bf16.xpose.msra.mxu0 0
        %1782 = vmatprep.subr.bf16.mxu0 0
        %1783 = vmatpush2.bf16.xpose.msra.mxu0 0
        %1784 = vmatprep.mubr.bf16.mxu0 0
        %1785 = vmatmul.mubr.bf16.gmra.mxu0 %v1747
        %v1786 = vpop.f32.mrf.mxu0
        %v1787 = vadd.f32 %v702, %v1786
        %v1788 = vpop.f32.mrf.mxu0
        %v1789 = vpop.f32.mrf.mxu0
        %v1790 = vpop.f32.mrf.mxu0
        %1791 = vdwg.mxu0
        %1792 = vrot.lane.b32.xlu0 %v1693, 120
        %v1793 = vpop.permute.xlu0 %1792
        %v1795 = vsel %vm779, %v1693, 0
        %v1798 = vsel %vm779, %v1793, 0
        %1800 = vmatprep.subr.bf16.mxu0 0
        %1801 = vmatpush1.bf16.xpose.msra.mxu0 0
        %1802 = vmatprep.subr.bf16.mxu0 0
        %1803 = vmatpush1.bf16.xpose.msra.mxu0 0
        %1804 = vmatprep.subr.bf16.mxu0 0
        %1805 = vmatpush1.bf16.xpose.msra.mxu0 0
        %1806 = vmatprep.subr.bf16.mxu0 0
        %1807 = vmatpush1.bf16.xpose.msra.mxu0 0
        %1808 = vmatprep.subr.bf16.mxu0 0
        %1809 = vmatpush1.bf16.xpose.msra.mxu0 0
        %1810 = vmatprep.subr.bf16.mxu0 0
        %1811 = vmatpush1.bf16.xpose.msra.mxu0 0
        %1812 = vmatprep.subr.bf16.mxu0 0
        %1813 = vmatpush1.bf16.xpose.msra.mxu0 0
        %1814 = vmatprep.subr.bf16.mxu0 0
        %1815 = vmatpush1.bf16.xpose.msra.mxu0 %v1798
        %1816 = vmatprep.subr.bf16.mxu0 0
        %1817 = vmatpush2.bf16.xpose.msra.mxu0 0
        %1818 = vmatprep.subr.bf16.mxu0 0
        %1819 = vmatpush2.bf16.xpose.msra.mxu0 0
        %1820 = vmatprep.subr.bf16.mxu0 0
        %1821 = vmatpush2.bf16.xpose.msra.mxu0 0
        %1822 = vmatprep.subr.bf16.mxu0 0
        %1823 = vmatpush2.bf16.xpose.msra.mxu0 0
        %1824 = vmatprep.subr.bf16.mxu0 0
        %1825 = vmatpush2.bf16.xpose.msra.mxu0 0
        %1826 = vmatprep.subr.bf16.mxu0 0
        %1827 = vmatpush2.bf16.xpose.msra.mxu0 0
        %1828 = vmatprep.subr.bf16.mxu0 0
        %1829 = vmatpush2.bf16.xpose.msra.mxu0 0
        %1830 = vmatprep.subr.bf16.mxu0 0
        %1831 = vmatpush2.bf16.xpose.msra.mxu0 0
        %1832 = vmatprep.mubr.bf16.mxu0 0
        %1833 = vmatmul.mubr.bf16.gmra.mxu0 %v1795
        %v1834 = vpop.f32.mrf.mxu0
        %v1835 = vadd.f32 %v702, %v1834
        %v1836 = vpop.f32.mrf.mxu0
        %v1837 = vpop.f32.mrf.mxu0
        %v1838 = vpop.f32.mrf.mxu0
        %1839 = vdwg.mxu0
        %1840 = vrot.lane.b32.xlu0 %v1695, 120
        %v1841 = vpop.permute.xlu0 %1840
        %v1843 = vsel %vm779, %v1695, 0
        %v1846 = vsel %vm779, %v1841, 0
        %1848 = vmatprep.subr.bf16.mxu0 0
        %1849 = vmatpush1.bf16.xpose.msra.mxu0 0
        %1850 = vmatprep.subr.bf16.mxu0 0
        %1851 = vmatpush1.bf16.xpose.msra.mxu0 0
        %1852 = vmatprep.subr.bf16.mxu0 0
        %1853 = vmatpush1.bf16.xpose.msra.mxu0 0
        %1854 = vmatprep.subr.bf16.mxu0 0
        %1855 = vmatpush1.bf16.xpose.msra.mxu0 0
        %1856 = vmatprep.subr.bf16.mxu0 0
        %1857 = vmatpush1.bf16.xpose.msra.mxu0 0
        %1858 = vmatprep.subr.bf16.mxu0 0
        %1859 = vmatpush1.bf16.xpose.msra.mxu0 0
        %1860 = vmatprep.subr.bf16.mxu0 0
        %1861 = vmatpush1.bf16.xpose.msra.mxu0 0
        %1862 = vmatprep.subr.bf16.mxu0 0
        %1863 = vmatpush1.bf16.xpose.msra.mxu0 %v1846
        %1864 = vmatprep.subr.bf16.mxu0 0
        %1865 = vmatpush2.bf16.xpose.msra.mxu0 0
        %1866 = vmatprep.subr.bf16.mxu0 0
        %1867 = vmatpush2.bf16.xpose.msra.mxu0 0
        %1868 = vmatprep.subr.bf16.mxu0 0
        %1869 = vmatpush2.bf16.xpose.msra.mxu0 0
        %1870 = vmatprep.subr.bf16.mxu0 0
        %1871 = vmatpush2.bf16.xpose.msra.mxu0 0
        %1872 = vmatprep.subr.bf16.mxu0 0
        %1873 = vmatpush2.bf16.xpose.msra.mxu0 0
        %1874 = vmatprep.subr.bf16.mxu0 0
        %1875 = vmatpush2.bf16.xpose.msra.mxu0 0
        %1876 = vmatprep.subr.bf16.mxu0 0
        %1877 = vmatpush2.bf16.xpose.msra.mxu0 0
        %1878 = vmatprep.subr.bf16.mxu0 0
        %1879 = vmatpush2.bf16.xpose.msra.mxu0 0
        %1880 = vmatprep.mubr.bf16.mxu0 0
        %1881 = vmatmul.mubr.bf16.gmra.mxu0 %v1843
        %v1882 = vpop.f32.mrf.mxu0
        %v1883 = vadd.f32 %v702, %v1882
        %v1884 = vpop.f32.mrf.mxu0
        %v1885 = vpop.f32.mrf.mxu0
        %v1886 = vpop.f32.mrf.mxu0
        %1887 = vdwg.mxu0
        %v1888 = vsel %vm779, %v1739, -inf
        %1889 = vmax.xlane.f32.xlu0 %v1888
        %v1890 = vpop.xlane.xlu0 %1889
        %v1891 = vsel %vm779, %v1787, -inf
        %1892 = vmax.xlane.f32.xlu0 %v1891
        %v1893 = vpop.xlane.xlu0 %1892
        %v1894 = vsel %vm779, %v1835, -inf
        %1895 = vmax.xlane.f32.xlu0 %v1894
        %v1896 = vpop.xlane.xlu0 %1895
        %v1897 = vsel %vm779, %v1883, -inf
        %1898 = vmax.xlane.f32.xlu0 %v1897
        %v1899 = vpop.xlane.xlu0 %1898
        %v1900 = vsub.f32 %v1739, %v1890
        %v1901 = vsub.f32 %v1787, %v1893
        %v1902 = vsub.f32 %v1835, %v1896
        %v1903 = vsub.f32 %v1883, %v1899
        %v1904 = vmul.f32 %v1900, 1.442695
        %v1905 = vpow.pop %v1904
        %v1906 = vmul.f32 %v1901, 1.442695
        %v1907 = vpow.pop %v1906
        %v1908 = vmul.f32 %v1902, 1.442695
        %v1909 = vpow.pop %v1908
        %v1910 = vmul.f32 %v1903, 1.442695
        %v1911 = vpow.pop %v1910
        %v1912 = vsel %vm779, %v1905, 0.0
        %1913 = vadd.xlane.f32.xlu0 %v1912
        %v1914 = vpop.xlane.xlu0 %1913
        %v1915 = vsel %vm779, %v1907, 0.0
        %1916 = vadd.xlane.f32.xlu0 %v1915
        %v1917 = vpop.xlane.xlu0 %1916
        %v1918 = vsel %vm779, %v1909, 0.0
        %1919 = vadd.xlane.f32.xlu0 %v1918
        %v1920 = vpop.xlane.xlu0 %1919
        %v1921 = vsel %vm779, %v1911, 0.0
        %1922 = vadd.xlane.f32.xlu0 %v1921
        %v1923 = vpop.xlane.xlu0 %1922
        %v1924 = vrcp.pop %v1914
        %v1925 = vrcp.pop %v1917
        %v1926 = vrcp.pop %v1920
        %v1927 = vrcp.pop %v1923
        %v1928 = vmul.f32 %v1905, %v1924
        %v1929 = vmul.f32 %v1907, %v1925
        %v1930 = vmul.f32 %v1909, %v1926
        %v1931 = vmul.f32 %v1911, %v1927
        %v1932 = vpack.c.bf16 %v1928, %v1928
        %v1933 = vpack.c.bf16 %v1929, %v1929
        %v1934 = vpack.c.bf16 %v1930, %v1930
        %v1935 = vpack.c.bf16 %v1931, %v1931
        %1936 = vrot.lane.b32.xlu0 %v1688, 112
        %v1937 = vpop.permute.xlu0 %1936
        %v1939 = vsel %vm779, %v1932, 0
        %v1942 = vsel %vm1023, %v1937, 0
        %1944 = vmatprep.subr.bf16.mxu0 0
        %1945 = vmatpush1.bf16.msra.mxu0 0
        %1946 = vmatprep.subr.bf16.mxu0 0
        %1947 = vmatpush1.bf16.msra.mxu0 0
        %1948 = vmatprep.subr.bf16.mxu0 0
        %1949 = vmatpush1.bf16.msra.mxu0 0
        %1950 = vmatprep.subr.bf16.mxu0 0
        %1951 = vmatpush1.bf16.msra.mxu0 0
        %1952 = vmatprep.subr.bf16.mxu0 0
        %1953 = vmatpush1.bf16.msra.mxu0 0
        %1954 = vmatprep.subr.bf16.mxu0 0
        %1955 = vmatpush1.bf16.msra.mxu0 0
        %1956 = vmatprep.subr.bf16.mxu0 0
        %1957 = vmatpush1.bf16.msra.mxu0 0
        %1958 = vmatprep.subr.bf16.mxu0 0
        %1959 = vmatpush1.bf16.msra.mxu0 %v1942
        %1960 = vmatprep.subr.bf16.mxu0 0
        %1961 = vmatpush2.bf16.msra.mxu0 0
        %1962 = vmatprep.subr.bf16.mxu0 0
        %1963 = vmatpush2.bf16.msra.mxu0 0
        %1964 = vmatprep.subr.bf16.mxu0 0
        %1965 = vmatpush2.bf16.msra.mxu0 0
        %1966 = vmatprep.subr.bf16.mxu0 0
        %1967 = vmatpush2.bf16.msra.mxu0 0
        %1968 = vmatprep.subr.bf16.mxu0 0
        %1969 = vmatpush2.bf16.msra.mxu0 0
        %1970 = vmatprep.subr.bf16.mxu0 0
        %1971 = vmatpush2.bf16.msra.mxu0 0
        %1972 = vmatprep.subr.bf16.mxu0 0
        %1973 = vmatpush2.bf16.msra.mxu0 0
        %1974 = vmatprep.subr.bf16.mxu0 0
        %1975 = vmatpush2.bf16.msra.mxu0 0
        %1976 = vmatprep.mubr.bf16.mxu0 0
        %1977 = vmatmul.mubr.bf16.gmra.mxu0 %v1939
        %v1978 = vpop.f32.mrf.mxu0
        %v1979 = vadd.f32 0.0, %v1978
        %v1980 = vpop.f32.mrf.mxu0
        %v1981 = vpop.f32.mrf.mxu0
        %v1982 = vpop.f32.mrf.mxu0
        %1983 = vdwg.mxu0
        %1984 = vrot.lane.b32.xlu0 %v1691, 112
        %v1985 = vpop.permute.xlu0 %1984
        %v1987 = vsel %vm779, %v1933, 0
        %v1990 = vsel %vm1023, %v1985, 0
        %1992 = vmatprep.subr.bf16.mxu0 0
        %1993 = vmatpush1.bf16.msra.mxu0 0
        %1994 = vmatprep.subr.bf16.mxu0 0
        %1995 = vmatpush1.bf16.msra.mxu0 0
        %1996 = vmatprep.subr.bf16.mxu0 0
        %1997 = vmatpush1.bf16.msra.mxu0 0
        %1998 = vmatprep.subr.bf16.mxu0 0
        %1999 = vmatpush1.bf16.msra.mxu0 0
        %2000 = vmatprep.subr.bf16.mxu0 0
        %2001 = vmatpush1.bf16.msra.mxu0 0
        %2002 = vmatprep.subr.bf16.mxu0 0
        %2003 = vmatpush1.bf16.msra.mxu0 0
        %2004 = vmatprep.subr.bf16.mxu0 0
        %2005 = vmatpush1.bf16.msra.mxu0 0
        %2006 = vmatprep.subr.bf16.mxu0 0
        %2007 = vmatpush1.bf16.msra.mxu0 %v1990
        %2008 = vmatprep.subr.bf16.mxu0 0
        %2009 = vmatpush2.bf16.msra.mxu0 0
        %2010 = vmatprep.subr.bf16.mxu0 0
        %2011 = vmatpush2.bf16.msra.mxu0 0
        %2012 = vmatprep.subr.bf16.mxu0 0
        %2013 = vmatpush2.bf16.msra.mxu0 0
        %2014 = vmatprep.subr.bf16.mxu0 0
        %2015 = vmatpush2.bf16.msra.mxu0 0
        %2016 = vmatprep.subr.bf16.mxu0 0
        %2017 = vmatpush2.bf16.msra.mxu0 0
        %2018 = vmatprep.subr.bf16.mxu0 0
        %2019 = vmatpush2.bf16.msra.mxu0 0
        %2020 = vmatprep.subr.bf16.mxu0 0
        %2021 = vmatpush2.bf16.msra.mxu0 0
        %2022 = vmatprep.subr.bf16.mxu0 0
        %2023 = vmatpush2.bf16.msra.mxu0 0
        %2024 = vmatprep.mubr.bf16.mxu0 0
        %2025 = vmatmul.mubr.bf16.gmra.mxu0 %v1987
        %v2026 = vpop.f32.mrf.mxu0
        %v2027 = vadd.f32 0.0, %v2026
        %v2028 = vpop.f32.mrf.mxu0
        %v2029 = vpop.f32.mrf.mxu0
        %v2030 = vpop.f32.mrf.mxu0
        %2031 = vdwg.mxu0
        %2032 = vrot.lane.b32.xlu0 %v1693, 112
        %v2033 = vpop.permute.xlu0 %2032
        %v2035 = vsel %vm779, %v1934, 0
        %v2038 = vsel %vm1023, %v2033, 0
        %2040 = vmatprep.subr.bf16.mxu0 0
        %2041 = vmatpush1.bf16.msra.mxu0 0
        %2042 = vmatprep.subr.bf16.mxu0 0
        %2043 = vmatpush1.bf16.msra.mxu0 0
        %2044 = vmatprep.subr.bf16.mxu0 0
        %2045 = vmatpush1.bf16.msra.mxu0 0
        %2046 = vmatprep.subr.bf16.mxu0 0
        %2047 = vmatpush1.bf16.msra.mxu0 0
        %2048 = vmatprep.subr.bf16.mxu0 0
        %2049 = vmatpush1.bf16.msra.mxu0 0
        %2050 = vmatprep.subr.bf16.mxu0 0
        %2051 = vmatpush1.bf16.msra.mxu0 0
        %2052 = vmatprep.subr.bf16.mxu0 0
        %2053 = vmatpush1.bf16.msra.mxu0 0
        %2054 = vmatprep.subr.bf16.mxu0 0
        %2055 = vmatpush1.bf16.msra.mxu0 %v2038
        %2056 = vmatprep.subr.bf16.mxu0 0
        %2057 = vmatpush2.bf16.msra.mxu0 0
        %2058 = vmatprep.subr.bf16.mxu0 0
        %2059 = vmatpush2.bf16.msra.mxu0 0
        %2060 = vmatprep.subr.bf16.mxu0 0
        %2061 = vmatpush2.bf16.msra.mxu0 0
        %2062 = vmatprep.subr.bf16.mxu0 0
        %2063 = vmatpush2.bf16.msra.mxu0 0
        %2064 = vmatprep.subr.bf16.mxu0 0
        %2065 = vmatpush2.bf16.msra.mxu0 0
        %2066 = vmatprep.subr.bf16.mxu0 0
        %2067 = vmatpush2.bf16.msra.mxu0 0
        %2068 = vmatprep.subr.bf16.mxu0 0
        %2069 = vmatpush2.bf16.msra.mxu0 0
        %2070 = vmatprep.subr.bf16.mxu0 0
        %2071 = vmatpush2.bf16.msra.mxu0 0
        %2072 = vmatprep.mubr.bf16.mxu0 0
        %2073 = vmatmul.mubr.bf16.gmra.mxu0 %v2035
        %v2074 = vpop.f32.mrf.mxu0
        %v2075 = vadd.f32 0.0, %v2074
        %v2076 = vpop.f32.mrf.mxu0
        %v2077 = vpop.f32.mrf.mxu0
        %v2078 = vpop.f32.mrf.mxu0
        %2079 = vdwg.mxu0
        %2080 = vrot.lane.b32.xlu0 %v1695, 112
        %v2081 = vpop.permute.xlu0 %2080
        %v2083 = vsel %vm779, %v1935, 0
        %v2086 = vsel %vm1023, %v2081, 0
        %2088 = vmatprep.subr.bf16.mxu0 0
        %2089 = vmatpush1.bf16.msra.mxu0 0
        %2090 = vmatprep.subr.bf16.mxu0 0
        %2091 = vmatpush1.bf16.msra.mxu0 0
        %2092 = vmatprep.subr.bf16.mxu0 0
        %2093 = vmatpush1.bf16.msra.mxu0 0
        %2094 = vmatprep.subr.bf16.mxu0 0
        %2095 = vmatpush1.bf16.msra.mxu0 0
        %2096 = vmatprep.subr.bf16.mxu0 0
        %2097 = vmatpush1.bf16.msra.mxu0 0
        %2098 = vmatprep.subr.bf16.mxu0 0
        %2099 = vmatpush1.bf16.msra.mxu0 0
        %2100 = vmatprep.subr.bf16.mxu0 0
        %2101 = vmatpush1.bf16.msra.mxu0 0
        %2102 = vmatprep.subr.bf16.mxu0 0
        %2103 = vmatpush1.bf16.msra.mxu0 %v2086
        %2104 = vmatprep.subr.bf16.mxu0 0
        %2105 = vmatpush2.bf16.msra.mxu0 0
        %2106 = vmatprep.subr.bf16.mxu0 0
        %2107 = vmatpush2.bf16.msra.mxu0 0
        %2108 = vmatprep.subr.bf16.mxu0 0
        %2109 = vmatpush2.bf16.msra.mxu0 0
        %2110 = vmatprep.subr.bf16.mxu0 0
        %2111 = vmatpush2.bf16.msra.mxu0 0
        %2112 = vmatprep.subr.bf16.mxu0 0
        %2113 = vmatpush2.bf16.msra.mxu0 0
        %2114 = vmatprep.subr.bf16.mxu0 0
        %2115 = vmatpush2.bf16.msra.mxu0 0
        %2116 = vmatprep.subr.bf16.mxu0 0
        %2117 = vmatpush2.bf16.msra.mxu0 0
        %2118 = vmatprep.subr.bf16.mxu0 0
        %2119 = vmatpush2.bf16.msra.mxu0 0
        %2120 = vmatprep.mubr.bf16.mxu0 0
        %2121 = vmatmul.mubr.bf16.gmra.mxu0 %v2083
        %v2122 = vpop.f32.mrf.mxu0
        %v2123 = vadd.f32 0.0, %v2122
        %v2124 = vpop.f32.mrf.mxu0
        %v2125 = vpop.f32.mrf.mxu0
        %v2126 = vpop.f32.mrf.mxu0
        %2127 = vdwg.mxu0
        %v2128 = vpack.c.bf16 %v1979, %v1979
        %v2129 = vpack.c.bf16 %v2027, %v2027
        %v2130 = vpack.c.bf16 %v2075, %v2075
        %v2131 = vpack.c.bf16 %v2123, %v2123
        %s2132 = scalar_lea.vmem %s6, 16
        %v2133 = vld [vmem:[%s2132] sm:$0xf]
        %v2134 = vld [vmem:[%s2132 + $0x4] sm:$0xf]
        %v2135 = vld [vmem:[%s2132 + $0x8] sm:$0xf]
        %v2136 = vld [vmem:[%s2132 + $0xc] sm:$0xf]
        %v2138 = vsel %vm779, %v2128, 0
        %v2141 = vsel %vm1023, %v2133, 0
        %2143 = vmatprep.subr.bf16.mxu0 0
        %2144 = vmatpush1.bf16.msra.mxu0 0
        %2145 = vmatprep.subr.bf16.mxu0 0
        %2146 = vmatpush1.bf16.msra.mxu0 0
        %2147 = vmatprep.subr.bf16.mxu0 0
        %2148 = vmatpush1.bf16.msra.mxu0 0
        %2149 = vmatprep.subr.bf16.mxu0 0
        %2150 = vmatpush1.bf16.msra.mxu0 0
        %2151 = vmatprep.subr.bf16.mxu0 0
        %2152 = vmatpush1.bf16.msra.mxu0 0
        %2153 = vmatprep.subr.bf16.mxu0 0
        %2154 = vmatpush1.bf16.msra.mxu0 0
        %2155 = vmatprep.subr.bf16.mxu0 0
        %2156 = vmatpush1.bf16.msra.mxu0 0
        %2157 = vmatprep.subr.bf16.mxu0 0
        %2158 = vmatpush1.bf16.msra.mxu0 %v2141
        %2159 = vmatprep.subr.bf16.mxu0 0
        %2160 = vmatpush2.bf16.msra.mxu0 0
        %2161 = vmatprep.subr.bf16.mxu0 0
        %2162 = vmatpush2.bf16.msra.mxu0 0
        %2163 = vmatprep.subr.bf16.mxu0 0
        %2164 = vmatpush2.bf16.msra.mxu0 0
        %2165 = vmatprep.subr.bf16.mxu0 0
        %2166 = vmatpush2.bf16.msra.mxu0 0
        %2167 = vmatprep.subr.bf16.mxu0 0
        %2168 = vmatpush2.bf16.msra.mxu0 0
        %2169 = vmatprep.subr.bf16.mxu0 0
        %2170 = vmatpush2.bf16.msra.mxu0 0
        %2171 = vmatprep.subr.bf16.mxu0 0
        %2172 = vmatpush2.bf16.msra.mxu0 0
        %2173 = vmatprep.subr.bf16.mxu0 0
        %2174 = vmatpush2.bf16.msra.mxu0 0
        %2175 = vmatprep.mubr.bf16.mxu0 0
        %2176 = vmatmul.mubr.bf16.gmra.mxu0 %v2138
        %v2177 = vpop.f32.mrf.mxu0
        %v2178 = vadd.f32 0.0, %v2177
        %v2179 = vpop.f32.mrf.mxu0
        %v2180 = vpop.f32.mrf.mxu0
        %v2181 = vpop.f32.mrf.mxu0
        %2182 = vdwg.mxu0
        %v2184 = vsel %vm779, %v2129, 0
        %v2187 = vsel %vm1023, %v2134, 0
        %2189 = vmatprep.subr.bf16.mxu0 0
        %2190 = vmatpush1.bf16.msra.mxu0 0
        %2191 = vmatprep.subr.bf16.mxu0 0
        %2192 = vmatpush1.bf16.msra.mxu0 0
        %2193 = vmatprep.subr.bf16.mxu0 0
        %2194 = vmatpush1.bf16.msra.mxu0 0
        %2195 = vmatprep.subr.bf16.mxu0 0
        %2196 = vmatpush1.bf16.msra.mxu0 0
        %2197 = vmatprep.subr.bf16.mxu0 0
        %2198 = vmatpush1.bf16.msra.mxu0 0
        %2199 = vmatprep.subr.bf16.mxu0 0
        %2200 = vmatpush1.bf16.msra.mxu0 0
        %2201 = vmatprep.subr.bf16.mxu0 0
        %2202 = vmatpush1.bf16.msra.mxu0 0
        %2203 = vmatprep.subr.bf16.mxu0 0
        %2204 = vmatpush1.bf16.msra.mxu0 %v2187
        %2205 = vmatprep.subr.bf16.mxu0 0
        %2206 = vmatpush2.bf16.msra.mxu0 0
        %2207 = vmatprep.subr.bf16.mxu0 0
        %2208 = vmatpush2.bf16.msra.mxu0 0
        %2209 = vmatprep.subr.bf16.mxu0 0
        %2210 = vmatpush2.bf16.msra.mxu0 0
        %2211 = vmatprep.subr.bf16.mxu0 0
        %2212 = vmatpush2.bf16.msra.mxu0 0
        %2213 = vmatprep.subr.bf16.mxu0 0
        %2214 = vmatpush2.bf16.msra.mxu0 0
        %2215 = vmatprep.subr.bf16.mxu0 0
        %2216 = vmatpush2.bf16.msra.mxu0 0
        %2217 = vmatprep.subr.bf16.mxu0 0
        %2218 = vmatpush2.bf16.msra.mxu0 0
        %2219 = vmatprep.subr.bf16.mxu0 0
        %2220 = vmatpush2.bf16.msra.mxu0 0
        %2221 = vmatprep.mubr.bf16.mxu0 0
        %2222 = vmatmul.mubr.bf16.gmra.mxu0 %v2184
        %v2223 = vpop.f32.mrf.mxu0
        %v2224 = vadd.f32 0.0, %v2223
        %v2225 = vpop.f32.mrf.mxu0
        %v2226 = vpop.f32.mrf.mxu0
        %v2227 = vpop.f32.mrf.mxu0
        %2228 = vdwg.mxu0
        %v2230 = vsel %vm779, %v2130, 0
        %v2233 = vsel %vm1023, %v2135, 0
        %2235 = vmatprep.subr.bf16.mxu0 0
        %2236 = vmatpush1.bf16.msra.mxu0 0
        %2237 = vmatprep.subr.bf16.mxu0 0
        %2238 = vmatpush1.bf16.msra.mxu0 0
        %2239 = vmatprep.subr.bf16.mxu0 0
        %2240 = vmatpush1.bf16.msra.mxu0 0
        %2241 = vmatprep.subr.bf16.mxu0 0
        %2242 = vmatpush1.bf16.msra.mxu0 0
        %2243 = vmatprep.subr.bf16.mxu0 0
        %2244 = vmatpush1.bf16.msra.mxu0 0
        %2245 = vmatprep.subr.bf16.mxu0 0
        %2246 = vmatpush1.bf16.msra.mxu0 0
        %2247 = vmatprep.subr.bf16.mxu0 0
        %2248 = vmatpush1.bf16.msra.mxu0 0
        %2249 = vmatprep.subr.bf16.mxu0 0
        %2250 = vmatpush1.bf16.msra.mxu0 %v2233
        %2251 = vmatprep.subr.bf16.mxu0 0
        %2252 = vmatpush2.bf16.msra.mxu0 0
        %2253 = vmatprep.subr.bf16.mxu0 0
        %2254 = vmatpush2.bf16.msra.mxu0 0
        %2255 = vmatprep.subr.bf16.mxu0 0
        %2256 = vmatpush2.bf16.msra.mxu0 0
        %2257 = vmatprep.subr.bf16.mxu0 0
        %2258 = vmatpush2.bf16.msra.mxu0 0
        %2259 = vmatprep.subr.bf16.mxu0 0
        %2260 = vmatpush2.bf16.msra.mxu0 0
        %2261 = vmatprep.subr.bf16.mxu0 0
        %2262 = vmatpush2.bf16.msra.mxu0 0
        %2263 = vmatprep.subr.bf16.mxu0 0
        %2264 = vmatpush2.bf16.msra.mxu0 0
        %2265 = vmatprep.subr.bf16.mxu0 0
        %2266 = vmatpush2.bf16.msra.mxu0 0
        %2267 = vmatprep.mubr.bf16.mxu0 0
        %2268 = vmatmul.mubr.bf16.gmra.mxu0 %v2230
        %v2269 = vpop.f32.mrf.mxu0
        %v2270 = vadd.f32 0.0, %v2269
        %v2271 = vpop.f32.mrf.mxu0
        %v2272 = vpop.f32.mrf.mxu0
        %v2273 = vpop.f32.mrf.mxu0
        %2274 = vdwg.mxu0
        %v2276 = vsel %vm779, %v2131, 0
        %v2279 = vsel %vm1023, %v2136, 0
        %2281 = vmatprep.subr.bf16.mxu0 0
        %2282 = vmatpush1.bf16.msra.mxu0 0
        %2283 = vmatprep.subr.bf16.mxu0 0
        %2284 = vmatpush1.bf16.msra.mxu0 0
        %2285 = vmatprep.subr.bf16.mxu0 0
        %2286 = vmatpush1.bf16.msra.mxu0 0
        %2287 = vmatprep.subr.bf16.mxu0 0
        %2288 = vmatpush1.bf16.msra.mxu0 0
        %2289 = vmatprep.subr.bf16.mxu0 0
        %2290 = vmatpush1.bf16.msra.mxu0 0
        %2291 = vmatprep.subr.bf16.mxu0 0
        %2292 = vmatpush1.bf16.msra.mxu0 0
        %2293 = vmatprep.subr.bf16.mxu0 0
        %2294 = vmatpush1.bf16.msra.mxu0 0
        %2295 = vmatprep.subr.bf16.mxu0 0
        %2296 = vmatpush1.bf16.msra.mxu0 %v2279
        %2297 = vmatprep.subr.bf16.mxu0 0
        %2298 = vmatpush2.bf16.msra.mxu0 0
        %2299 = vmatprep.subr.bf16.mxu0 0
        %2300 = vmatpush2.bf16.msra.mxu0 0
        %2301 = vmatprep.subr.bf16.mxu0 0
        %2302 = vmatpush2.bf16.msra.mxu0 0
        %2303 = vmatprep.subr.bf16.mxu0 0
        %2304 = vmatpush2.bf16.msra.mxu0 0
        %2305 = vmatprep.subr.bf16.mxu0 0
        %2306 = vmatpush2.bf16.msra.mxu0 0
        %2307 = vmatprep.subr.bf16.mxu0 0
        %2308 = vmatpush2.bf16.msra.mxu0 0
        %2309 = vmatprep.subr.bf16.mxu0 0
        %2310 = vmatpush2.bf16.msra.mxu0 0
        %2311 = vmatprep.subr.bf16.mxu0 0
        %2312 = vmatpush2.bf16.msra.mxu0 0
        %2313 = vmatprep.mubr.bf16.mxu0 0
        %2314 = vmatmul.mubr.bf16.gmra.mxu0 %v2276
        %v2315 = vpop.f32.mrf.mxu0
        %v2316 = vadd.f32 0.0, %v2315
        %v2317 = vpop.f32.mrf.mxu0
        %v2318 = vpop.f32.mrf.mxu0
        %v2319 = vpop.f32.mrf.mxu0
        %2320 = vdwg.mxu0
        %v2321 = vsel %vm639, %v2178, 0.0
        %v2322 = vsel %vm639, %v2224, 0.0
        %v2323 = vadd.f32 %v2321, %v2322
        %v2324 = vsel %vm639, %v2270, 0.0
        %v2325 = vadd.f32 %v2323, %v2324
        %v2326 = vsel %vm639, %v2316, 0.0
        %v2327 = vadd.f32 %v2325, %v2326
        %v2328 = vlaneseq
        %v2329 = vshrl.u32 %v2328, 7
        %v2330 = vsub.s32 1, %v2329
        %v2331 = vrot.slane %v1621, %v2330
        %v2332 = vadd.f32 %v2327, %v2331
        %v2333 = vadd.f32 %v2332, %v1622
        %v2334 = vsel %vm639, %v2333, 0.0
        %2335 = vadd.xlane.f32.xlu0 %v2334
        %v2336 = vpop.xlane.xlu0 %2335
        %v2337 = vmul.f32 %v2336, %v1419
        %v2338 = vsub.f32 %v2333, %v2337
        %v2339 = vmul.f32 %v2338, %v2338
        %v2340 = vsel %vm639, %v2339, 0.0
        %2341 = vadd.xlane.f32.xlu0 %v2340
        %v2342 = vpop.xlane.xlu0 %2341
        %v2343 = vmul.f32 %v2342, %v1419
        %v2344 = vadd.f32 %v2343, 1e-05
        %v2345 = vrsqrt.pop %v2344
        %v2346 = vmul.f32 %v2338, %v2345
        %v2347 = vlaneseq
        %v2348 = vshrl.u32 %v2347, 7
        %v2349 = vsub.s32 2, %v2348
        %v2350 = vrot.slane %v1621, %v2349
        %v2351 = vmul.f32 %v2346, %v2350
        %v2352 = vlaneseq
        %v2353 = vshrl.u32 %v2352, 7
        %v2354 = vsub.s32 3, %v2353
        %v2355 = vrot.slane %v1621, %v2354
        %v2356 = vadd.f32 %v2351, %v2355
        %v2357 = vmul.f32 %v2356, %v608
        %v2358 = vpack.c.bf16 %v2357, %v2357
        %s2359 = scalar_lea.vmem %s7, 16
        %v2360 = vld [vmem:[%s2359] sm:$0xf]
        %v2361 = vld [vmem:[%s2359 + $0x4] sm:$0xf]
        %v2362 = vld [vmem:[%s2359 + $0x8] sm:$0xf]
        %v2363 = vld [vmem:[%s2359 + $0xc] sm:$0xf]
        %v2364 = vlaneseq
        %v2365 = vshrl.u32 %v2364, 7
        %v2366 = vsub.s32 4, %v2365
        %v2367 = vrot.slane %v1621, %v2366
        %v2372 = vunpack.c.l.b16 %v2360
        %v2373 = vunpack.c.l.b16 %v2361
        %v2374 = vunpack.c.l.b16 %v2362
        %v2375 = vunpack.c.l.b16 %v2363
        %v2376 = vpack.c.b16 %v2373, %v2372
        %v2377 = vpack.c.b16 %v2375, %v2374
        %v2381 = vsel %vm639, %v2358, 0
        %2383 = vmatprep.subr.bf16.mxu0 0
        %2384 = vmatpush1.bf16.msra.mxu0 0
        %2385 = vmatprep.subr.bf16.mxu0 0
        %2386 = vmatpush1.bf16.msra.mxu0 0
        %2387 = vmatprep.subr.bf16.mxu0 0
        %2388 = vmatpush1.bf16.msra.mxu0 0
        %2389 = vmatprep.subr.bf16.mxu0 0
        %2390 = vmatpush1.bf16.msra.mxu0 0
        %2391 = vmatprep.subr.bf16.mxu0 0
        %2392 = vmatpush1.bf16.msra.mxu0 0
        %2393 = vmatprep.subr.bf16.mxu0 0
        %2394 = vmatpush1.bf16.msra.mxu0 0
        %2395 = vmatprep.subr.bf16.mxu0 0
        %2396 = vmatpush1.bf16.msra.mxu0 %v2377
        %2397 = vmatprep.subr.bf16.mxu0 0
        %2398 = vmatpush1.bf16.msra.mxu0 %v2376
        %2399 = vmatprep.subr.bf16.mxu0 0
        %2400 = vmatpush2.bf16.msra.mxu0 0
        %2401 = vmatprep.subr.bf16.mxu0 0
        %2402 = vmatpush2.bf16.msra.mxu0 0
        %2403 = vmatprep.subr.bf16.mxu0 0
        %2404 = vmatpush2.bf16.msra.mxu0 0
        %2405 = vmatprep.subr.bf16.mxu0 0
        %2406 = vmatpush2.bf16.msra.mxu0 0
        %2407 = vmatprep.subr.bf16.mxu0 0
        %2408 = vmatpush2.bf16.msra.mxu0 0
        %2409 = vmatprep.subr.bf16.mxu0 0
        %2410 = vmatpush2.bf16.msra.mxu0 0
        %2411 = vmatprep.subr.bf16.mxu0 0
        %2412 = vmatpush2.bf16.msra.mxu0 0
        %2413 = vmatprep.subr.bf16.mxu0 0
        %2414 = vmatpush2.bf16.msra.mxu0 0
        %2415 = vmatprep.mubr.bf16.mxu0 0
        %2416 = vmatmul.mubr.bf16.gmra.mxu0 %v2381
        %v2417 = vpop.f32.mrf.mxu0
        %v2418 = vadd.f32 %v2367, %v2417
        %v2419 = vpop.f32.mrf.mxu0
        %v2420 = vpop.f32.mrf.mxu0
        %v2421 = vpop.f32.mrf.mxu0
        %2422 = vdwg.mxu0
        %v2423 = vmul.f32 %v2418, %v2418
        %v2424 = vmul.f32 %v2418, %v2423
        %v2425 = vmul.f32 %v2424, 0.044715
        %v2426 = vadd.f32 %v2418, %v2425
        %v2427 = vmul.f32 %v2426, 0.7978846
        %v2428 = vtanh.pop %v2427
        %v2429 = vadd.f32 %v2428, 1.0
        %v2430 = vmul.f32 %v2429, 0.5
        %v2431 = vmul.f32 %v2418, %v2430
        %v2432 = vpack.c.bf16 %v2431, %v2431
        %s2433 = scalar_lea.vmem %s8, 32
        %v2434 = vld [vmem:[%s2433] sm:$0xf]
        %v2435 = vld [vmem:[%s2433 + $0x4] sm:$0xf]
        %v2436 = vld [vmem:[%s2433 + $0x8] sm:$0xf]
        %v2437 = vld [vmem:[%s2433 + $0xc] sm:$0xf]
        %v2438 = vld [vmem:[%s2433 + $0x10] sm:$0xf]
        %v2439 = vld [vmem:[%s2433 + $0x14] sm:$0xf]
        %v2440 = vld [vmem:[%s2433 + $0x18] sm:$0xf]
        %v2441 = vld [vmem:[%s2433 + $0x1c] sm:$0xf]
        %v2442 = vlaneseq
        %v2443 = vshrl.u32 %v2442, 7
        %v2444 = vsub.s32 5, %v2443
        %v2445 = vrot.slane %v1621, %v2444
        %v2454 = vunpack.c.l.b16 %v2434
        %v2455 = vunpack.c.l.b16 %v2435
        %v2456 = vunpack.c.l.b16 %v2436
        %v2457 = vunpack.c.l.b16 %v2437
        %v2458 = vunpack.c.l.b16 %v2438
        %v2459 = vunpack.c.l.b16 %v2439
        %v2460 = vunpack.c.l.b16 %v2440
        %v2461 = vunpack.c.l.b16 %v2441
        %v2462 = vpack.c.b16 %v2455, %v2454
        %v2463 = vpack.c.b16 %v2457, %v2456
        %v2464 = vpack.c.b16 %v2459, %v2458
        %v2465 = vpack.c.b16 %v2461, %v2460
        %v2471 = vsel %vm1551, %v2432, 0
        %2473 = vmatprep.subr.bf16.mxu0 0
        %2474 = vmatpush1.bf16.msra.mxu0 0
        %2475 = vmatprep.subr.bf16.mxu0 0
        %2476 = vmatpush1.bf16.msra.mxu0 0
        %2477 = vmatprep.subr.bf16.mxu0 0
        %2478 = vmatpush1.bf16.msra.mxu0 0
        %2479 = vmatprep.subr.bf16.mxu0 0
        %2480 = vmatpush1.bf16.msra.mxu0 0
        %2481 = vmatprep.subr.bf16.mxu0 0
        %2482 = vmatpush1.bf16.msra.mxu0 %v2465
        %2483 = vmatprep.subr.bf16.mxu0 0
        %2484 = vmatpush1.bf16.msra.mxu0 %v2464
        %2485 = vmatprep.subr.bf16.mxu0 0
        %2486 = vmatpush1.bf16.msra.mxu0 %v2463
        %2487 = vmatprep.subr.bf16.mxu0 0
        %2488 = vmatpush1.bf16.msra.mxu0 %v2462
        %2489 = vmatprep.subr.bf16.mxu0 0
        %2490 = vmatpush2.bf16.msra.mxu0 0
        %2491 = vmatprep.subr.bf16.mxu0 0
        %2492 = vmatpush2.bf16.msra.mxu0 0
        %2493 = vmatprep.subr.bf16.mxu0 0
        %2494 = vmatpush2.bf16.msra.mxu0 0
        %2495 = vmatprep.subr.bf16.mxu0 0
        %2496 = vmatpush2.bf16.msra.mxu0 0
        %2497 = vmatprep.subr.bf16.mxu0 0
        %2498 = vmatpush2.bf16.msra.mxu0 0
        %2499 = vmatprep.subr.bf16.mxu0 0
        %2500 = vmatpush2.bf16.msra.mxu0 0
        %2501 = vmatprep.subr.bf16.mxu0 0
        %2502 = vmatpush2.bf16.msra.mxu0 0
        %2503 = vmatprep.subr.bf16.mxu0 0
        %2504 = vmatpush2.bf16.msra.mxu0 0
        %2505 = vmatprep.mubr.bf16.mxu0 0
        %2506 = vmatmul.mubr.bf16.gmra.mxu0 %v2471
        %v2507 = vpop.f32.mrf.mxu0
        %v2508 = vadd.f32 %v2445, %v2507
        %v2509 = vpop.f32.mrf.mxu0
        %v2510 = vpop.f32.mrf.mxu0
        %v2511 = vpop.f32.mrf.mxu0
        %2512 = vdwg.mxu0
        %v2513 = vadd.f32 %v2508, %v2357
        %v2514 = vsel %vm639, %v2513, 0.0
        %2515 = vadd.xlane.f32.xlu0 %v2514
        %v2516 = vpop.xlane.xlu0 %2515
        %v2517 = vmul.f32 %v2516, %v1419
        %v2518 = vsub.f32 %v2513, %v2517
        %v2519 = vmul.f32 %v2518, %v2518
        %v2520 = vsel %vm639, %v2519, 0.0
        %2521 = vadd.xlane.f32.xlu0 %v2520
        %v2522 = vpop.xlane.xlu0 %2521
        %v2523 = vmul.f32 %v2522, %v1419
        %v2524 = vadd.f32 %v2523, 1e-05
        %v2525 = vrsqrt.pop %v2524
        %v2526 = vmul.f32 %v2518, %v2525
        %v2527 = vlaneseq
        %v2528 = vshrl.u32 %v2527, 7
        %v2529 = vsub.s32 6, %v2528
        %v2530 = vrot.slane %v1621, %v2529
        %v2531 = vmul.f32 %v2526, %v2530
        %v2532 = vlaneseq
        %v2533 = vshrl.u32 %v2532, 7
        %v2534 = vsub.s32 7, %v2533
        %v2535 = vrot.slane %v1621, %v2534
        %v2536 = vadd.f32 %v2531, %v2535
        %v2537 = vmul.f32 %v2536, %v608
        %2538 = vst.msk [vmem:[%s450] sm:$0xff] %vm639, %v2537
        %s2539 = sand.u32 %s259, 1
        %s2540 = scalar_lea.sflag [#allocation4], %s2539
        %s2541 = sand.u32 %s259, 1
        %s2542 = smul.addr %s2541, 8
        %s2543 = scalar_lea.vmem [#allocation11], %s2542
        // Predicated region
        $region81: #{tpu_custom_call.1} parent=59 // pred_check
          %p2544 = pneg %p269
        $region82: #{tpu_custom_call.1} parent=59 // pred_check_branch
          %2546 = sbr.rel (%p2544) target = $region84
        $region83: #{tpu_custom_call.1} parent=59 // pred_region
          %s2548 = ssub.s32 128, 128
          %2549 = vsyncadd %s2540, %s2548
          %s2550 = smul.addr %s31, 128
          %s2551 = scalar_lea.hbm %s10, %s2550
          %s2553 = sshll.u32 %s2543, 4
          %s2554 = int_to_ptr.vmem [resolvable:$true] %s2553
          %2556 = dma.vmem_to_hbm [thread:$0]  %s2554, 128, %s2551, %s2540
        $region84: #{tpu_custom_call.1} parent=59 // pred_fallthru
          _
      $region60: #{tpu_custom_call.1} parent=5 // pred_fallthru
        _
      %p2557 = scmp.le.s32.totalorder 2, %s26
      // Predicated region
      $region85: #{tpu_custom_call.1} parent=5 // pred_check
        %p2558 = pneg %p2557
      $region86: #{tpu_custom_call.1} parent=5 // pred_check_branch
        %2560 = sbr.rel (%p2558) target = $region88
      $region87: #{tpu_custom_call.1} parent=5 // pred_region
        %s2561 = ssub.s32 %s26, 2
        // Predicated region
        $region89: #{tpu_custom_call.1} parent=87 // pred_check
          %p2562 = pneg %p275
        $region90: #{tpu_custom_call.1} parent=87 // pred_check_branch
          %2564 = sbr.rel (%p2562) target = $region92
        $region91: #{tpu_custom_call.1} parent=87 // pred_region
          %s2565 = sand.u32 %s260, 1
          %s2566 = scalar_lea.sflag [#allocation4], %s2565
          %s2567 = sand.u32 %s260, 1
          %s2568 = smul.addr %s2567, 8
          %s2569 = scalar_lea.vmem [#allocation11], %s2568
          %2570 = dma.done %s2566, 128
        $region92: #{tpu_custom_call.1} parent=87 // pred_fallthru
          _
      $region88: #{tpu_custom_call.1} parent=5 // pred_fallthru
        _
    $region6: #{tpu_custom_call.1} parent=1 // loop_footer
      %s30 = sadd.s32 1, %s26
    $region7: #{tpu_custom_call.1} parent=1 // loop_footer_branch
      %25 = sbr.rel target = $region3
    $region8: #{tpu_custom_call.1} parent=1 // loop_exit
      _
    %2571 = vsyncpa [#allocation3], 1
    %s2572 = scalar_lea.sflag [#allocation3], 1
    %2573 = vsyncpa %s2572, 1
    %2574 = vsyncpa [#allocation6], 1
    %s2575 = scalar_lea.sflag [#allocation6], 1
    %2576 = vsyncpa %s2575, 1
    %2577 = vsyncpa [#allocation9], 1
    %2578 = vsyncpa [#allocation4], 1
    %s2579 = scalar_lea.sflag [#allocation4], 1
    %2580 = vsyncpa %s2579, 1

</llo_original>
